<compile_context>
chip_gen: v5e
topology: v5e:2x2
jax: 0.10.0
libtpu: 0.0.40
codegen_flags: <defaults>
</compile_context>

<pallas_src>
import jax
import jax.numpy as jnp
from jax import lax
from jax.experimental import pallas as pl
from jax.experimental.pallas import tpu as pltpu


# -----------------------------------------------------------------------------
# Fused kernel: conv1x1 + separable bilinear upsample + channel mean/max
#               + 7x7 conv (padding=3) + sigmoid + broadcast multiply
# -----------------------------------------------------------------------------
def spatial_attention_kernel(high_ref, low_ref, ah_ref, awt_ref,
                             w1_ref, b1_ref, w77_ref, b77_ref, out_ref):
    # high_ref: (1, C, Hh, Wh) VMEM   high-resolution-pyramid (small) feature
    # low_ref : (1, C, Hl, Wl) VMEM   low feature (target spatial size)
    # ah_ref  : (Hl, Hh) VMEM         bilinear row operator  (align_corners)
    # awt_ref : (Wh, Wl) VMEM         bilinear col operator, transposed
    # w1_ref  : (C*C,) SMEM           1x1 conv weight, row-major [out, in]
    # b1_ref  : (C,)   SMEM           1x1 conv bias
    # w77_ref : (98,)  SMEM           7x7 conv weight, [in(2), ky(7), kx(7)]
    # b77_ref : (1,)   SMEM           7x7 conv bias
    # out_ref : (1, C, Hl, Wl) VMEM
    C = high_ref.shape[1]
    Hl, Wl = low_ref.shape[2], low_ref.shape[3]

    hf3 = high_ref[0].astype(jnp.float32)      # (C, Hh, Wh)
    low3 = low_ref[0].astype(jnp.float32)      # (C, Hl, Wl)
    ah = ah_ref[...]                           # (Hl, Hh)
    awt = awt_ref[...]                         # (Wh, Wl)

    highs = [hf3[c] for c in range(C)]
    lows = [low3[c] for c in range(C)]

    # Running channel-sum / channel-max over the 2C concatenated channels.
    sum_map = lows[0]
    max_map = lows[0]
    for c in range(1, C):
        sum_map = sum_map + lows[c]
        max_map = jnp.maximum(max_map, lows[c])

    # 1x1 conv (channel mix via SMEM scalars) + separable bilinear upsample.
    for o in range(C):
        y_o = w1_ref[o * C] * highs[0]
        for c in range(1, C):
            y_o = y_o + w1_ref[o * C + c] * highs[c]
        y_o = y_o + b1_ref[o]                                    # (Hh, Wh)
        up_o = jnp.dot(ah,
                       jnp.dot(y_o, awt, preferred_element_type=jnp.float32),
                       preferred_element_type=jnp.float32)       # (Hl, Wl)
        sum_map = sum_map + up_o
        max_map = jnp.maximum(max_map, up_o)

    avg_map = sum_map * (1.0 / (2.0 * C))

    # In-kernel zero padding (pad=3) for the 7x7 'same' convolution.
    def pad3(m):
        zr = jnp.zeros((3, Wl), jnp.float32)
        m = jnp.concatenate([zr, m, zr], axis=0)                 # (Hl+6, Wl)
        zc = jnp.zeros((Hl + 6, 3), jnp.float32)
        return jnp.concatenate([zc, m, zc], axis=1)              # (Hl+6, Wl+6)

    pads = [pad3(avg_map), pad3(max_map)]

    # 7x7 conv: shift-and-accumulate with 4 independent accumulators.
    accs = [jnp.zeros((Hl, Wl), jnp.float32) for _ in range(4)]
    for c in range(2):
        pp = pads[c]
        for dy in range(7):
            a = 2 * c + (dy & 1)
            for dx in range(7):
                wv = w77_ref[c * 49 + dy * 7 + dx]               # SMEM scalar
                accs[a] = accs[a] + wv * pp[dy:dy + Hl, dx:dx + Wl]
    acc = (accs[0] + accs[1]) + (accs[2] + accs[3]) + b77_ref[0]

    # Sigmoid: exp goes to the EUP; reciprocal via pl.reciprocal (exact).
    sw = pl.reciprocal(1.0 + jnp.exp(-acc), approx=False)        # (Hl, Wl)

    out_ref[0] = (low3 * sw[None, :, :]).astype(out_ref.dtype)


# -----------------------------------------------------------------------------
# Glue
# -----------------------------------------------------------------------------
def interp_matrix(out_size, in_size):
    """Row-stochastic matrix A (out, in) s.t. A @ x == bilinear(align_corners=True)."""
    if out_size == 1:
        coords = jnp.zeros((1,), jnp.float32)
    else:
        coords = jnp.arange(out_size, dtype=jnp.float32) * (
            (in_size - 1) / (out_size - 1))
    i0 = jnp.clip(jnp.floor(coords).astype(jnp.int32), 0, in_size - 1)
    i1 = jnp.clip(i0 + 1, 0, in_size - 1)
    frac = coords - i0.astype(jnp.float32)
    m = (jax.nn.one_hot(i0, in_size, dtype=jnp.float32) * (1.0 - frac)[:, None]
         + jax.nn.one_hot(i1, in_size, dtype=jnp.float32) * frac[:, None])
    return m


def spatial_attention_pallas(low, high, params):
    N, C, Hl, Wl = low.shape
    _, _, Hh, Wh = high.shape

    w1 = params["conv1x1_w"].reshape(C * C).astype(jnp.float32)
    b1 = params["conv1x1_b"].reshape(C).astype(jnp.float32)
    w77 = params["conv7x7_w"].reshape(2 * 49).astype(jnp.float32)
    b77 = params["conv7x7_b"].reshape(1).astype(jnp.float32)

    ah = interp_matrix(Hl, Hh)                 # (Hl, Hh)
    awt = interp_matrix(Wl, Wh).T              # (Wh, Wl)

    out = pl.pallas_call(
        spatial_attention_kernel,
        out_shape=jax.ShapeDtypeStruct((N, C, Hl, Wl), jnp.float32),
        grid=(N,),
        in_specs=[
            pl.BlockSpec((1, C, Hh, Wh), lambda n: (n, 0, 0, 0)),
            pl.BlockSpec((1, C, Hl, Wl), lambda n: (n, 0, 0, 0)),
            pl.BlockSpec((Hl, Hh), lambda n: (0, 0)),
            pl.BlockSpec((Wh, Wl), lambda n: (0, 0)),
            pl.BlockSpec(memory_space=pltpu.MemorySpace.SMEM),
            pl.BlockSpec(memory_space=pltpu.MemorySpace.SMEM),
            pl.BlockSpec(memory_space=pltpu.MemorySpace.SMEM),
            pl.BlockSpec(memory_space=pltpu.MemorySpace.SMEM),
        ],
        out_specs=pl.BlockSpec((1, C, Hl, Wl), lambda n: (n, 0, 0, 0)),
        compiler_params=pltpu.CompilerParams(
            dimension_semantics=("parallel",)),
    )(high, low, ah, awt, w1, b1, w77, b77)
    return out


# -----------------------------------------------------------------------------
# Plain-JAX reference (mirrors the PyTorch forward) for correctness checking
# -----------------------------------------------------------------------------
def spatial_attention_ref(low, high, params):
    N, C, Hl, Wl = low.shape
    dn = ("NCHW", "OIHW", "NCHW")
    y1 = lax.conv_general_dilated(high, params["conv1x1_w"], (1, 1), "VALID",
                                  dimension_numbers=dn)
    y1 = y1 + params["conv1x1_b"][None, :, None, None]
    A_h = interp_matrix(Hl, high.shape[2])
    A_w = interp_matrix(Wl, high.shape[3])
    up = jnp.einsum("nchw,Hh,Ww->ncHW", y1, A_h, A_w)
    cat = jnp.concatenate([low, up], axis=1)
    avg = jnp.mean(cat, axis=1, keepdims=True)
    mx = jnp.max(cat, axis=1, keepdims=True)
    pc = jnp.concatenate([avg, mx], axis=1)
    sw = lax.conv_general_dilated(pc, params["conv7x7_w"], (1, 1),
                                  ((3, 3), (3, 3)), dimension_numbers=dn)
    sw = jax.nn.sigmoid(sw + params["conv7x7_b"][None, :, None, None])
    return low * sw


if __name__ == "__main__":
    N, C = 2, 4
    Hl = Wl = 16
    Hh = Wh = 8

    key = jax.random.PRNGKey(0)
    k1, k2, k3, k4, k5, k6 = jax.random.split(key, 6)
    params = {
        "conv1x1_w": 0.2 * jax.random.normal(k1, (C, C, 1, 1), jnp.float32),
        "conv1x1_b": 0.1 * jax.random.normal(k2, (C,), jnp.float32),
        "conv7x7_w": 0.1 * jax.random.normal(k3, (1, 2, 7, 7), jnp.float32),
        "conv7x7_b": 0.1 * jax.random.normal(k4, (1,), jnp.float32),
    }
    low_feature = jax.random.normal(k5, (N, C, Hl, Wl), jnp.float32)
    high_feature = jax.random.normal(k6, (N, C, Hh, Wh), jnp.float32)

    out = spatial_attention_pallas(low_feature, high_feature, params)
    out = jax.block_until_ready(out)

    ref = spatial_attention_ref(low_feature, high_feature, params)
    assert out.shape == (N, C, Hl, Wl)
    assert jnp.allclose(out, ref, atol=1e-4, rtol=1e-4), float(
        jnp.max(jnp.abs(out - ref)))

    print("KERNEL_OK")
</pallas_src>

<mosaic_0001>
module attributes {stable_mosaic.version = 11 : i64} {
  func.func @spatial_attention_kernel(%arg0: i32, %arg1: memref<1x4x8x8xf32, #tpu.memory_space<vmem>>, %arg2: memref<1x4x16x16xf32, #tpu.memory_space<vmem>>, %arg3: memref<16x8xf32, #tpu.memory_space<vmem>>, %arg4: memref<8x16xf32, #tpu.memory_space<vmem>>, %arg5: memref<16xf32, #tpu.memory_space<smem>>, %arg6: memref<4xf32, #tpu.memory_space<smem>>, %arg7: memref<98xf32, #tpu.memory_space<smem>>, %arg8: memref<1xf32, #tpu.memory_space<smem>>, %arg9: memref<1x4x16x16xf32, #tpu.memory_space<vmem>>) attributes {dimension_semantics = [#tpu.dimension_semantics<parallel>], iteration_bounds = array<i64: 2>, scalar_prefetch = 0 : i64, scratch_operands = 0 : i64, tpu.core_type = #tpu.core_type<tc>, window_params = [{transform_indices = @transform_0, window_bounds = array<i64: 1, 4, 8, 8>}, {transform_indices = @transform_1, window_bounds = array<i64: 1, 4, 16, 16>}, {pipeline_mode = #tpu.pipeline_mode<synchronous>, transform_indices = @transform_2, window_bounds = array<i64: 16, 8>}, {pipeline_mode = #tpu.pipeline_mode<synchronous>, transform_indices = @transform_3, window_bounds = array<i64: 8, 16>}, {transform_indices = @transform_4, window_bounds = array<i64: 16>}, {transform_indices = @transform_5, window_bounds = array<i64: 4>}, {transform_indices = @transform_6, window_bounds = array<i64: 98>}, {transform_indices = @transform_7, window_bounds = array<i64: 1>}, {transform_indices = @transform_8, window_bounds = array<i64: 1, 4, 16, 16>}]} {
    %c0 = arith.constant 0 : index
    %c0_0 = arith.constant 0 : index
    %c0_1 = arith.constant 0 : index
    %c0_2 = arith.constant 0 : index
    %0 = vector.load %arg1[%c0, %c0_0, %c0_1, %c0_2] : memref<1x4x8x8xf32, #tpu.memory_space<vmem>>, vector<1x4x8x8xf32>
    %1 = vector.shape_cast %0 : vector<1x4x8x8xf32> to vector<4x8x8xf32>
    %c0_3 = arith.constant 0 : index
    %c0_4 = arith.constant 0 : index
    %c0_5 = arith.constant 0 : index
    %c0_6 = arith.constant 0 : index
    %2 = vector.load %arg2[%c0_3, %c0_4, %c0_5, %c0_6] : memref<1x4x16x16xf32, #tpu.memory_space<vmem>>, vector<1x4x16x16xf32>
    %3 = vector.shape_cast %2 : vector<1x4x16x16xf32> to vector<4x16x16xf32>
    %c0_7 = arith.constant 0 : index
    %c0_8 = arith.constant 0 : index
    %4 = vector.load %arg3[%c0_7, %c0_8] : memref<16x8xf32, #tpu.memory_space<vmem>>, vector<16x8xf32>
    %c0_9 = arith.constant 0 : index
    %c0_10 = arith.constant 0 : index
    %5 = vector.load %arg4[%c0_9, %c0_10] : memref<8x16xf32, #tpu.memory_space<vmem>>, vector<8x16xf32>
    %6 = vector.extract_strided_slice %1 {offsets = [0, 0, 0], sizes = [1, 8, 8], strides = [1, 1, 1]} : vector<4x8x8xf32> to vector<1x8x8xf32>
    %7 = vector.shape_cast %6 : vector<1x8x8xf32> to vector<8x8xf32>
    %8 = vector.extract_strided_slice %1 {offsets = [1, 0, 0], sizes = [1, 8, 8], strides = [1, 1, 1]} : vector<4x8x8xf32> to vector<1x8x8xf32>
    %9 = vector.shape_cast %8 : vector<1x8x8xf32> to vector<8x8xf32>
    %10 = vector.extract_strided_slice %1 {offsets = [2, 0, 0], sizes = [1, 8, 8], strides = [1, 1, 1]} : vector<4x8x8xf32> to vector<1x8x8xf32>
    %11 = vector.shape_cast %10 : vector<1x8x8xf32> to vector<8x8xf32>
    %12 = vector.extract_strided_slice %1 {offsets = [3, 0, 0], sizes = [1, 8, 8], strides = [1, 1, 1]} : vector<4x8x8xf32> to vector<1x8x8xf32>
    %13 = vector.shape_cast %12 : vector<1x8x8xf32> to vector<8x8xf32>
    %14 = vector.extract_strided_slice %3 {offsets = [0, 0, 0], sizes = [1, 16, 16], strides = [1, 1, 1]} : vector<4x16x16xf32> to vector<1x16x16xf32>
    %15 = vector.shape_cast %14 : vector<1x16x16xf32> to vector<16x16xf32>
    %16 = vector.extract_strided_slice %3 {offsets = [1, 0, 0], sizes = [1, 16, 16], strides = [1, 1, 1]} : vector<4x16x16xf32> to vector<1x16x16xf32>
    %17 = vector.shape_cast %16 : vector<1x16x16xf32> to vector<16x16xf32>
    %18 = vector.extract_strided_slice %3 {offsets = [2, 0, 0], sizes = [1, 16, 16], strides = [1, 1, 1]} : vector<4x16x16xf32> to vector<1x16x16xf32>
    %19 = vector.shape_cast %18 : vector<1x16x16xf32> to vector<16x16xf32>
    %20 = vector.extract_strided_slice %3 {offsets = [3, 0, 0], sizes = [1, 16, 16], strides = [1, 1, 1]} : vector<4x16x16xf32> to vector<1x16x16xf32>
    %21 = vector.shape_cast %20 : vector<1x16x16xf32> to vector<16x16xf32>
    %22 = arith.addf %15, %17 : vector<16x16xf32>
    %23 = arith.maximumf %15, %17 : vector<16x16xf32>
    %24 = arith.addf %22, %19 : vector<16x16xf32>
    %25 = arith.maximumf %23, %19 : vector<16x16xf32>
    %26 = arith.addf %24, %21 : vector<16x16xf32>
    %27 = arith.maximumf %25, %21 : vector<16x16xf32>
    %c0_11 = arith.constant 0 : index
    %28 = memref.load %arg5[%c0_11] : memref<16xf32, #tpu.memory_space<smem>>
    %29 = vector.broadcast %28 : f32 to vector<8x8xf32>
    %30 = arith.mulf %29, %7 : vector<8x8xf32>
    %c1 = arith.constant 1 : index
    %31 = memref.load %arg5[%c1] : memref<16xf32, #tpu.memory_space<smem>>
    %32 = vector.broadcast %31 : f32 to vector<8x8xf32>
    %33 = arith.mulf %32, %9 : vector<8x8xf32>
    %34 = arith.addf %30, %33 : vector<8x8xf32>
    %c2 = arith.constant 2 : index
    %35 = memref.load %arg5[%c2] : memref<16xf32, #tpu.memory_space<smem>>
    %36 = vector.broadcast %35 : f32 to vector<8x8xf32>
    %37 = arith.mulf %36, %11 : vector<8x8xf32>
    %38 = arith.addf %34, %37 : vector<8x8xf32>
    %c3 = arith.constant 3 : index
    %39 = memref.load %arg5[%c3] : memref<16xf32, #tpu.memory_space<smem>>
    %40 = vector.broadcast %39 : f32 to vector<8x8xf32>
    %41 = arith.mulf %40, %13 : vector<8x8xf32>
    %42 = arith.addf %38, %41 : vector<8x8xf32>
    %c0_12 = arith.constant 0 : index
    %43 = memref.load %arg6[%c0_12] : memref<4xf32, #tpu.memory_space<smem>>
    %44 = vector.broadcast %43 : f32 to vector<8x8xf32>
    %45 = arith.addf %42, %44 : vector<8x8xf32>
    %cst = arith.constant dense<0.000000e+00> : vector<8x16xf32>
    %46 = tpu.matmul %45, %5, %cst {dimension_numbers = #tpu.dot_dimension_numbers<[1], [0], [0], [1], [0, 0, 1, 1], [], []>} : vector<8x8xf32>, vector<8x16xf32>, vector<8x16xf32> -> vector<8x16xf32>
    %cst_13 = arith.constant dense<0.000000e+00> : vector<16x16xf32>
    %47 = tpu.matmul %4, %46, %cst_13 {dimension_numbers = #tpu.dot_dimension_numbers<[1], [0], [0], [1], [0, 0, 1, 1], [], []>} : vector<16x8xf32>, vector<8x16xf32>, vector<16x16xf32> -> vector<16x16xf32>
    %48 = arith.addf %26, %47 : vector<16x16xf32>
    %49 = arith.maximumf %27, %47 : vector<16x16xf32>
    %c4 = arith.constant 4 : index
    %50 = memref.load %arg5[%c4] : memref<16xf32, #tpu.memory_space<smem>>
    %51 = vector.broadcast %50 : f32 to vector<8x8xf32>
    %52 = arith.mulf %51, %7 : vector<8x8xf32>
    %c5 = arith.constant 5 : index
    %53 = memref.load %arg5[%c5] : memref<16xf32, #tpu.memory_space<smem>>
    %54 = vector.broadcast %53 : f32 to vector<8x8xf32>
    %55 = arith.mulf %54, %9 : vector<8x8xf32>
    %56 = arith.addf %52, %55 : vector<8x8xf32>
    %c6 = arith.constant 6 : index
    %57 = memref.load %arg5[%c6] : memref<16xf32, #tpu.memory_space<smem>>
    %58 = vector.broadcast %57 : f32 to vector<8x8xf32>
    %59 = arith.mulf %58, %11 : vector<8x8xf32>
    %60 = arith.addf %56, %59 : vector<8x8xf32>
    %c7 = arith.constant 7 : index
    %61 = memref.load %arg5[%c7] : memref<16xf32, #tpu.memory_space<smem>>
    %62 = vector.broadcast %61 : f32 to vector<8x8xf32>
    %63 = arith.mulf %62, %13 : vector<8x8xf32>
    %64 = arith.addf %60, %63 : vector<8x8xf32>
    %c1_14 = arith.constant 1 : index
    %65 = memref.load %arg6[%c1_14] : memref<4xf32, #tpu.memory_space<smem>>
    %66 = vector.broadcast %65 : f32 to vector<8x8xf32>
    %67 = arith.addf %64, %66 : vector<8x8xf32>
    %cst_15 = arith.constant dense<0.000000e+00> : vector<8x16xf32>
    %68 = tpu.matmul %67, %5, %cst_15 {dimension_numbers = #tpu.dot_dimension_numbers<[1], [0], [0], [1], [0, 0, 1, 1], [], []>} : vector<8x8xf32>, vector<8x16xf32>, vector<8x16xf32> -> vector<8x16xf32>
    %cst_16 = arith.constant dense<0.000000e+00> : vector<16x16xf32>
    %69 = tpu.matmul %4, %68, %cst_16 {dimension_numbers = #tpu.dot_dimension_numbers<[1], [0], [0], [1], [0, 0, 1, 1], [], []>} : vector<16x8xf32>, vector<8x16xf32>, vector<16x16xf32> -> vector<16x16xf32>
    %70 = arith.addf %48, %69 : vector<16x16xf32>
    %71 = arith.maximumf %49, %69 : vector<16x16xf32>
    %c8 = arith.constant 8 : index
    %72 = memref.load %arg5[%c8] : memref<16xf32, #tpu.memory_space<smem>>
    %73 = vector.broadcast %72 : f32 to vector<8x8xf32>
    %74 = arith.mulf %73, %7 : vector<8x8xf32>
    %c9 = arith.constant 9 : index
    %75 = memref.load %arg5[%c9] : memref<16xf32, #tpu.memory_space<smem>>
    %76 = vector.broadcast %75 : f32 to vector<8x8xf32>
    %77 = arith.mulf %76, %9 : vector<8x8xf32>
    %78 = arith.addf %74, %77 : vector<8x8xf32>
    %c10 = arith.constant 10 : index
    %79 = memref.load %arg5[%c10] : memref<16xf32, #tpu.memory_space<smem>>
    %80 = vector.broadcast %79 : f32 to vector<8x8xf32>
    %81 = arith.mulf %80, %11 : vector<8x8xf32>
    %82 = arith.addf %78, %81 : vector<8x8xf32>
    %c11 = arith.constant 11 : index
    %83 = memref.load %arg5[%c11] : memref<16xf32, #tpu.memory_space<smem>>
    %84 = vector.broadcast %83 : f32 to vector<8x8xf32>
    %85 = arith.mulf %84, %13 : vector<8x8xf32>
    %86 = arith.addf %82, %85 : vector<8x8xf32>
    %c2_17 = arith.constant 2 : index
    %87 = memref.load %arg6[%c2_17] : memref<4xf32, #tpu.memory_space<smem>>
    %88 = vector.broadcast %87 : f32 to vector<8x8xf32>
    %89 = arith.addf %86, %88 : vector<8x8xf32>
    %cst_18 = arith.constant dense<0.000000e+00> : vector<8x16xf32>
    %90 = tpu.matmul %89, %5, %cst_18 {dimension_numbers = #tpu.dot_dimension_numbers<[1], [0], [0], [1], [0, 0, 1, 1], [], []>} : vector<8x8xf32>, vector<8x16xf32>, vector<8x16xf32> -> vector<8x16xf32>
    %cst_19 = arith.constant dense<0.000000e+00> : vector<16x16xf32>
    %91 = tpu.matmul %4, %90, %cst_19 {dimension_numbers = #tpu.dot_dimension_numbers<[1], [0], [0], [1], [0, 0, 1, 1], [], []>} : vector<16x8xf32>, vector<8x16xf32>, vector<16x16xf32> -> vector<16x16xf32>
    %92 = arith.addf %70, %91 : vector<16x16xf32>
    %93 = arith.maximumf %71, %91 : vector<16x16xf32>
    %c12 = arith.constant 12 : index
    %94 = memref.load %arg5[%c12] : memref<16xf32, #tpu.memory_space<smem>>
    %95 = vector.broadcast %94 : f32 to vector<8x8xf32>
    %96 = arith.mulf %95, %7 : vector<8x8xf32>
    %c13 = arith.constant 13 : index
    %97 = memref.load %arg5[%c13] : memref<16xf32, #tpu.memory_space<smem>>
    %98 = vector.broadcast %97 : f32 to vector<8x8xf32>
    %99 = arith.mulf %98, %9 : vector<8x8xf32>
    %100 = arith.addf %96, %99 : vector<8x8xf32>
    %c14 = arith.constant 14 : index
    %101 = memref.load %arg5[%c14] : memref<16xf32, #tpu.memory_space<smem>>
    %102 = vector.broadcast %101 : f32 to vector<8x8xf32>
    %103 = arith.mulf %102, %11 : vector<8x8xf32>
    %104 = arith.addf %100, %103 : vector<8x8xf32>
    %c15 = arith.constant 15 : index
    %105 = memref.load %arg5[%c15] : memref<16xf32, #tpu.memory_space<smem>>
    %106 = vector.broadcast %105 : f32 to vector<8x8xf32>
    %107 = arith.mulf %106, %13 : vector<8x8xf32>
    %108 = arith.addf %104, %107 : vector<8x8xf32>
    %c3_20 = arith.constant 3 : index
    %109 = memref.load %arg6[%c3_20] : memref<4xf32, #tpu.memory_space<smem>>
    %110 = vector.broadcast %109 : f32 to vector<8x8xf32>
    %111 = arith.addf %108, %110 : vector<8x8xf32>
    %cst_21 = arith.constant dense<0.000000e+00> : vector<8x16xf32>
    %112 = tpu.matmul %111, %5, %cst_21 {dimension_numbers = #tpu.dot_dimension_numbers<[1], [0], [0], [1], [0, 0, 1, 1], [], []>} : vector<8x8xf32>, vector<8x16xf32>, vector<8x16xf32> -> vector<8x16xf32>
    %cst_22 = arith.constant dense<0.000000e+00> : vector<16x16xf32>
    %113 = tpu.matmul %4, %112, %cst_22 {dimension_numbers = #tpu.dot_dimension_numbers<[1], [0], [0], [1], [0, 0, 1, 1], [], []>} : vector<16x8xf32>, vector<8x16xf32>, vector<16x16xf32> -> vector<16x16xf32>
    %114 = arith.addf %92, %113 : vector<16x16xf32>
    %115 = arith.maximumf %93, %113 : vector<16x16xf32>
    %cst_23 = arith.constant 1.250000e-01 : f32
    %116 = vector.broadcast %cst_23 : f32 to vector<16x16xf32>
    %117 = arith.mulf %114, %116 : vector<16x16xf32>
    %cst_24 = arith.constant 0.000000e+00 : f32
    %118 = vector.broadcast %cst_24 : f32 to vector<3x16xf32>
    %119 = tpu.concatenate %118, %117, %118 in 0 : vector<3x16xf32>, vector<16x16xf32>, vector<3x16xf32> -> vector<22x16xf32>
    %cst_25 = arith.constant 0.000000e+00 : f32
    %120 = vector.broadcast %cst_25 : f32 to vector<22x3xf32>
    %121 = tpu.concatenate %120, %119, %120 in 1 : vector<22x3xf32>, vector<22x16xf32>, vector<22x3xf32> -> vector<22x22xf32>
    %cst_26 = arith.constant 0.000000e+00 : f32
    %122 = vector.broadcast %cst_26 : f32 to vector<3x16xf32>
    %123 = tpu.concatenate %122, %115, %122 in 0 : vector<3x16xf32>, vector<16x16xf32>, vector<3x16xf32> -> vector<22x16xf32>
    %cst_27 = arith.constant 0.000000e+00 : f32
    %124 = vector.broadcast %cst_27 : f32 to vector<22x3xf32>
    %125 = tpu.concatenate %124, %123, %124 in 1 : vector<22x3xf32>, vector<22x16xf32>, vector<22x3xf32> -> vector<22x22xf32>
    %cst_28 = arith.constant 0.000000e+00 : f32
    %126 = vector.broadcast %cst_28 : f32 to vector<16x16xf32>
    %cst_29 = arith.constant 0.000000e+00 : f32
    %127 = vector.broadcast %cst_29 : f32 to vector<16x16xf32>
    %cst_30 = arith.constant 0.000000e+00 : f32
    %128 = vector.broadcast %cst_30 : f32 to vector<16x16xf32>
    %cst_31 = arith.constant 0.000000e+00 : f32
    %129 = vector.broadcast %cst_31 : f32 to vector<16x16xf32>
    %c0_32 = arith.constant 0 : index
    %130 = memref.load %arg7[%c0_32] : memref<98xf32, #tpu.memory_space<smem>>
    %131 = vector.extract_strided_slice %121 {offsets = [0, 0], sizes = [16, 16], strides = [1, 1]} : vector<22x22xf32> to vector<16x16xf32>
    %132 = vector.broadcast %130 : f32 to vector<16x16xf32>
    %133 = arith.mulf %132, %131 : vector<16x16xf32>
    %134 = arith.addf %126, %133 : vector<16x16xf32>
    %c1_33 = arith.constant 1 : index
    %135 = memref.load %arg7[%c1_33] : memref<98xf32, #tpu.memory_space<smem>>
    %136 = vector.extract_strided_slice %121 {offsets = [0, 1], sizes = [16, 16], strides = [1, 1]} : vector<22x22xf32> to vector<16x16xf32>
    %137 = vector.broadcast %135 : f32 to vector<16x16xf32>
    %138 = arith.mulf %137, %136 : vector<16x16xf32>
    %139 = arith.addf %134, %138 : vector<16x16xf32>
    %c2_34 = arith.constant 2 : index
    %140 = memref.load %arg7[%c2_34] : memref<98xf32, #tpu.memory_space<smem>>
    %141 = vector.extract_strided_slice %121 {offsets = [0, 2], sizes = [16, 16], strides = [1, 1]} : vector<22x22xf32> to vector<16x16xf32>
    %142 = vector.broadcast %140 : f32 to vector<16x16xf32>
    %143 = arith.mulf %142, %141 : vector<16x16xf32>
    %144 = arith.addf %139, %143 : vector<16x16xf32>
    %c3_35 = arith.constant 3 : index
    %145 = memref.load %arg7[%c3_35] : memref<98xf32, #tpu.memory_space<smem>>
    %146 = vector.extract_strided_slice %121 {offsets = [0, 3], sizes = [16, 16], strides = [1, 1]} : vector<22x22xf32> to vector<16x16xf32>
    %147 = vector.broadcast %145 : f32 to vector<16x16xf32>
    %148 = arith.mulf %147, %146 : vector<16x16xf32>
    %149 = arith.addf %144, %148 : vector<16x16xf32>
    %c4_36 = arith.constant 4 : index
    %150 = memref.load %arg7[%c4_36] : memref<98xf32, #tpu.memory_space<smem>>
    %151 = vector.extract_strided_slice %121 {offsets = [0, 4], sizes = [16, 16], strides = [1, 1]} : vector<22x22xf32> to vector<16x16xf32>
    %152 = vector.broadcast %150 : f32 to vector<16x16xf32>
    %153 = arith.mulf %152, %151 : vector<16x16xf32>
    %154 = arith.addf %149, %153 : vector<16x16xf32>
    %c5_37 = arith.constant 5 : index
    %155 = memref.load %arg7[%c5_37] : memref<98xf32, #tpu.memory_space<smem>>
    %156 = vector.extract_strided_slice %121 {offsets = [0, 5], sizes = [16, 16], strides = [1, 1]} : vector<22x22xf32> to vector<16x16xf32>
    %157 = vector.broadcast %155 : f32 to vector<16x16xf32>
    %158 = arith.mulf %157, %156 : vector<16x16xf32>
    %159 = arith.addf %154, %158 : vector<16x16xf32>
    %c6_38 = arith.constant 6 : index
    %160 = memref.load %arg7[%c6_38] : memref<98xf32, #tpu.memory_space<smem>>
    %161 = vector.extract_strided_slice %121 {offsets = [0, 6], sizes = [16, 16], strides = [1, 1]} : vector<22x22xf32> to vector<16x16xf32>
    %162 = vector.broadcast %160 : f32 to vector<16x16xf32>
    %163 = arith.mulf %162, %161 : vector<16x16xf32>
    %164 = arith.addf %159, %163 : vector<16x16xf32>
    %c7_39 = arith.constant 7 : index
    %165 = memref.load %arg7[%c7_39] : memref<98xf32, #tpu.memory_space<smem>>
    %166 = vector.extract_strided_slice %121 {offsets = [1, 0], sizes = [16, 16], strides = [1, 1]} : vector<22x22xf32> to vector<16x16xf32>
    %167 = vector.broadcast %165 : f32 to vector<16x16xf32>
    %168 = arith.mulf %167, %166 : vector<16x16xf32>
    %169 = arith.addf %127, %168 : vector<16x16xf32>
    %c8_40 = arith.constant 8 : index
    %170 = memref.load %arg7[%c8_40] : memref<98xf32, #tpu.memory_space<smem>>
    %171 = vector.extract_strided_slice %121 {offsets = [1, 1], sizes = [16, 16], strides = [1, 1]} : vector<22x22xf32> to vector<16x16xf32>
    %172 = vector.broadcast %170 : f32 to vector<16x16xf32>
    %173 = arith.mulf %172, %171 : vector<16x16xf32>
    %174 = arith.addf %169, %173 : vector<16x16xf32>
    %c9_41 = arith.constant 9 : index
    %175 = memref.load %arg7[%c9_41] : memref<98xf32, #tpu.memory_space<smem>>
    %176 = vector.extract_strided_slice %121 {offsets = [1, 2], sizes = [16, 16], strides = [1, 1]} : vector<22x22xf32> to vector<16x16xf32>
    %177 = vector.broadcast %175 : f32 to vector<16x16xf32>
    %178 = arith.mulf %177, %176 : vector<16x16xf32>
    %179 = arith.addf %174, %178 : vector<16x16xf32>
    %c10_42 = arith.constant 10 : index
    %180 = memref.load %arg7[%c10_42] : memref<98xf32, #tpu.memory_space<smem>>
    %181 = vector.extract_strided_slice %121 {offsets = [1, 3], sizes = [16, 16], strides = [1, 1]} : vector<22x22xf32> to vector<16x16xf32>
    %182 = vector.broadcast %180 : f32 to vector<16x16xf32>
    %183 = arith.mulf %182, %181 : vector<16x16xf32>
    %184 = arith.addf %179, %183 : vector<16x16xf32>
    %c11_43 = arith.constant 11 : index
    %185 = memref.load %arg7[%c11_43] : memref<98xf32, #tpu.memory_space<smem>>
    %186 = vector.extract_strided_slice %121 {offsets = [1, 4], sizes = [16, 16], strides = [1, 1]} : vector<22x22xf32> to vector<16x16xf32>
    %187 = vector.broadcast %185 : f32 to vector<16x16xf32>
    %188 = arith.mulf %187, %186 : vector<16x16xf32>
    %189 = arith.addf %184, %188 : vector<16x16xf32>
    %c12_44 = arith.constant 12 : index
    %190 = memref.load %arg7[%c12_44] : memref<98xf32, #tpu.memory_space<smem>>
    %191 = vector.extract_strided_slice %121 {offsets = [1, 5], sizes = [16, 16], strides = [1, 1]} : vector<22x22xf32> to vector<16x16xf32>
    %192 = vector.broadcast %190 : f32 to vector<16x16xf32>
    %193 = arith.mulf %192, %191 : vector<16x16xf32>
    %194 = arith.addf %189, %193 : vector<16x16xf32>
    %c13_45 = arith.constant 13 : index
    %195 = memref.load %arg7[%c13_45] : memref<98xf32, #tpu.memory_space<smem>>
    %196 = vector.extract_strided_slice %121 {offsets = [1, 6], sizes = [16, 16], strides = [1, 1]} : vector<22x22xf32> to vector<16x16xf32>
    %197 = vector.broadcast %195 : f32 to vector<16x16xf32>
    %198 = arith.mulf %197, %196 : vector<16x16xf32>
    %199 = arith.addf %194, %198 : vector<16x16xf32>
    %c14_46 = arith.constant 14 : index
    %200 = memref.load %arg7[%c14_46] : memref<98xf32, #tpu.memory_space<smem>>
    %201 = vector.extract_strided_slice %121 {offsets = [2, 0], sizes = [16, 16], strides = [1, 1]} : vector<22x22xf32> to vector<16x16xf32>
    %202 = vector.broadcast %200 : f32 to vector<16x16xf32>
    %203 = arith.mulf %202, %201 : vector<16x16xf32>
    %204 = arith.addf %164, %203 : vector<16x16xf32>
    %c15_47 = arith.constant 15 : index
    %205 = memref.load %arg7[%c15_47] : memref<98xf32, #tpu.memory_space<smem>>
    %206 = vector.extract_strided_slice %121 {offsets = [2, 1], sizes = [16, 16], strides = [1, 1]} : vector<22x22xf32> to vector<16x16xf32>
    %207 = vector.broadcast %205 : f32 to vector<16x16xf32>
    %208 = arith.mulf %207, %206 : vector<16x16xf32>
    %209 = arith.addf %204, %208 : vector<16x16xf32>
    %c16 = arith.constant 16 : index
    %210 = memref.load %arg7[%c16] : memref<98xf32, #tpu.memory_space<smem>>
    %211 = vector.extract_strided_slice %121 {offsets = [2, 2], sizes = [16, 16], strides = [1, 1]} : vector<22x22xf32> to vector<16x16xf32>
    %212 = vector.broadcast %210 : f32 to vector<16x16xf32>
    %213 = arith.mulf %212, %211 : vector<16x16xf32>
    %214 = arith.addf %209, %213 : vector<16x16xf32>
    %c17 = arith.constant 17 : index
    %215 = memref.load %arg7[%c17] : memref<98xf32, #tpu.memory_space<smem>>
    %216 = vector.extract_strided_slice %121 {offsets = [2, 3], sizes = [16, 16], strides = [1, 1]} : vector<22x22xf32> to vector<16x16xf32>
    %217 = vector.broadcast %215 : f32 to vector<16x16xf32>
    %218 = arith.mulf %217, %216 : vector<16x16xf32>
    %219 = arith.addf %214, %218 : vector<16x16xf32>
    %c18 = arith.constant 18 : index
    %220 = memref.load %arg7[%c18] : memref<98xf32, #tpu.memory_space<smem>>
    %221 = vector.extract_strided_slice %121 {offsets = [2, 4], sizes = [16, 16], strides = [1, 1]} : vector<22x22xf32> to vector<16x16xf32>
    %222 = vector.broadcast %220 : f32 to vector<16x16xf32>
    %223 = arith.mulf %222, %221 : vector<16x16xf32>
    %224 = arith.addf %219, %223 : vector<16x16xf32>
    %c19 = arith.constant 19 : index
    %225 = memref.load %arg7[%c19] : memref<98xf32, #tpu.memory_space<smem>>
    %226 = vector.extract_strided_slice %121 {offsets = [2, 5], sizes = [16, 16], strides = [1, 1]} : vector<22x22xf32> to vector<16x16xf32>
    %227 = vector.broadcast %225 : f32 to vector<16x16xf32>
    %228 = arith.mulf %227, %226 : vector<16x16xf32>
    %229 = arith.addf %224, %228 : vector<16x16xf32>
    %c20 = arith.constant 20 : index
    %230 = memref.load %arg7[%c20] : memref<98xf32, #tpu.memory_space<smem>>
    %231 = vector.extract_strided_slice %121 {offsets = [2, 6], sizes = [16, 16], strides = [1, 1]} : vector<22x22xf32> to vector<16x16xf32>
    %232 = vector.broadcast %230 : f32 to vector<16x16xf32>
    %233 = arith.mulf %232, %231 : vector<16x16xf32>
    %234 = arith.addf %229, %233 : vector<16x16xf32>
    %c21 = arith.constant 21 : index
    %235 = memref.load %arg7[%c21] : memref<98xf32, #tpu.memory_space<smem>>
    %236 = vector.extract_strided_slice %121 {offsets = [3, 0], sizes = [16, 16], strides = [1, 1]} : vector<22x22xf32> to vector<16x16xf32>
    %237 = vector.broadcast %235 : f32 to vector<16x16xf32>
    %238 = arith.mulf %237, %236 : vector<16x16xf32>
    %239 = arith.addf %199, %238 : vector<16x16xf32>
    %c22 = arith.constant 22 : index
    %240 = memref.load %arg7[%c22] : memref<98xf32, #tpu.memory_space<smem>>
    %241 = vector.extract_strided_slice %121 {offsets = [3, 1], sizes = [16, 16], strides = [1, 1]} : vector<22x22xf32> to vector<16x16xf32>
    %242 = vector.broadcast %240 : f32 to vector<16x16xf32>
    %243 = arith.mulf %242, %241 : vector<16x16xf32>
    %244 = arith.addf %239, %243 : vector<16x16xf32>
    %c23 = arith.constant 23 : index
    %245 = memref.load %arg7[%c23] : memref<98xf32, #tpu.memory_space<smem>>
    %246 = vector.extract_strided_slice %121 {offsets = [3, 2], sizes = [16, 16], strides = [1, 1]} : vector<22x22xf32> to vector<16x16xf32>
    %247 = vector.broadcast %245 : f32 to vector<16x16xf32>
    %248 = arith.mulf %247, %246 : vector<16x16xf32>
    %249 = arith.addf %244, %248 : vector<16x16xf32>
    %c24 = arith.constant 24 : index
    %250 = memref.load %arg7[%c24] : memref<98xf32, #tpu.memory_space<smem>>
    %251 = vector.extract_strided_slice %121 {offsets = [3, 3], sizes = [16, 16], strides = [1, 1]} : vector<22x22xf32> to vector<16x16xf32>
    %252 = vector.broadcast %250 : f32 to vector<16x16xf32>
    %253 = arith.mulf %252, %251 : vector<16x16xf32>
    %254 = arith.addf %249, %253 : vector<16x16xf32>
    %c25 = arith.constant 25 : index
    %255 = memref.load %arg7[%c25] : memref<98xf32, #tpu.memory_space<smem>>
    %256 = vector.extract_strided_slice %121 {offsets = [3, 4], sizes = [16, 16], strides = [1, 1]} : vector<22x22xf32> to vector<16x16xf32>
    %257 = vector.broadcast %255 : f32 to vector<16x16xf32>
    %258 = arith.mulf %257, %256 : vector<16x16xf32>
    %259 = arith.addf %254, %258 : vector<16x16xf32>
    %c26 = arith.constant 26 : index
    %260 = memref.load %arg7[%c26] : memref<98xf32, #tpu.memory_space<smem>>
    %261 = vector.extract_strided_slice %121 {offsets = [3, 5], sizes = [16, 16], strides = [1, 1]} : vector<22x22xf32> to vector<16x16xf32>
    %262 = vector.broadcast %260 : f32 to vector<16x16xf32>
    %263 = arith.mulf %262, %261 : vector<16x16xf32>
    %264 = arith.addf %259, %263 : vector<16x16xf32>
    %c27 = arith.constant 27 : index
    %265 = memref.load %arg7[%c27] : memref<98xf32, #tpu.memory_space<smem>>
    %266 = vector.extract_strided_slice %121 {offsets = [3, 6], sizes = [16, 16], strides = [1, 1]} : vector<22x22xf32> to vector<16x16xf32>
    %267 = vector.broadcast %265 : f32 to vector<16x16xf32>
    %268 = arith.mulf %267, %266 : vector<16x16xf32>
    %269 = arith.addf %264, %268 : vector<16x16xf32>
    %c28 = arith.constant 28 : index
    %270 = memref.load %arg7[%c28] : memref<98xf32, #tpu.memory_space<smem>>
    %271 = vector.extract_strided_slice %121 {offsets = [4, 0], sizes = [16, 16], strides = [1, 1]} : vector<22x22xf32> to vector<16x16xf32>
    %272 = vector.broadcast %270 : f32 to vector<16x16xf32>
    %273 = arith.mulf %272, %271 : vector<16x16xf32>
    %274 = arith.addf %234, %273 : vector<16x16xf32>
    %c29 = arith.constant 29 : index
    %275 = memref.load %arg7[%c29] : memref<98xf32, #tpu.memory_space<smem>>
    %276 = vector.extract_strided_slice %121 {offsets = [4, 1], sizes = [16, 16], strides = [1, 1]} : vector<22x22xf32> to vector<16x16xf32>
    %277 = vector.broadcast %275 : f32 to vector<16x16xf32>
    %278 = arith.mulf %277, %276 : vector<16x16xf32>
    %279 = arith.addf %274, %278 : vector<16x16xf32>
    %c30 = arith.constant 30 : index
    %280 = memref.load %arg7[%c30] : memref<98xf32, #tpu.memory_space<smem>>
    %281 = vector.extract_strided_slice %121 {offsets = [4, 2], sizes = [16, 16], strides = [1, 1]} : vector<22x22xf32> to vector<16x16xf32>
    %282 = vector.broadcast %280 : f32 to vector<16x16xf32>
    %283 = arith.mulf %282, %281 : vector<16x16xf32>
    %284 = arith.addf %279, %283 : vector<16x16xf32>
    %c31 = arith.constant 31 : index
    %285 = memref.load %arg7[%c31] : memref<98xf32, #tpu.memory_space<smem>>
    %286 = vector.extract_strided_slice %121 {offsets = [4, 3], sizes = [16, 16], strides = [1, 1]} : vector<22x22xf32> to vector<16x16xf32>
    %287 = vector.broadcast %285 : f32 to vector<16x16xf32>
    %288 = arith.mulf %287, %286 : vector<16x16xf32>
    %289 = arith.addf %284, %288 : vector<16x16xf32>
    %c32 = arith.constant 32 : index
    %290 = memref.load %arg7[%c32] : memref<98xf32, #tpu.memory_space<smem>>
    %291 = vector.extract_strided_slice %121 {offsets = [4, 4], sizes = [16, 16], strides = [1, 1]} : vector<22x22xf32> to vector<16x16xf32>
    %292 = vector.broadcast %290 : f32 to vector<16x16xf32>
    %293 = arith.mulf %292, %291 : vector<16x16xf32>
    %294 = arith.addf %289, %293 : vector<16x16xf32>
    %c33 = arith.constant 33 : index
    %295 = memref.load %arg7[%c33] : memref<98xf32, #tpu.memory_space<smem>>
    %296 = vector.extract_strided_slice %121 {offsets = [4, 5], sizes = [16, 16], strides = [1, 1]} : vector<22x22xf32> to vector<16x16xf32>
    %297 = vector.broadcast %295 : f32 to vector<16x16xf32>
    %298 = arith.mulf %297, %296 : vector<16x16xf32>
    %299 = arith.addf %294, %298 : vector<16x16xf32>
    %c34 = arith.constant 34 : index
    %300 = memref.load %arg7[%c34] : memref<98xf32, #tpu.memory_space<smem>>
    %301 = vector.extract_strided_slice %121 {offsets = [4, 6], sizes = [16, 16], strides = [1, 1]} : vector<22x22xf32> to vector<16x16xf32>
    %302 = vector.broadcast %300 : f32 to vector<16x16xf32>
    %303 = arith.mulf %302, %301 : vector<16x16xf32>
    %304 = arith.addf %299, %303 : vector<16x16xf32>
    %c35 = arith.constant 35 : index
    %305 = memref.load %arg7[%c35] : memref<98xf32, #tpu.memory_space<smem>>
    %306 = vector.extract_strided_slice %121 {offsets = [5, 0], sizes = [16, 16], strides = [1, 1]} : vector<22x22xf32> to vector<16x16xf32>
    %307 = vector.broadcast %305 : f32 to vector<16x16xf32>
    %308 = arith.mulf %307, %306 : vector<16x16xf32>
    %309 = arith.addf %269, %308 : vector<16x16xf32>
    %c36 = arith.constant 36 : index
    %310 = memref.load %arg7[%c36] : memref<98xf32, #tpu.memory_space<smem>>
    %311 = vector.extract_strided_slice %121 {offsets = [5, 1], sizes = [16, 16], strides = [1, 1]} : vector<22x22xf32> to vector<16x16xf32>
    %312 = vector.broadcast %310 : f32 to vector<16x16xf32>
    %313 = arith.mulf %312, %311 : vector<16x16xf32>
    %314 = arith.addf %309, %313 : vector<16x16xf32>
    %c37 = arith.constant 37 : index
    %315 = memref.load %arg7[%c37] : memref<98xf32, #tpu.memory_space<smem>>
    %316 = vector.extract_strided_slice %121 {offsets = [5, 2], sizes = [16, 16], strides = [1, 1]} : vector<22x22xf32> to vector<16x16xf32>
    %317 = vector.broadcast %315 : f32 to vector<16x16xf32>
    %318 = arith.mulf %317, %316 : vector<16x16xf32>
    %319 = arith.addf %314, %318 : vector<16x16xf32>
    %c38 = arith.constant 38 : index
    %320 = memref.load %arg7[%c38] : memref<98xf32, #tpu.memory_space<smem>>
    %321 = vector.extract_strided_slice %121 {offsets = [5, 3], sizes = [16, 16], strides = [1, 1]} : vector<22x22xf32> to vector<16x16xf32>
    %322 = vector.broadcast %320 : f32 to vector<16x16xf32>
    %323 = arith.mulf %322, %321 : vector<16x16xf32>
    %324 = arith.addf %319, %323 : vector<16x16xf32>
    %c39 = arith.constant 39 : index
    %325 = memref.load %arg7[%c39] : memref<98xf32, #tpu.memory_space<smem>>
    %326 = vector.extract_strided_slice %121 {offsets = [5, 4], sizes = [16, 16], strides = [1, 1]} : vector<22x22xf32> to vector<16x16xf32>
    %327 = vector.broadcast %325 : f32 to vector<16x16xf32>
    %328 = arith.mulf %327, %326 : vector<16x16xf32>
    %329 = arith.addf %324, %328 : vector<16x16xf32>
    %c40 = arith.constant 40 : index
    %330 = memref.load %arg7[%c40] : memref<98xf32, #tpu.memory_space<smem>>
    %331 = vector.extract_strided_slice %121 {offsets = [5, 5], sizes = [16, 16], strides = [1, 1]} : vector<22x22xf32> to vector<16x16xf32>
    %332 = vector.broadcast %330 : f32 to vector<16x16xf32>
    %333 = arith.mulf %332, %331 : vector<16x16xf32>
    %334 = arith.addf %329, %333 : vector<16x16xf32>
    %c41 = arith.constant 41 : index
    %335 = memref.load %arg7[%c41] : memref<98xf32, #tpu.memory_space<smem>>
    %336 = vector.extract_strided_slice %121 {offsets = [5, 6], sizes = [16, 16], strides = [1, 1]} : vector<22x22xf32> to vector<16x16xf32>
    %337 = vector.broadcast %335 : f32 to vector<16x16xf32>
    %338 = arith.mulf %337, %336 : vector<16x16xf32>
    %339 = arith.addf %334, %338 : vector<16x16xf32>
    %c42 = arith.constant 42 : index
    %340 = memref.load %arg7[%c42] : memref<98xf32, #tpu.memory_space<smem>>
    %341 = vector.extract_strided_slice %121 {offsets = [6, 0], sizes = [16, 16], strides = [1, 1]} : vector<22x22xf32> to vector<16x16xf32>
    %342 = vector.broadcast %340 : f32 to vector<16x16xf32>
    %343 = arith.mulf %342, %341 : vector<16x16xf32>
    %344 = arith.addf %304, %343 : vector<16x16xf32>
    %c43 = arith.constant 43 : index
    %345 = memref.load %arg7[%c43] : memref<98xf32, #tpu.memory_space<smem>>
    %346 = vector.extract_strided_slice %121 {offsets = [6, 1], sizes = [16, 16], strides = [1, 1]} : vector<22x22xf32> to vector<16x16xf32>
    %347 = vector.broadcast %345 : f32 to vector<16x16xf32>
    %348 = arith.mulf %347, %346 : vector<16x16xf32>
    %349 = arith.addf %344, %348 : vector<16x16xf32>
    %c44 = arith.constant 44 : index
    %350 = memref.load %arg7[%c44] : memref<98xf32, #tpu.memory_space<smem>>
    %351 = vector.extract_strided_slice %121 {offsets = [6, 2], sizes = [16, 16], strides = [1, 1]} : vector<22x22xf32> to vector<16x16xf32>
    %352 = vector.broadcast %350 : f32 to vector<16x16xf32>
    %353 = arith.mulf %352, %351 : vector<16x16xf32>
    %354 = arith.addf %349, %353 : vector<16x16xf32>
    %c45 = arith.constant 45 : index
    %355 = memref.load %arg7[%c45] : memref<98xf32, #tpu.memory_space<smem>>
    %356 = vector.extract_strided_slice %121 {offsets = [6, 3], sizes = [16, 16], strides = [1, 1]} : vector<22x22xf32> to vector<16x16xf32>
    %357 = vector.broadcast %355 : f32 to vector<16x16xf32>
    %358 = arith.mulf %357, %356 : vector<16x16xf32>
    %359 = arith.addf %354, %358 : vector<16x16xf32>
    %c46 = arith.constant 46 : index
    %360 = memref.load %arg7[%c46] : memref<98xf32, #tpu.memory_space<smem>>
    %361 = vector.extract_strided_slice %121 {offsets = [6, 4], sizes = [16, 16], strides = [1, 1]} : vector<22x22xf32> to vector<16x16xf32>
    %362 = vector.broadcast %360 : f32 to vector<16x16xf32>
    %363 = arith.mulf %362, %361 : vector<16x16xf32>
    %364 = arith.addf %359, %363 : vector<16x16xf32>
    %c47 = arith.constant 47 : index
    %365 = memref.load %arg7[%c47] : memref<98xf32, #tpu.memory_space<smem>>
    %366 = vector.extract_strided_slice %121 {offsets = [6, 5], sizes = [16, 16], strides = [1, 1]} : vector<22x22xf32> to vector<16x16xf32>
    %367 = vector.broadcast %365 : f32 to vector<16x16xf32>
    %368 = arith.mulf %367, %366 : vector<16x16xf32>
    %369 = arith.addf %364, %368 : vector<16x16xf32>
    %c48 = arith.constant 48 : index
    %370 = memref.load %arg7[%c48] : memref<98xf32, #tpu.memory_space<smem>>
    %371 = vector.extract_strided_slice %121 {offsets = [6, 6], sizes = [16, 16], strides = [1, 1]} : vector<22x22xf32> to vector<16x16xf32>
    %372 = vector.broadcast %370 : f32 to vector<16x16xf32>
    %373 = arith.mulf %372, %371 : vector<16x16xf32>
    %374 = arith.addf %369, %373 : vector<16x16xf32>
    %c49 = arith.constant 49 : index
    %375 = memref.load %arg7[%c49] : memref<98xf32, #tpu.memory_space<smem>>
    %376 = vector.extract_strided_slice %125 {offsets = [0, 0], sizes = [16, 16], strides = [1, 1]} : vector<22x22xf32> to vector<16x16xf32>
    %377 = vector.broadcast %375 : f32 to vector<16x16xf32>
    %378 = arith.mulf %377, %376 : vector<16x16xf32>
    %379 = arith.addf %128, %378 : vector<16x16xf32>
    %c50 = arith.constant 50 : index
    %380 = memref.load %arg7[%c50] : memref<98xf32, #tpu.memory_space<smem>>
    %381 = vector.extract_strided_slice %125 {offsets = [0, 1], sizes = [16, 16], strides = [1, 1]} : vector<22x22xf32> to vector<16x16xf32>
    %382 = vector.broadcast %380 : f32 to vector<16x16xf32>
    %383 = arith.mulf %382, %381 : vector<16x16xf32>
    %384 = arith.addf %379, %383 : vector<16x16xf32>
    %c51 = arith.constant 51 : index
    %385 = memref.load %arg7[%c51] : memref<98xf32, #tpu.memory_space<smem>>
    %386 = vector.extract_strided_slice %125 {offsets = [0, 2], sizes = [16, 16], strides = [1, 1]} : vector<22x22xf32> to vector<16x16xf32>
    %387 = vector.broadcast %385 : f32 to vector<16x16xf32>
    %388 = arith.mulf %387, %386 : vector<16x16xf32>
    %389 = arith.addf %384, %388 : vector<16x16xf32>
    %c52 = arith.constant 52 : index
    %390 = memref.load %arg7[%c52] : memref<98xf32, #tpu.memory_space<smem>>
    %391 = vector.extract_strided_slice %125 {offsets = [0, 3], sizes = [16, 16], strides = [1, 1]} : vector<22x22xf32> to vector<16x16xf32>
    %392 = vector.broadcast %390 : f32 to vector<16x16xf32>
    %393 = arith.mulf %392, %391 : vector<16x16xf32>
    %394 = arith.addf %389, %393 : vector<16x16xf32>
    %c53 = arith.constant 53 : index
    %395 = memref.load %arg7[%c53] : memref<98xf32, #tpu.memory_space<smem>>
    %396 = vector.extract_strided_slice %125 {offsets = [0, 4], sizes = [16, 16], strides = [1, 1]} : vector<22x22xf32> to vector<16x16xf32>
    %397 = vector.broadcast %395 : f32 to vector<16x16xf32>
    %398 = arith.mulf %397, %396 : vector<16x16xf32>
    %399 = arith.addf %394, %398 : vector<16x16xf32>
    %c54 = arith.constant 54 : index
    %400 = memref.load %arg7[%c54] : memref<98xf32, #tpu.memory_space<smem>>
    %401 = vector.extract_strided_slice %125 {offsets = [0, 5], sizes = [16, 16], strides = [1, 1]} : vector<22x22xf32> to vector<16x16xf32>
    %402 = vector.broadcast %400 : f32 to vector<16x16xf32>
    %403 = arith.mulf %402, %401 : vector<16x16xf32>
    %404 = arith.addf %399, %403 : vector<16x16xf32>
    %c55 = arith.constant 55 : index
    %405 = memref.load %arg7[%c55] : memref<98xf32, #tpu.memory_space<smem>>
    %406 = vector.extract_strided_slice %125 {offsets = [0, 6], sizes = [16, 16], strides = [1, 1]} : vector<22x22xf32> to vector<16x16xf32>
    %407 = vector.broadcast %405 : f32 to vector<16x16xf32>
    %408 = arith.mulf %407, %406 : vector<16x16xf32>
    %409 = arith.addf %404, %408 : vector<16x16xf32>
    %c56 = arith.constant 56 : index
    %410 = memref.load %arg7[%c56] : memref<98xf32, #tpu.memory_space<smem>>
    %411 = vector.extract_strided_slice %125 {offsets = [1, 0], sizes = [16, 16], strides = [1, 1]} : vector<22x22xf32> to vector<16x16xf32>
    %412 = vector.broadcast %410 : f32 to vector<16x16xf32>
    %413 = arith.mulf %412, %411 : vector<16x16xf32>
    %414 = arith.addf %129, %413 : vector<16x16xf32>
    %c57 = arith.constant 57 : index
    %415 = memref.load %arg7[%c57] : memref<98xf32, #tpu.memory_space<smem>>
    %416 = vector.extract_strided_slice %125 {offsets = [1, 1], sizes = [16, 16], strides = [1, 1]} : vector<22x22xf32> to vector<16x16xf32>
    %417 = vector.broadcast %415 : f32 to vector<16x16xf32>
    %418 = arith.mulf %417, %416 : vector<16x16xf32>
    %419 = arith.addf %414, %418 : vector<16x16xf32>
    %c58 = arith.constant 58 : index
    %420 = memref.load %arg7[%c58] : memref<98xf32, #tpu.memory_space<smem>>
    %421 = vector.extract_strided_slice %125 {offsets = [1, 2], sizes = [16, 16], strides = [1, 1]} : vector<22x22xf32> to vector<16x16xf32>
    %422 = vector.broadcast %420 : f32 to vector<16x16xf32>
    %423 = arith.mulf %422, %421 : vector<16x16xf32>
    %424 = arith.addf %419, %423 : vector<16x16xf32>
    %c59 = arith.constant 59 : index
    %425 = memref.load %arg7[%c59] : memref<98xf32, #tpu.memory_space<smem>>
    %426 = vector.extract_strided_slice %125 {offsets = [1, 3], sizes = [16, 16], strides = [1, 1]} : vector<22x22xf32> to vector<16x16xf32>
    %427 = vector.broadcast %425 : f32 to vector<16x16xf32>
    %428 = arith.mulf %427, %426 : vector<16x16xf32>
    %429 = arith.addf %424, %428 : vector<16x16xf32>
    %c60 = arith.constant 60 : index
    %430 = memref.load %arg7[%c60] : memref<98xf32, #tpu.memory_space<smem>>
    %431 = vector.extract_strided_slice %125 {offsets = [1, 4], sizes = [16, 16], strides = [1, 1]} : vector<22x22xf32> to vector<16x16xf32>
    %432 = vector.broadcast %430 : f32 to vector<16x16xf32>
    %433 = arith.mulf %432, %431 : vector<16x16xf32>
    %434 = arith.addf %429, %433 : vector<16x16xf32>
    %c61 = arith.constant 61 : index
    %435 = memref.load %arg7[%c61] : memref<98xf32, #tpu.memory_space<smem>>
    %436 = vector.extract_strided_slice %125 {offsets = [1, 5], sizes = [16, 16], strides = [1, 1]} : vector<22x22xf32> to vector<16x16xf32>
    %437 = vector.broadcast %435 : f32 to vector<16x16xf32>
    %438 = arith.mulf %437, %436 : vector<16x16xf32>
    %439 = arith.addf %434, %438 : vector<16x16xf32>
    %c62 = arith.constant 62 : index
    %440 = memref.load %arg7[%c62] : memref<98xf32, #tpu.memory_space<smem>>
    %441 = vector.extract_strided_slice %125 {offsets = [1, 6], sizes = [16, 16], strides = [1, 1]} : vector<22x22xf32> to vector<16x16xf32>
    %442 = vector.broadcast %440 : f32 to vector<16x16xf32>
    %443 = arith.mulf %442, %441 : vector<16x16xf32>
    %444 = arith.addf %439, %443 : vector<16x16xf32>
    %c63 = arith.constant 63 : index
    %445 = memref.load %arg7[%c63] : memref<98xf32, #tpu.memory_space<smem>>
    %446 = vector.extract_strided_slice %125 {offsets = [2, 0], sizes = [16, 16], strides = [1, 1]} : vector<22x22xf32> to vector<16x16xf32>
    %447 = vector.broadcast %445 : f32 to vector<16x16xf32>
    %448 = arith.mulf %447, %446 : vector<16x16xf32>
    %449 = arith.addf %409, %448 : vector<16x16xf32>
    %c64 = arith.constant 64 : index
    %450 = memref.load %arg7[%c64] : memref<98xf32, #tpu.memory_space<smem>>
    %451 = vector.extract_strided_slice %125 {offsets = [2, 1], sizes = [16, 16], strides = [1, 1]} : vector<22x22xf32> to vector<16x16xf32>
    %452 = vector.broadcast %450 : f32 to vector<16x16xf32>
    %453 = arith.mulf %452, %451 : vector<16x16xf32>
    %454 = arith.addf %449, %453 : vector<16x16xf32>
    %c65 = arith.constant 65 : index
    %455 = memref.load %arg7[%c65] : memref<98xf32, #tpu.memory_space<smem>>
    %456 = vector.extract_strided_slice %125 {offsets = [2, 2], sizes = [16, 16], strides = [1, 1]} : vector<22x22xf32> to vector<16x16xf32>
    %457 = vector.broadcast %455 : f32 to vector<16x16xf32>
    %458 = arith.mulf %457, %456 : vector<16x16xf32>
    %459 = arith.addf %454, %458 : vector<16x16xf32>
    %c66 = arith.constant 66 : index
    %460 = memref.load %arg7[%c66] : memref<98xf32, #tpu.memory_space<smem>>
    %461 = vector.extract_strided_slice %125 {offsets = [2, 3], sizes = [16, 16], strides = [1, 1]} : vector<22x22xf32> to vector<16x16xf32>
    %462 = vector.broadcast %460 : f32 to vector<16x16xf32>
    %463 = arith.mulf %462, %461 : vector<16x16xf32>
    %464 = arith.addf %459, %463 : vector<16x16xf32>
    %c67 = arith.constant 67 : index
    %465 = memref.load %arg7[%c67] : memref<98xf32, #tpu.memory_space<smem>>
    %466 = vector.extract_strided_slice %125 {offsets = [2, 4], sizes = [16, 16], strides = [1, 1]} : vector<22x22xf32> to vector<16x16xf32>
    %467 = vector.broadcast %465 : f32 to vector<16x16xf32>
    %468 = arith.mulf %467, %466 : vector<16x16xf32>
    %469 = arith.addf %464, %468 : vector<16x16xf32>
    %c68 = arith.constant 68 : index
    %470 = memref.load %arg7[%c68] : memref<98xf32, #tpu.memory_space<smem>>
    %471 = vector.extract_strided_slice %125 {offsets = [2, 5], sizes = [16, 16], strides = [1, 1]} : vector<22x22xf32> to vector<16x16xf32>
    %472 = vector.broadcast %470 : f32 to vector<16x16xf32>
    %473 = arith.mulf %472, %471 : vector<16x16xf32>
    %474 = arith.addf %469, %473 : vector<16x16xf32>
    %c69 = arith.constant 69 : index
    %475 = memref.load %arg7[%c69] : memref<98xf32, #tpu.memory_space<smem>>
    %476 = vector.extract_strided_slice %125 {offsets = [2, 6], sizes = [16, 16], strides = [1, 1]} : vector<22x22xf32> to vector<16x16xf32>
    %477 = vector.broadcast %475 : f32 to vector<16x16xf32>
    %478 = arith.mulf %477, %476 : vector<16x16xf32>
    %479 = arith.addf %474, %478 : vector<16x16xf32>
    %c70 = arith.constant 70 : index
    %480 = memref.load %arg7[%c70] : memref<98xf32, #tpu.memory_space<smem>>
    %481 = vector.extract_strided_slice %125 {offsets = [3, 0], sizes = [16, 16], strides = [1, 1]} : vector<22x22xf32> to vector<16x16xf32>
    %482 = vector.broadcast %480 : f32 to vector<16x16xf32>
    %483 = arith.mulf %482, %481 : vector<16x16xf32>
    %484 = arith.addf %444, %483 : vector<16x16xf32>
    %c71 = arith.constant 71 : index
    %485 = memref.load %arg7[%c71] : memref<98xf32, #tpu.memory_space<smem>>
    %486 = vector.extract_strided_slice %125 {offsets = [3, 1], sizes = [16, 16], strides = [1, 1]} : vector<22x22xf32> to vector<16x16xf32>
    %487 = vector.broadcast %485 : f32 to vector<16x16xf32>
    %488 = arith.mulf %487, %486 : vector<16x16xf32>
    %489 = arith.addf %484, %488 : vector<16x16xf32>
    %c72 = arith.constant 72 : index
    %490 = memref.load %arg7[%c72] : memref<98xf32, #tpu.memory_space<smem>>
    %491 = vector.extract_strided_slice %125 {offsets = [3, 2], sizes = [16, 16], strides = [1, 1]} : vector<22x22xf32> to vector<16x16xf32>
    %492 = vector.broadcast %490 : f32 to vector<16x16xf32>
    %493 = arith.mulf %492, %491 : vector<16x16xf32>
    %494 = arith.addf %489, %493 : vector<16x16xf32>
    %c73 = arith.constant 73 : index
    %495 = memref.load %arg7[%c73] : memref<98xf32, #tpu.memory_space<smem>>
    %496 = vector.extract_strided_slice %125 {offsets = [3, 3], sizes = [16, 16], strides = [1, 1]} : vector<22x22xf32> to vector<16x16xf32>
    %497 = vector.broadcast %495 : f32 to vector<16x16xf32>
    %498 = arith.mulf %497, %496 : vector<16x16xf32>
    %499 = arith.addf %494, %498 : vector<16x16xf32>
    %c74 = arith.constant 74 : index
    %500 = memref.load %arg7[%c74] : memref<98xf32, #tpu.memory_space<smem>>
    %501 = vector.extract_strided_slice %125 {offsets = [3, 4], sizes = [16, 16], strides = [1, 1]} : vector<22x22xf32> to vector<16x16xf32>
    %502 = vector.broadcast %500 : f32 to vector<16x16xf32>
    %503 = arith.mulf %502, %501 : vector<16x16xf32>
    %504 = arith.addf %499, %503 : vector<16x16xf32>
    %c75 = arith.constant 75 : index
    %505 = memref.load %arg7[%c75] : memref<98xf32, #tpu.memory_space<smem>>
    %506 = vector.extract_strided_slice %125 {offsets = [3, 5], sizes = [16, 16], strides = [1, 1]} : vector<22x22xf32> to vector<16x16xf32>
    %507 = vector.broadcast %505 : f32 to vector<16x16xf32>
    %508 = arith.mulf %507, %506 : vector<16x16xf32>
    %509 = arith.addf %504, %508 : vector<16x16xf32>
    %c76 = arith.constant 76 : index
    %510 = memref.load %arg7[%c76] : memref<98xf32, #tpu.memory_space<smem>>
    %511 = vector.extract_strided_slice %125 {offsets = [3, 6], sizes = [16, 16], strides = [1, 1]} : vector<22x22xf32> to vector<16x16xf32>
    %512 = vector.broadcast %510 : f32 to vector<16x16xf32>
    %513 = arith.mulf %512, %511 : vector<16x16xf32>
    %514 = arith.addf %509, %513 : vector<16x16xf32>
    %c77 = arith.constant 77 : index
    %515 = memref.load %arg7[%c77] : memref<98xf32, #tpu.memory_space<smem>>
    %516 = vector.extract_strided_slice %125 {offsets = [4, 0], sizes = [16, 16], strides = [1, 1]} : vector<22x22xf32> to vector<16x16xf32>
    %517 = vector.broadcast %515 : f32 to vector<16x16xf32>
    %518 = arith.mulf %517, %516 : vector<16x16xf32>
    %519 = arith.addf %479, %518 : vector<16x16xf32>
    %c78 = arith.constant 78 : index
    %520 = memref.load %arg7[%c78] : memref<98xf32, #tpu.memory_space<smem>>
    %521 = vector.extract_strided_slice %125 {offsets = [4, 1], sizes = [16, 16], strides = [1, 1]} : vector<22x22xf32> to vector<16x16xf32>
    %522 = vector.broadcast %520 : f32 to vector<16x16xf32>
    %523 = arith.mulf %522, %521 : vector<16x16xf32>
    %524 = arith.addf %519, %523 : vector<16x16xf32>
    %c79 = arith.constant 79 : index
    %525 = memref.load %arg7[%c79] : memref<98xf32, #tpu.memory_space<smem>>
    %526 = vector.extract_strided_slice %125 {offsets = [4, 2], sizes = [16, 16], strides = [1, 1]} : vector<22x22xf32> to vector<16x16xf32>
    %527 = vector.broadcast %525 : f32 to vector<16x16xf32>
    %528 = arith.mulf %527, %526 : vector<16x16xf32>
    %529 = arith.addf %524, %528 : vector<16x16xf32>
    %c80 = arith.constant 80 : index
    %530 = memref.load %arg7[%c80] : memref<98xf32, #tpu.memory_space<smem>>
    %531 = vector.extract_strided_slice %125 {offsets = [4, 3], sizes = [16, 16], strides = [1, 1]} : vector<22x22xf32> to vector<16x16xf32>
    %532 = vector.broadcast %530 : f32 to vector<16x16xf32>
    %533 = arith.mulf %532, %531 : vector<16x16xf32>
    %534 = arith.addf %529, %533 : vector<16x16xf32>
    %c81 = arith.constant 81 : index
    %535 = memref.load %arg7[%c81] : memref<98xf32, #tpu.memory_space<smem>>
    %536 = vector.extract_strided_slice %125 {offsets = [4, 4], sizes = [16, 16], strides = [1, 1]} : vector<22x22xf32> to vector<16x16xf32>
    %537 = vector.broadcast %535 : f32 to vector<16x16xf32>
    %538 = arith.mulf %537, %536 : vector<16x16xf32>
    %539 = arith.addf %534, %538 : vector<16x16xf32>
    %c82 = arith.constant 82 : index
    %540 = memref.load %arg7[%c82] : memref<98xf32, #tpu.memory_space<smem>>
    %541 = vector.extract_strided_slice %125 {offsets = [4, 5], sizes = [16, 16], strides = [1, 1]} : vector<22x22xf32> to vector<16x16xf32>
    %542 = vector.broadcast %540 : f32 to vector<16x16xf32>
    %543 = arith.mulf %542, %541 : vector<16x16xf32>
    %544 = arith.addf %539, %543 : vector<16x16xf32>
    %c83 = arith.constant 83 : index
    %545 = memref.load %arg7[%c83] : memref<98xf32, #tpu.memory_space<smem>>
    %546 = vector.extract_strided_slice %125 {offsets = [4, 6], sizes = [16, 16], strides = [1, 1]} : vector<22x22xf32> to vector<16x16xf32>
    %547 = vector.broadcast %545 : f32 to vector<16x16xf32>
    %548 = arith.mulf %547, %546 : vector<16x16xf32>
    %549 = arith.addf %544, %548 : vector<16x16xf32>
    %c84 = arith.constant 84 : index
    %550 = memref.load %arg7[%c84] : memref<98xf32, #tpu.memory_space<smem>>
    %551 = vector.extract_strided_slice %125 {offsets = [5, 0], sizes = [16, 16], strides = [1, 1]} : vector<22x22xf32> to vector<16x16xf32>
    %552 = vector.broadcast %550 : f32 to vector<16x16xf32>
    %553 = arith.mulf %552, %551 : vector<16x16xf32>
    %554 = arith.addf %514, %553 : vector<16x16xf32>
    %c85 = arith.constant 85 : index
    %555 = memref.load %arg7[%c85] : memref<98xf32, #tpu.memory_space<smem>>
    %556 = vector.extract_strided_slice %125 {offsets = [5, 1], sizes = [16, 16], strides = [1, 1]} : vector<22x22xf32> to vector<16x16xf32>
    %557 = vector.broadcast %555 : f32 to vector<16x16xf32>
    %558 = arith.mulf %557, %556 : vector<16x16xf32>
    %559 = arith.addf %554, %558 : vector<16x16xf32>
    %c86 = arith.constant 86 : index
    %560 = memref.load %arg7[%c86] : memref<98xf32, #tpu.memory_space<smem>>
    %561 = vector.extract_strided_slice %125 {offsets = [5, 2], sizes = [16, 16], strides = [1, 1]} : vector<22x22xf32> to vector<16x16xf32>
    %562 = vector.broadcast %560 : f32 to vector<16x16xf32>
    %563 = arith.mulf %562, %561 : vector<16x16xf32>
    %564 = arith.addf %559, %563 : vector<16x16xf32>
    %c87 = arith.constant 87 : index
    %565 = memref.load %arg7[%c87] : memref<98xf32, #tpu.memory_space<smem>>
    %566 = vector.extract_strided_slice %125 {offsets = [5, 3], sizes = [16, 16], strides = [1, 1]} : vector<22x22xf32> to vector<16x16xf32>
    %567 = vector.broadcast %565 : f32 to vector<16x16xf32>
    %568 = arith.mulf %567, %566 : vector<16x16xf32>
    %569 = arith.addf %564, %568 : vector<16x16xf32>
    %c88 = arith.constant 88 : index
    %570 = memref.load %arg7[%c88] : memref<98xf32, #tpu.memory_space<smem>>
    %571 = vector.extract_strided_slice %125 {offsets = [5, 4], sizes = [16, 16], strides = [1, 1]} : vector<22x22xf32> to vector<16x16xf32>
    %572 = vector.broadcast %570 : f32 to vector<16x16xf32>
    %573 = arith.mulf %572, %571 : vector<16x16xf32>
    %574 = arith.addf %569, %573 : vector<16x16xf32>
    %c89 = arith.constant 89 : index
    %575 = memref.load %arg7[%c89] : memref<98xf32, #tpu.memory_space<smem>>
    %576 = vector.extract_strided_slice %125 {offsets = [5, 5], sizes = [16, 16], strides = [1, 1]} : vector<22x22xf32> to vector<16x16xf32>
    %577 = vector.broadcast %575 : f32 to vector<16x16xf32>
    %578 = arith.mulf %577, %576 : vector<16x16xf32>
    %579 = arith.addf %574, %578 : vector<16x16xf32>
    %c90 = arith.constant 90 : index
    %580 = memref.load %arg7[%c90] : memref<98xf32, #tpu.memory_space<smem>>
    %581 = vector.extract_strided_slice %125 {offsets = [5, 6], sizes = [16, 16], strides = [1, 1]} : vector<22x22xf32> to vector<16x16xf32>
    %582 = vector.broadcast %580 : f32 to vector<16x16xf32>
    %583 = arith.mulf %582, %581 : vector<16x16xf32>
    %584 = arith.addf %579, %583 : vector<16x16xf32>
    %c91 = arith.constant 91 : index
    %585 = memref.load %arg7[%c91] : memref<98xf32, #tpu.memory_space<smem>>
    %586 = vector.extract_strided_slice %125 {offsets = [6, 0], sizes = [16, 16], strides = [1, 1]} : vector<22x22xf32> to vector<16x16xf32>
    %587 = vector.broadcast %585 : f32 to vector<16x16xf32>
    %588 = arith.mulf %587, %586 : vector<16x16xf32>
    %589 = arith.addf %549, %588 : vector<16x16xf32>
    %c92 = arith.constant 92 : index
    %590 = memref.load %arg7[%c92] : memref<98xf32, #tpu.memory_space<smem>>
    %591 = vector.extract_strided_slice %125 {offsets = [6, 1], sizes = [16, 16], strides = [1, 1]} : vector<22x22xf32> to vector<16x16xf32>
    %592 = vector.broadcast %590 : f32 to vector<16x16xf32>
    %593 = arith.mulf %592, %591 : vector<16x16xf32>
    %594 = arith.addf %589, %593 : vector<16x16xf32>
    %c93 = arith.constant 93 : index
    %595 = memref.load %arg7[%c93] : memref<98xf32, #tpu.memory_space<smem>>
    %596 = vector.extract_strided_slice %125 {offsets = [6, 2], sizes = [16, 16], strides = [1, 1]} : vector<22x22xf32> to vector<16x16xf32>
    %597 = vector.broadcast %595 : f32 to vector<16x16xf32>
    %598 = arith.mulf %597, %596 : vector<16x16xf32>
    %599 = arith.addf %594, %598 : vector<16x16xf32>
    %c94 = arith.constant 94 : index
    %600 = memref.load %arg7[%c94] : memref<98xf32, #tpu.memory_space<smem>>
    %601 = vector.extract_strided_slice %125 {offsets = [6, 3], sizes = [16, 16], strides = [1, 1]} : vector<22x22xf32> to vector<16x16xf32>
    %602 = vector.broadcast %600 : f32 to vector<16x16xf32>
    %603 = arith.mulf %602, %601 : vector<16x16xf32>
    %604 = arith.addf %599, %603 : vector<16x16xf32>
    %c95 = arith.constant 95 : index
    %605 = memref.load %arg7[%c95] : memref<98xf32, #tpu.memory_space<smem>>
    %606 = vector.extract_strided_slice %125 {offsets = [6, 4], sizes = [16, 16], strides = [1, 1]} : vector<22x22xf32> to vector<16x16xf32>
    %607 = vector.broadcast %605 : f32 to vector<16x16xf32>
    %608 = arith.mulf %607, %606 : vector<16x16xf32>
    %609 = arith.addf %604, %608 : vector<16x16xf32>
    %c96 = arith.constant 96 : index
    %610 = memref.load %arg7[%c96] : memref<98xf32, #tpu.memory_space<smem>>
    %611 = vector.extract_strided_slice %125 {offsets = [6, 5], sizes = [16, 16], strides = [1, 1]} : vector<22x22xf32> to vector<16x16xf32>
    %612 = vector.broadcast %610 : f32 to vector<16x16xf32>
    %613 = arith.mulf %612, %611 : vector<16x16xf32>
    %614 = arith.addf %609, %613 : vector<16x16xf32>
    %c97 = arith.constant 97 : index
    %615 = memref.load %arg7[%c97] : memref<98xf32, #tpu.memory_space<smem>>
    %616 = vector.extract_strided_slice %125 {offsets = [6, 6], sizes = [16, 16], strides = [1, 1]} : vector<22x22xf32> to vector<16x16xf32>
    %617 = vector.broadcast %615 : f32 to vector<16x16xf32>
    %618 = arith.mulf %617, %616 : vector<16x16xf32>
    %619 = arith.addf %614, %618 : vector<16x16xf32>
    %620 = arith.addf %374, %339 : vector<16x16xf32>
    %621 = arith.addf %619, %584 : vector<16x16xf32>
    %622 = arith.addf %620, %621 : vector<16x16xf32>
    %c0_48 = arith.constant 0 : index
    %623 = memref.load %arg8[%c0_48] : memref<1xf32, #tpu.memory_space<smem>>
    %624 = vector.broadcast %623 : f32 to vector<16x16xf32>
    %625 = arith.addf %622, %624 : vector<16x16xf32>
    %cst_49 = arith.constant 0.000000e+00 : f32
    %626 = vector.broadcast %cst_49 : f32 to vector<16x16xf32>
    %627 = arith.subf %626, %625 : vector<16x16xf32>
    %628 = math.exp %627 : vector<16x16xf32>
    %cst_50 = arith.constant 1.000000e+00 : f32
    %629 = vector.broadcast %cst_50 : f32 to vector<16x16xf32>
    %630 = arith.addf %629, %628 : vector<16x16xf32>
    %631 = tpu.reciprocal %630 : vector<16x16xf32> -> vector<16x16xf32>
    %632 = vector.shape_cast %631 : vector<16x16xf32> to vector<1x16x16xf32>
    %633 = vector.broadcast %632 : vector<1x16x16xf32> to vector<4x16x16xf32>
    %634 = arith.mulf %3, %633 : vector<4x16x16xf32>
    %c0_51 = arith.constant 0 : index
    %c0_52 = arith.constant 0 : index
    %c0_53 = arith.constant 0 : index
    %c0_54 = arith.constant 0 : index
    %635 = vector.load %arg9[%c0_51, %c0_52, %c0_53, %c0_54] : memref<1x4x16x16xf32, #tpu.memory_space<vmem>>, vector<1x4x16x16xf32>
    %636 = vector.shape_cast %635 : vector<1x4x16x16xf32> to vector<4x16x16xf32>
    %637 = vector.shape_cast %634 : vector<4x16x16xf32> to vector<1x4x16x16xf32>
    tpu.vector_store %arg9[%c0_51, %c0_52, %c0_53, %c0_54], %637 {strides = array<i32>} : memref<1x4x16x16xf32, #tpu.memory_space<vmem>>, vector<1x4x16x16xf32>,
    return
  }
  func.func @transform_0(%arg0: i32) -> (i32, i32, i32, i32) {
    %c0_i32 = arith.constant 0 : i32
    %c0_i32_0 = arith.constant 0 : i32
    %c0_i32_1 = arith.constant 0 : i32
    %c0_i32_2 = arith.constant 0 : i32
    return %arg0, %c0_i32, %c0_i32_0, %c0_i32_1 : i32, i32, i32, i32
  }
  func.func @transform_1(%arg0: i32) -> (i32, i32, i32, i32) {
    %c0_i32 = arith.constant 0 : i32
    %c0_i32_0 = arith.constant 0 : i32
    %c0_i32_1 = arith.constant 0 : i32
    %c0_i32_2 = arith.constant 0 : i32
    return %arg0, %c0_i32, %c0_i32_0, %c0_i32_1 : i32, i32, i32, i32
  }
  func.func @transform_2(%arg0: i32) -> (i32, i32) {
    %c0_i32 = arith.constant 0 : i32
    %c0_i32_0 = arith.constant 0 : i32
    %c0_i32_1 = arith.constant 0 : i32
    return %c0_i32, %c0_i32_0 : i32, i32
  }
  func.func @transform_3(%arg0: i32) -> (i32, i32) {
    %c0_i32 = arith.constant 0 : i32
    %c0_i32_0 = arith.constant 0 : i32
    %c0_i32_1 = arith.constant 0 : i32
    return %c0_i32, %c0_i32_0 : i32, i32
  }
  func.func @transform_4(%arg0: i32) -> i32 {
    %c0_i32 = arith.constant 0 : i32
    %c0_i32_0 = arith.constant 0 : i32
    return %c0_i32 : i32
  }
  func.func @transform_5(%arg0: i32) -> i32 {
    %c0_i32 = arith.constant 0 : i32
    %c0_i32_0 = arith.constant 0 : i32
    return %c0_i32 : i32
  }
  func.func @transform_6(%arg0: i32) -> i32 {
    %c0_i32 = arith.constant 0 : i32
    %c0_i32_0 = arith.constant 0 : i32
    return %c0_i32 : i32
  }
  func.func @transform_7(%arg0: i32) -> i32 {
    %c0_i32 = arith.constant 0 : i32
    %c0_i32_0 = arith.constant 0 : i32
    return %c0_i32 : i32
  }
  func.func @transform_8(%arg0: i32) -> (i32, i32, i32, i32) {
    %c0_i32 = arith.constant 0 : i32
    %c0_i32_0 = arith.constant 0 : i32
    %c0_i32_1 = arith.constant 0 : i32
    %c0_i32_2 = arith.constant 0 : i32
    return %arg0, %c0_i32, %c0_i32_0, %c0_i32_1 : i32, i32, i32, i32
  }
}

</mosaic_0001>

<llo_original>
// kernel: tpu_custom_call.1
$region0: #{tpu_custom_call.1}
  #allocation0 [shape = 'u32[]', space=smem, size = 0x4, offset = 0x4, fixed_abs, tag = 'smem constant byte address 0x4 - core index']
  #allocation1 [shape = 'u32[72,128]{1,0:T(1,128)}', space=vmem, size = 0x9000, scoped, tag = 'internal scratch']
  #allocation2 [shape = 'f32[1]{0:T(128)S(6)}', space=smem, size = 0x200, scoped, tag = 'scoped memory for tpu_custom_call.1']
  %s0 = inlined_call_operand.hbm [shape: f32[2,4,8,8], index: 0, kind: input, shape index: {}]
  %s1 = inlined_call_operand.hbm [shape: f32[2,4,16,16], index: 1, kind: input, shape index: {}]
  %s2 = inlined_call_operand.vmem [shape: f32[16,8], index: 2, kind: input, shape index: {}]
  %s3 = inlined_call_operand.vmem [shape: f32[8,16], index: 3, kind: input, shape index: {}]
  %s4 = inlined_call_operand.vmem [shape: f32[16], index: 4, kind: input, shape index: {}]
  %s5 = inlined_call_operand.vmem [shape: f32[4], index: 5, kind: input, shape index: {}]
  %s6 = inlined_call_operand.vmem [shape: f32[98], index: 6, kind: input, shape index: {}]
  %s7 = inlined_call_operand.<no memory space> [shape: f32[1], index: 7, kind: input, shape index: {}]
  %s8 = inlined_call_operand.hbm [shape: f32[2,4,16,16], index: 8, kind: output, shape index: {}]
  %s9 = sld [smem:[#allocation0]]
  $region85: #{tpu_custom_call.1} parent=0
    _
  %s11 = ssub.s32 1, %s9
  %s12 = scalar_select 0, %s11, %s9
  %13 = sst [smem:[#allocation2]] %s7
  $region1: #{tpu_custom_call.1} parent=0
    #allocation3 [shape = 'u8[32768]{0}', space=vmem, size = 0x8000, scoped, tag = 'input window, operand 0']
    #allocation4 [shape = 's32[2]{0}', space=sflag, size = 0x8, scoped, tag = 'scoped memory for tpu_custom_call.1']
    #allocation5 [shape = 's32[2]{0}', space=sflag, size = 0x8, scoped, tag = 'scoped memory for tpu_custom_call.1']
    #allocation6 [shape = 's32[2]{0}', space=sflag, size = 0x8, scoped, tag = 'scoped memory for tpu_custom_call.1']
    #allocation7 [shape = 'u8[65536]{0}', space=vmem, size = 0x10000, scoped, tag = 'input window, operand 1']
    #allocation8 [shape = 's32[2]{0}', space=sflag, size = 0x8, scoped, tag = 'scoped memory for tpu_custom_call.1']
    #allocation9 [shape = 'u8[512]{0}', space=smem, size = 0x200, scoped, tag = 'input window, operand 4, single buffered']
    #allocation10 [shape = 'u8[512]{0}', space=smem, size = 0x200, scoped, tag = 'input window, operand 5, single buffered']
    #allocation11 [shape = 's32[1]{0}', space=sflag, size = 0x4, scoped, tag = 'scoped memory for tpu_custom_call.1']
    #allocation12 [shape = 'u8[512]{0}', space=smem, size = 0x200, scoped, tag = 'input window, operand 6, single buffered']
    #allocation13 [shape = 'u8[65536]{0}', space=vmem, size = 0x10000, scoped, tag = 'output window, operand 0']
    %14 = vsyncpa [#allocation4], 0
    %s15 = scalar_lea.sflag [#allocation4], 1
    %16 = vsyncpa %s15, 0
    %17 = vsyncpa [#allocation8], 0
    %s18 = scalar_lea.sflag [#allocation8], 1
    %19 = vsyncpa %s18, 0
    %20 = vsyncpa [#allocation6], 0
    %21 = vsyncpa [#allocation11], 0
    %22 = vsyncpa [#allocation5], 0
    %s23 = scalar_lea.sflag [#allocation5], 1
    %24 = vsyncpa %s23, 0
    loop: start=0, step=1, limit=4
    $region2: #{tpu_custom_call.1} parent=1 // loop_pre_header
      _
    $region3: #{tpu_custom_call.1} parent=1 // loop_header
      %s26 = sphi 0, %s30
      %p27 = scmp.ge.s32.totalorder %s26, 4
      %s36 = sphi 0, %s38
      %s39 = sphi 0, %s36
      %s40 = sphi 0, %s39
      %s56 = sphi 0, %s40
      %s62 = sphi 0, %s64
      %s65 = sphi 0, %s62
      %s66 = sphi 0, %s65
      %s82 = sphi 0, %s66
      %s86 = sphi 0, %s86
      %s88 = sphi 0, %s86
      %s89 = sphi 0, %s88
      %s103 = sphi 0, %s89
      %s107 = sphi 0, %s107
      %s109 = sphi 0, %s107
      %s110 = sphi 0, %s109
      %s124 = sphi 0, %s110
      %s128 = sphi 0, %s128
      %s130 = sphi 0, %s128
      %s131 = sphi 0, %s130
      %s145 = sphi 0, %s131
      %s149 = sphi 0, %s149
      %s151 = sphi 0, %s149
      %s152 = sphi 0, %s151
      %s166 = sphi 0, %s152
      %s170 = sphi 0, %s170
      %s172 = sphi 0, %s170
      %s173 = sphi 0, %s172
      %s187 = sphi 0, %s173
      %s191 = sphi 0, %s191
      %s193 = sphi 0, %s191
      %s194 = sphi 0, %s193
      %s208 = sphi 0, %s194
      %s214 = sphi 0, %s216
      %s217 = sphi 0, %s214
      %s218 = sphi 0, %s217
      %s234 = sphi 0, %s218
    $region4: #{tpu_custom_call.1} parent=1 // loop_header_branch
      %29 = sbr.rel (%p27) target = $region8
    $region5: #{tpu_custom_call.1} parent=1 // loop_body
      %s31 = ssub.s32 %s26, 1
      %s32 = ssub.s32 %s26, 2
      %s33 = sadd.s32 %s26, 1
      %s34 = ssub.s32 %s26, %s33
      %p35 = scmp.eq.s32.totalorder %s34, 0
      %s37 = sadd.s32 %s36, 1
      %s38 = scalar_select %p35, %s36, %s37
      %p41 = pneg %p35
      %p42 = scmp.eq.s32.totalorder %s26, 1
      %p43 = por %p41, %p42
      %p44 = scmp.ne.s32.totalorder %s36, %s39
      %p45 = scmp.eq.s32.totalorder %s26, 0
      %p46 = por %p44, %p45
      %p47 = scmp.ne.s32.totalorder %s36, %s39
      %p48 = scmp.eq.s32.totalorder %s31, 1
      %p49 = por %p47, %p48
      %p50 = scmp.ne.s32.totalorder %s39, %s40
      %p51 = scmp.eq.s32.totalorder %s31, 0
      %p52 = por %p50, %p51
      %p53 = scmp.ne.s32.totalorder %s39, %s40
      %p54 = scmp.eq.s32.totalorder %s32, 1
      %p55 = por %p53, %p54
      %p57 = scmp.ne.s32.totalorder %s40, %s56
      %p58 = scmp.eq.s32.totalorder %s32, 0
      %p59 = por %p57, %p58
      %s60 = ssub.s32 %s26, %s33
      %p61 = scmp.eq.s32.totalorder %s60, 0
      %s63 = sadd.s32 %s62, 1
      %s64 = scalar_select %p61, %s62, %s63
      %p67 = pneg %p61
      %p68 = scmp.eq.s32.totalorder %s26, 1
      %p69 = por %p67, %p68
      %p70 = scmp.ne.s32.totalorder %s62, %s65
      %p71 = scmp.eq.s32.totalorder %s26, 0
      %p72 = por %p70, %p71
      %p73 = scmp.ne.s32.totalorder %s62, %s65
      %p74 = scmp.eq.s32.totalorder %s31, 1
      %p75 = por %p73, %p74
      %p76 = scmp.ne.s32.totalorder %s65, %s66
      %p77 = scmp.eq.s32.totalorder %s31, 0
      %p78 = por %p76, %p77
      %p79 = scmp.ne.s32.totalorder %s65, %s66
      %p80 = scmp.eq.s32.totalorder %s32, 1
      %p81 = por %p79, %p80
      %p83 = scmp.ne.s32.totalorder %s66, %s82
      %p84 = scmp.eq.s32.totalorder %s32, 0
      %p85 = por %p83, %p84
      %s87 = sadd.s32 %s86, 1
      %p90 = scmp.eq.s32.totalorder %s26, 1
      %p91 = scmp.ne.s32.totalorder %s86, %s88
      %p92 = scmp.eq.s32.totalorder %s26, 0
      %p93 = por %p91, %p92
      %p94 = scmp.ne.s32.totalorder %s86, %s88
      %p95 = scmp.eq.s32.totalorder %s31, 1
      %p96 = por %p94, %p95
      %p97 = scmp.ne.s32.totalorder %s88, %s89
      %p98 = scmp.eq.s32.totalorder %s31, 0
      %p99 = por %p97, %p98
      %p100 = scmp.ne.s32.totalorder %s88, %s89
      %p101 = scmp.eq.s32.totalorder %s32, 1
      %p102 = por %p100, %p101
      %p104 = scmp.ne.s32.totalorder %s89, %s103
      %p105 = scmp.eq.s32.totalorder %s32, 0
      %p106 = por %p104, %p105
      %s108 = sadd.s32 %s107, 1
      %p111 = scmp.eq.s32.totalorder %s26, 1
      %p112 = scmp.ne.s32.totalorder %s107, %s109
      %p113 = scmp.eq.s32.totalorder %s26, 0
      %p114 = por %p112, %p113
      %p115 = scmp.ne.s32.totalorder %s107, %s109
      %p116 = scmp.eq.s32.totalorder %s31, 1
      %p117 = por %p115, %p116
      %p118 = scmp.ne.s32.totalorder %s109, %s110
      %p119 = scmp.eq.s32.totalorder %s31, 0
      %p120 = por %p118, %p119
      %p121 = scmp.ne.s32.totalorder %s109, %s110
      %p122 = scmp.eq.s32.totalorder %s32, 1
      %p123 = por %p121, %p122
      %p125 = scmp.ne.s32.totalorder %s110, %s124
      %p126 = scmp.eq.s32.totalorder %s32, 0
      %p127 = por %p125, %p126
      %s129 = sadd.s32 %s128, 1
      %p132 = scmp.eq.s32.totalorder %s26, 1
      %p133 = scmp.ne.s32.totalorder %s128, %s130
      %p134 = scmp.eq.s32.totalorder %s26, 0
      %p135 = por %p133, %p134
      %p136 = scmp.ne.s32.totalorder %s128, %s130
      %p137 = scmp.eq.s32.totalorder %s31, 1
      %p138 = por %p136, %p137
      %p139 = scmp.ne.s32.totalorder %s130, %s131
      %p140 = scmp.eq.s32.totalorder %s31, 0
      %p141 = por %p139, %p140
      %p142 = scmp.ne.s32.totalorder %s130, %s131
      %p143 = scmp.eq.s32.totalorder %s32, 1
      %p144 = por %p142, %p143
      %p146 = scmp.ne.s32.totalorder %s131, %s145
      %p147 = scmp.eq.s32.totalorder %s32, 0
      %p148 = por %p146, %p147
      %s150 = sadd.s32 %s149, 1
      %p153 = scmp.eq.s32.totalorder %s26, 1
      %p154 = scmp.ne.s32.totalorder %s149, %s151
      %p155 = scmp.eq.s32.totalorder %s26, 0
      %p156 = por %p154, %p155
      %p157 = scmp.ne.s32.totalorder %s149, %s151
      %p158 = scmp.eq.s32.totalorder %s31, 1
      %p159 = por %p157, %p158
      %p160 = scmp.ne.s32.totalorder %s151, %s152
      %p161 = scmp.eq.s32.totalorder %s31, 0
      %p162 = por %p160, %p161
      %p163 = scmp.ne.s32.totalorder %s151, %s152
      %p164 = scmp.eq.s32.totalorder %s32, 1
      %p165 = por %p163, %p164
      %p167 = scmp.ne.s32.totalorder %s152, %s166
      %p168 = scmp.eq.s32.totalorder %s32, 0
      %p169 = por %p167, %p168
      %s171 = sadd.s32 %s170, 1
      %p174 = scmp.eq.s32.totalorder %s26, 1
      %p175 = scmp.ne.s32.totalorder %s170, %s172
      %p176 = scmp.eq.s32.totalorder %s26, 0
      %p177 = por %p175, %p176
      %p178 = scmp.ne.s32.totalorder %s170, %s172
      %p179 = scmp.eq.s32.totalorder %s31, 1
      %p180 = por %p178, %p179
      %p181 = scmp.ne.s32.totalorder %s172, %s173
      %p182 = scmp.eq.s32.totalorder %s31, 0
      %p183 = por %p181, %p182
      %p184 = scmp.ne.s32.totalorder %s172, %s173
      %p185 = scmp.eq.s32.totalorder %s32, 1
      %p186 = por %p184, %p185
      %p188 = scmp.ne.s32.totalorder %s173, %s187
      %p189 = scmp.eq.s32.totalorder %s32, 0
      %p190 = por %p188, %p189
      %s192 = sadd.s32 %s191, 1
      %p195 = scmp.eq.s32.totalorder %s26, 1
      %p196 = scmp.ne.s32.totalorder %s191, %s193
      %p197 = scmp.eq.s32.totalorder %s26, 0
      %p198 = por %p196, %p197
      %p199 = scmp.ne.s32.totalorder %s191, %s193
      %p200 = scmp.eq.s32.totalorder %s31, 1
      %p201 = por %p199, %p200
      %p202 = scmp.ne.s32.totalorder %s193, %s194
      %p203 = scmp.eq.s32.totalorder %s31, 0
      %p204 = por %p202, %p203
      %p205 = scmp.ne.s32.totalorder %s193, %s194
      %p206 = scmp.eq.s32.totalorder %s32, 1
      %p207 = por %p205, %p206
      %p209 = scmp.ne.s32.totalorder %s194, %s208
      %p210 = scmp.eq.s32.totalorder %s32, 0
      %p211 = por %p209, %p210
      %s212 = ssub.s32 %s26, %s33
      %p213 = scmp.eq.s32.totalorder %s212, 0
      %s215 = sadd.s32 %s214, 1
      %s216 = scalar_select %p213, %s214, %s215
      %p219 = pneg %p213
      %p220 = scmp.eq.s32.totalorder %s26, 1
      %p221 = por %p219, %p220
      %p222 = scmp.ne.s32.totalorder %s214, %s217
      %p223 = scmp.eq.s32.totalorder %s26, 0
      %p224 = por %p222, %p223
      %p225 = scmp.ne.s32.totalorder %s214, %s217
      %p226 = scmp.eq.s32.totalorder %s31, 1
      %p227 = por %p225, %p226
      %p228 = scmp.ne.s32.totalorder %s217, %s218
      %p229 = scmp.eq.s32.totalorder %s31, 0
      %p230 = por %p228, %p229
      %p231 = scmp.ne.s32.totalorder %s217, %s218
      %p232 = scmp.eq.s32.totalorder %s32, 1
      %p233 = por %p231, %p232
      %p235 = scmp.ne.s32.totalorder %s218, %s234
      %p236 = scmp.eq.s32.totalorder %s32, 0
      %p237 = por %p235, %p236
      %p238 = scmp.le.s32.totalorder 1, %s26
      %p239 = scmp.lt.s32.totalorder %s26, 3
      %p240 = pnand %p238, %p239
      %p241 = pneg %p240
      // Predicated region
      $region9: #{tpu_custom_call.1} parent=5 // pred_check
        _
      $region10: #{tpu_custom_call.1} parent=5 // pred_check_branch
        %243 = sbr.rel (%p240) target = $region12
      $region11: #{tpu_custom_call.1} parent=5 // pred_region
        %s244 = ssub.s32 %s26, 1
        // Predicated region
        $region13: #{tpu_custom_call.1} parent=11 // pred_check
          %p245 = pneg %p99
        $region14: #{tpu_custom_call.1} parent=11 // pred_check_branch
          %247 = sbr.rel (%p245) target = $region16
        $region15: #{tpu_custom_call.1} parent=11 // pred_region
          _
        $region16: #{tpu_custom_call.1} parent=11 // pred_fallthru
          _
        // Predicated region
        $region17: #{tpu_custom_call.1} parent=11 // pred_check
          %p248 = pneg %p120
        $region18: #{tpu_custom_call.1} parent=11 // pred_check_branch
          %250 = sbr.rel (%p248) target = $region20
        $region19: #{tpu_custom_call.1} parent=11 // pred_region
          _
        $region20: #{tpu_custom_call.1} parent=11 // pred_fallthru
          _
        // Predicated region
        $region21: #{tpu_custom_call.1} parent=11 // pred_check
          %p251 = pneg %p141
        $region22: #{tpu_custom_call.1} parent=11 // pred_check_branch
          %253 = sbr.rel (%p251) target = $region24
        $region23: #{tpu_custom_call.1} parent=11 // pred_region
          %255 = vsyncadd [#allocation6], 0
          %s257 = sshll.u32 %s4, 4
          %s258 = int_to_ptr.vmem [resolvable:$true] %s257
          %260 = dma.vmem_to_smem %s258, 16, [#allocation9], [#allocation6]
        $region24: #{tpu_custom_call.1} parent=11 // pred_fallthru
          _
        // Predicated region
        $region25: #{tpu_custom_call.1} parent=11 // pred_check
          %p261 = pneg %p162
        $region26: #{tpu_custom_call.1} parent=11 // pred_check_branch
          %263 = sbr.rel (%p261) target = $region28
        $region27: #{tpu_custom_call.1} parent=11 // pred_region
          %265 = vsyncadd [#allocation11], 0
          %s267 = sshll.u32 %s5, 4
          %s268 = int_to_ptr.vmem [resolvable:$true] %s267
          %270 = dma.vmem_to_smem %s268, 16, [#allocation10], [#allocation11]
        $region28: #{tpu_custom_call.1} parent=11 // pred_fallthru
          _
        // Predicated region
        $region29: #{tpu_custom_call.1} parent=11 // pred_check
          %p271 = pneg %p183
        $region30: #{tpu_custom_call.1} parent=11 // pred_check_branch
          %273 = sbr.rel (%p271) target = $region32
        $region31: #{tpu_custom_call.1} parent=11 // pred_region
          %275 = vsyncadd [#allocation11], 0
          %s277 = sshll.u32 %s6, 4
          %s278 = int_to_ptr.vmem [resolvable:$true] %s277
          %280 = dma.vmem_to_smem %s278, 16, [#allocation12], [#allocation11]
        $region32: #{tpu_custom_call.1} parent=11 // pred_fallthru
          _
        // Predicated region
        $region33: #{tpu_custom_call.1} parent=11 // pred_check
          %p281 = pneg %p204
        $region34: #{tpu_custom_call.1} parent=11 // pred_check_branch
          %283 = sbr.rel (%p281) target = $region36
        $region35: #{tpu_custom_call.1} parent=11 // pred_region
          _
        $region36: #{tpu_custom_call.1} parent=11 // pred_fallthru
          _
      $region12: #{tpu_custom_call.1} parent=5 // pred_fallthru
        _
      %p284 = scmp.lt.s32.totalorder %s26, 2
      // Predicated region
      $region37: #{tpu_custom_call.1} parent=5 // pred_check
        %p285 = pneg %p284
      $region38: #{tpu_custom_call.1} parent=5 // pred_check_branch
        %287 = sbr.rel (%p285) target = $region40
      $region39: #{tpu_custom_call.1} parent=5 // pred_region
        // Predicated region
        $region41: #{tpu_custom_call.1} parent=39 // pred_check
          %p288 = pneg %p46
        $region42: #{tpu_custom_call.1} parent=39 // pred_check_branch
          %290 = sbr.rel (%p288) target = $region44
        $region43: #{tpu_custom_call.1} parent=39 // pred_region
          %s291 = sand.u32 %s36, 1
          %s292 = scalar_lea.sflag [#allocation4], %s291
          %s293 = sand.u32 %s36, 1
          %s294 = smul.addr %s293, 32
          %s295 = scalar_lea.vmem [#allocation3], %s294
          %297 = vsyncadd %s292, 0
          %s298 = smul.addr %s26, 4
          %s299 = smul.addr %s298, 8
          %s300 = scalar_lea.hbm %s0, %s299
          %s301 = sshll.u32 %s300, 4
          %s302 = int_to_ptr.hbm [resolvable:$true] %s301
          %s303 = sshll.u32 %s295, 4
          %s304 = int_to_ptr.vmem [resolvable:$true] %s303
          %309 = dma.hbm_to_vmem [thread:$0]  %s302, 512, %s304, %s292, 128, 128, 8
        $region44: #{tpu_custom_call.1} parent=39 // pred_fallthru
          _
        // Predicated region
        $region45: #{tpu_custom_call.1} parent=39 // pred_check
          %p310 = pneg %p72
        $region46: #{tpu_custom_call.1} parent=39 // pred_check_branch
          %312 = sbr.rel (%p310) target = $region48
        $region47: #{tpu_custom_call.1} parent=39 // pred_region
          %s313 = sand.u32 %s62, 1
          %s314 = scalar_lea.sflag [#allocation8], %s313
          %s315 = sand.u32 %s62, 1
          %s316 = smul.addr %s315, 64
          %s317 = scalar_lea.vmem [#allocation7], %s316
          %319 = vsyncadd %s314, 0
          %s320 = smul.addr %s26, 8
          %s321 = smul.addr %s320, 8
          %s322 = scalar_lea.hbm %s1, %s321
          %s323 = sshll.u32 %s322, 4
          %s324 = int_to_ptr.hbm [resolvable:$true] %s323
          %s325 = sshll.u32 %s317, 4
          %s326 = int_to_ptr.vmem [resolvable:$true] %s325
          %331 = dma.hbm_to_vmem [thread:$0]  %s324, 1024, %s326, %s314, 128, 128, 8
        $region48: #{tpu_custom_call.1} parent=39 // pred_fallthru
          _
      $region40: #{tpu_custom_call.1} parent=5 // pred_fallthru
        _
      %p332 = scmp.le.s32.totalorder 1, %s26
      %p333 = scmp.lt.s32.totalorder %s26, 3
      %p334 = pnand %p332, %p333
      %p335 = pneg %p334
      // Predicated region
      $region49: #{tpu_custom_call.1} parent=5 // pred_check
        _
      $region50: #{tpu_custom_call.1} parent=5 // pred_check_branch
        %337 = sbr.rel (%p334) target = $region52
      $region51: #{tpu_custom_call.1} parent=5 // pred_region
        %s338 = ssub.s32 %s26, 1
        %s339 = sand.u32 %s39, 1
        %s340 = scalar_lea.sflag [#allocation4], %s339
        %s341 = sand.u32 %s39, 1
        %s342 = smul.addr %s341, 32
        %s343 = scalar_lea.vmem [#allocation3], %s342
        // Predicated region
        $region53: #{tpu_custom_call.1} parent=51 // pred_check
          %p344 = pneg %p52
        $region54: #{tpu_custom_call.1} parent=51 // pred_check_branch
          %346 = sbr.rel (%p344) target = $region56
        $region55: #{tpu_custom_call.1} parent=51 // pred_region
          %348 = dma.done %s340, 512
        $region56: #{tpu_custom_call.1} parent=51 // pred_fallthru
          _
        %s349 = sand.u32 %s65, 1
        %s350 = scalar_lea.sflag [#allocation8], %s349
        %s351 = sand.u32 %s65, 1
        %s352 = smul.addr %s351, 64
        %s353 = scalar_lea.vmem [#allocation7], %s352
        // Predicated region
        $region57: #{tpu_custom_call.1} parent=51 // pred_check
          %p354 = pneg %p78
        $region58: #{tpu_custom_call.1} parent=51 // pred_check_branch
          %356 = sbr.rel (%p354) target = $region60
        $region59: #{tpu_custom_call.1} parent=51 // pred_region
          %358 = dma.done %s350, 1024
        $region60: #{tpu_custom_call.1} parent=51 // pred_fallthru
          _
        // Predicated region
        $region61: #{tpu_custom_call.1} parent=51 // pred_check
          %p359 = pneg %p141
        $region62: #{tpu_custom_call.1} parent=51 // pred_check_branch
          %361 = sbr.rel (%p359) target = $region64
        $region63: #{tpu_custom_call.1} parent=51 // pred_region
          %363 = dma.done [#allocation6], 16
        $region64: #{tpu_custom_call.1} parent=51 // pred_fallthru
          _
        // Predicated region
        $region65: #{tpu_custom_call.1} parent=51 // pred_check
          %p364 = pneg %p162
        $region66: #{tpu_custom_call.1} parent=51 // pred_check_branch
          %366 = sbr.rel (%p364) target = $region68
        $region67: #{tpu_custom_call.1} parent=51 // pred_region
          %368 = dma.done [#allocation11], 16
        $region68: #{tpu_custom_call.1} parent=51 // pred_fallthru
          _
        // Predicated region
        $region69: #{tpu_custom_call.1} parent=51 // pred_check
          %p369 = pneg %p183
        $region70: #{tpu_custom_call.1} parent=51 // pred_check_branch
          %371 = sbr.rel (%p369) target = $region72
        $region71: #{tpu_custom_call.1} parent=51 // pred_region
          %373 = dma.done [#allocation11], 16
        $region72: #{tpu_custom_call.1} parent=51 // pred_fallthru
          _
        %374 = sfence
        %s375 = sand.u32 %s39, 1
        %s376 = scalar_lea.sflag [#allocation4], %s375
        %s377 = sand.u32 %s39, 1
        %s378 = smul.addr %s377, 32
        %s379 = scalar_lea.vmem [#allocation3], %s378
        %p380 = pneg %p52
        %p381 = pneg %p49
        %s382 = sand.u32 %s65, 1
        %s383 = scalar_lea.sflag [#allocation8], %s382
        %s384 = sand.u32 %s65, 1
        %s385 = smul.addr %s384, 64
        %s386 = scalar_lea.vmem [#allocation7], %s385
        %p387 = pneg %p78
        %p388 = pneg %p75
        %p389 = pneg %p99
        %p390 = pneg %p96
        %p391 = pneg %p120
        %p392 = pneg %p117
        %p393 = pneg %p141
        %p394 = pneg %p138
        %p395 = pneg %p162
        %p396 = pneg %p159
        %p397 = pneg %p183
        %p398 = pneg %p180
        %p399 = pneg %p204
        %p400 = pneg %p201
        %p401 = pneg %p230
        %p402 = pneg %p227
        %s403 = sand.u32 %s217, 1
        %s404 = scalar_lea.sflag [#allocation5], %s403
        %s405 = sand.u32 %s217, 1
        %s406 = smul.addr %s405, 64
        %s407 = scalar_lea.vmem [#allocation13], %s406
        %v408 = vld [vmem:[%s343] sm:$0xff]
        %v409 = vld [vmem:[%s343 + $0x8] sm:$0xff]
        %v410 = vld [vmem:[%s343 + $0x10] sm:$0xff]
        %v411 = vld [vmem:[%s343 + $0x18] sm:$0xff]
        %v412 = vld [vmem:[%s353] sm:$0xff]
        %v413 = vld [vmem:[%s353 + $0x8] sm:$0xff]
        %v414 = vld [vmem:[%s353 + $0x10] sm:$0xff]
        %v415 = vld [vmem:[%s353 + $0x18] sm:$0xff]
        %v416 = vld [vmem:[%s353 + $0x20] sm:$0xff]
        %v417 = vld [vmem:[%s353 + $0x28] sm:$0xff]
        %v418 = vld [vmem:[%s353 + $0x30] sm:$0xff]
        %v419 = vld [vmem:[%s353 + $0x38] sm:$0xff]
        %v420 = vld [vmem:[%s2] sm:$0xff]
        %v421 = vld [vmem:[%s2 + $0x8] sm:$0xff]
        %v422 = vld [vmem:[%s3] sm:$0xff]
        %v423 = vadd.f32 %v412, %v414
        %v424 = vadd.f32 %v413, %v415
        %v425 = vmax.f32 %v412, %v414
        %v426 = vmax.f32 %v413, %v415
        %v427 = vadd.f32 %v423, %v416
        %v428 = vadd.f32 %v424, %v417
        %v429 = vmax.f32 %v425, %v416
        %v430 = vmax.f32 %v426, %v417
        %v431 = vadd.f32 %v427, %v418
        %v432 = vadd.f32 %v428, %v419
        %v433 = vmax.f32 %v429, %v418
        %v434 = vmax.f32 %v430, %v419
        %s435 = sld [smem:[#allocation9]]
        %v436 = vstv %s435
        %v437 = vmul.f32 %v436, %v408
        %s438 = sld [smem:[#allocation9 + $0x1]]
        %v439 = vstv %s438
        %v440 = vmul.f32 %v439, %v409
        %v441 = vadd.f32 %v437, %v440
        %s442 = sld [smem:[#allocation9 + $0x2]]
        %v443 = vstv %s442
        %v444 = vmul.f32 %v443, %v410
        %v445 = vadd.f32 %v441, %v444
        %s446 = sld [smem:[#allocation9 + $0x3]]
        %v447 = vstv %s446
        %v448 = vmul.f32 %v447, %v411
        %v449 = vadd.f32 %v445, %v448
        %s450 = sld [smem:[#allocation10]]
        %v451 = vstv %s450
        %v452 = vadd.f32 %v449, %v451
        %vm453 = vcmask 64512
        %v455 = vsel %vm453, %v452, 0
        %457 = vmatpush.msra.mxu0 0.0
        %458 = vmatpush.msra.mxu0 0.0
        %459 = vmatpush.msra.mxu0 0.0
        %460 = vmatpush.msra.mxu0 0.0
        %461 = vmatpush.msra.mxu0 0.0
        %462 = vmatpush.msra.mxu0 0.0
        %463 = vmatpush.msra.mxu0 0.0
        %464 = vmatpush.msra.mxu0 0.0
        %465 = vmatpush.msra.mxu0 0.0
        %466 = vmatpush.msra.mxu0 0.0
        %467 = vmatpush.msra.mxu0 0.0
        %468 = vmatpush.msra.mxu0 0.0
        %469 = vmatpush.msra.mxu0 0.0
        %470 = vmatpush.msra.mxu0 0.0
        %471 = vmatpush.msra.mxu0 0.0
        %472 = vmatpush.msra.mxu0 %v422
        %473 = vmatmul.f32.gmra.mxu0 %v455
        %v474 = vpop.f32.mrf.mxu0
        %v475 = vadd.f32 0.0, %v474
        %476 = vdwg.mxu0
        %v478 = vsel %vm453, %v420, 0
        %v481 = vsel %vm453, %v421, 0
        %483 = vmatpush.msra.mxu0 0.0
        %484 = vmatpush.msra.mxu0 0.0
        %485 = vmatpush.msra.mxu0 0.0
        %486 = vmatpush.msra.mxu0 0.0
        %487 = vmatpush.msra.mxu0 0.0
        %488 = vmatpush.msra.mxu0 0.0
        %489 = vmatpush.msra.mxu0 0.0
        %490 = vmatpush.msra.mxu0 0.0
        %491 = vmatpush.msra.mxu0 0.0
        %492 = vmatpush.msra.mxu0 0.0
        %493 = vmatpush.msra.mxu0 0.0
        %494 = vmatpush.msra.mxu0 0.0
        %495 = vmatpush.msra.mxu0 0.0
        %496 = vmatpush.msra.mxu0 0.0
        %497 = vmatpush.msra.mxu0 0.0
        %498 = vmatpush.msra.mxu0 %v475
        %499 = vmatmul.f32.gmra.mxu0 %v478
        %v500 = vpop.f32.mrf.mxu0
        %v501 = vadd.f32 0.0, %v500
        %502 = vmatmul.f32.gmra.mxu0 %v481
        %v503 = vpop.f32.mrf.mxu0
        %v504 = vadd.f32 0.0, %v503
        %505 = vdwg.mxu0
        %v506 = vadd.f32 %v431, %v501
        %v507 = vadd.f32 %v432, %v504
        %v508 = vmax.f32 %v433, %v501
        %v509 = vmax.f32 %v434, %v504
        %s510 = sld [smem:[#allocation9 + $0x4]]
        %v511 = vstv %s510
        %v512 = vmul.f32 %v511, %v408
        %s513 = sld [smem:[#allocation9 + $0x5]]
        %v514 = vstv %s513
        %v515 = vmul.f32 %v514, %v409
        %v516 = vadd.f32 %v512, %v515
        %s517 = sld [smem:[#allocation9 + $0x6]]
        %v518 = vstv %s517
        %v519 = vmul.f32 %v518, %v410
        %v520 = vadd.f32 %v516, %v519
        %s521 = sld [smem:[#allocation9 + $0x7]]
        %v522 = vstv %s521
        %v523 = vmul.f32 %v522, %v411
        %v524 = vadd.f32 %v520, %v523
        %s525 = sld [smem:[#allocation10 + $0x1]]
        %v526 = vstv %s525
        %v527 = vadd.f32 %v524, %v526
        %v529 = vsel %vm453, %v527, 0
        %531 = vmatpush.msra.mxu0 0.0
        %532 = vmatpush.msra.mxu0 0.0
        %533 = vmatpush.msra.mxu0 0.0
        %534 = vmatpush.msra.mxu0 0.0
        %535 = vmatpush.msra.mxu0 0.0
        %536 = vmatpush.msra.mxu0 0.0
        %537 = vmatpush.msra.mxu0 0.0
        %538 = vmatpush.msra.mxu0 0.0
        %539 = vmatpush.msra.mxu0 0.0
        %540 = vmatpush.msra.mxu0 0.0
        %541 = vmatpush.msra.mxu0 0.0
        %542 = vmatpush.msra.mxu0 0.0
        %543 = vmatpush.msra.mxu0 0.0
        %544 = vmatpush.msra.mxu0 0.0
        %545 = vmatpush.msra.mxu0 0.0
        %546 = vmatpush.msra.mxu0 %v422
        %547 = vmatmul.f32.gmra.mxu0 %v529
        %v548 = vpop.f32.mrf.mxu0
        %v549 = vadd.f32 0.0, %v548
        %550 = vdwg.mxu0
        %551 = vmatpush.msra.mxu0 0.0
        %552 = vmatpush.msra.mxu0 0.0
        %553 = vmatpush.msra.mxu0 0.0
        %554 = vmatpush.msra.mxu0 0.0
        %555 = vmatpush.msra.mxu0 0.0
        %556 = vmatpush.msra.mxu0 0.0
        %557 = vmatpush.msra.mxu0 0.0
        %558 = vmatpush.msra.mxu0 0.0
        %559 = vmatpush.msra.mxu0 0.0
        %560 = vmatpush.msra.mxu0 0.0
        %561 = vmatpush.msra.mxu0 0.0
        %562 = vmatpush.msra.mxu0 0.0
        %563 = vmatpush.msra.mxu0 0.0
        %564 = vmatpush.msra.mxu0 0.0
        %565 = vmatpush.msra.mxu0 0.0
        %566 = vmatpush.msra.mxu0 %v549
        %567 = vmatmul.f32.gmra.mxu0 %v478
        %v568 = vpop.f32.mrf.mxu0
        %v569 = vadd.f32 0.0, %v568
        %570 = vmatmul.f32.gmra.mxu0 %v481
        %v571 = vpop.f32.mrf.mxu0
        %v572 = vadd.f32 0.0, %v571
        %573 = vdwg.mxu0
        %v574 = vadd.f32 %v506, %v569
        %v575 = vadd.f32 %v507, %v572
        %v576 = vmax.f32 %v508, %v569
        %v577 = vmax.f32 %v509, %v572
        %s578 = sld [smem:[#allocation9 + $0x8]]
        %v579 = vstv %s578
        %v580 = vmul.f32 %v579, %v408
        %s581 = sld [smem:[#allocation9 + $0x9]]
        %v582 = vstv %s581
        %v583 = vmul.f32 %v582, %v409
        %v584 = vadd.f32 %v580, %v583
        %s585 = sld [smem:[#allocation9 + $0xa]]
        %v586 = vstv %s585
        %v587 = vmul.f32 %v586, %v410
        %v588 = vadd.f32 %v584, %v587
        %s589 = sld [smem:[#allocation9 + $0xb]]
        %v590 = vstv %s589
        %v591 = vmul.f32 %v590, %v411
        %v592 = vadd.f32 %v588, %v591
        %s593 = sld [smem:[#allocation10 + $0x2]]
        %v594 = vstv %s593
        %v595 = vadd.f32 %v592, %v594
        %v597 = vsel %vm453, %v595, 0
        %599 = vmatpush.msra.mxu0 0.0
        %600 = vmatpush.msra.mxu0 0.0
        %601 = vmatpush.msra.mxu0 0.0
        %602 = vmatpush.msra.mxu0 0.0
        %603 = vmatpush.msra.mxu0 0.0
        %604 = vmatpush.msra.mxu0 0.0
        %605 = vmatpush.msra.mxu0 0.0
        %606 = vmatpush.msra.mxu0 0.0
        %607 = vmatpush.msra.mxu0 0.0
        %608 = vmatpush.msra.mxu0 0.0
        %609 = vmatpush.msra.mxu0 0.0
        %610 = vmatpush.msra.mxu0 0.0
        %611 = vmatpush.msra.mxu0 0.0
        %612 = vmatpush.msra.mxu0 0.0
        %613 = vmatpush.msra.mxu0 0.0
        %614 = vmatpush.msra.mxu0 %v422
        %615 = vmatmul.f32.gmra.mxu0 %v597
        %v616 = vpop.f32.mrf.mxu0
        %v617 = vadd.f32 0.0, %v616
        %618 = vdwg.mxu0
        %619 = vmatpush.msra.mxu0 0.0
        %620 = vmatpush.msra.mxu0 0.0
        %621 = vmatpush.msra.mxu0 0.0
        %622 = vmatpush.msra.mxu0 0.0
        %623 = vmatpush.msra.mxu0 0.0
        %624 = vmatpush.msra.mxu0 0.0
        %625 = vmatpush.msra.mxu0 0.0
        %626 = vmatpush.msra.mxu0 0.0
        %627 = vmatpush.msra.mxu0 0.0
        %628 = vmatpush.msra.mxu0 0.0
        %629 = vmatpush.msra.mxu0 0.0
        %630 = vmatpush.msra.mxu0 0.0
        %631 = vmatpush.msra.mxu0 0.0
        %632 = vmatpush.msra.mxu0 0.0
        %633 = vmatpush.msra.mxu0 0.0
        %634 = vmatpush.msra.mxu0 %v617
        %635 = vmatmul.f32.gmra.mxu0 %v478
        %v636 = vpop.f32.mrf.mxu0
        %v637 = vadd.f32 0.0, %v636
        %638 = vmatmul.f32.gmra.mxu0 %v481
        %v639 = vpop.f32.mrf.mxu0
        %v640 = vadd.f32 0.0, %v639
        %641 = vdwg.mxu0
        %v642 = vadd.f32 %v574, %v637
        %v643 = vadd.f32 %v575, %v640
        %v644 = vmax.f32 %v576, %v637
        %v645 = vmax.f32 %v577, %v640
        %s646 = sld [smem:[#allocation9 + $0xc]]
        %v647 = vstv %s646
        %v648 = vmul.f32 %v647, %v408
        %s649 = sld [smem:[#allocation9 + $0xd]]
        %v650 = vstv %s649
        %v651 = vmul.f32 %v650, %v409
        %v652 = vadd.f32 %v648, %v651
        %s653 = sld [smem:[#allocation9 + $0xe]]
        %v654 = vstv %s653
        %v655 = vmul.f32 %v654, %v410
        %v656 = vadd.f32 %v652, %v655
        %s657 = sld [smem:[#allocation9 + $0xf]]
        %v658 = vstv %s657
        %v659 = vmul.f32 %v658, %v411
        %v660 = vadd.f32 %v656, %v659
        %s661 = sld [smem:[#allocation10 + $0x3]]
        %v662 = vstv %s661
        %v663 = vadd.f32 %v660, %v662
        %v665 = vsel %vm453, %v663, 0
        %667 = vmatpush.msra.mxu0 0.0
        %668 = vmatpush.msra.mxu0 0.0
        %669 = vmatpush.msra.mxu0 0.0
        %670 = vmatpush.msra.mxu0 0.0
        %671 = vmatpush.msra.mxu0 0.0
        %672 = vmatpush.msra.mxu0 0.0
        %673 = vmatpush.msra.mxu0 0.0
        %674 = vmatpush.msra.mxu0 0.0
        %675 = vmatpush.msra.mxu0 0.0
        %676 = vmatpush.msra.mxu0 0.0
        %677 = vmatpush.msra.mxu0 0.0
        %678 = vmatpush.msra.mxu0 0.0
        %679 = vmatpush.msra.mxu0 0.0
        %680 = vmatpush.msra.mxu0 0.0
        %681 = vmatpush.msra.mxu0 0.0
        %682 = vmatpush.msra.mxu0 %v422
        %683 = vmatmul.f32.gmra.mxu0 %v665
        %v684 = vpop.f32.mrf.mxu0
        %v685 = vadd.f32 0.0, %v684
        %686 = vdwg.mxu0
        %687 = vmatpush.msra.mxu0 0.0
        %688 = vmatpush.msra.mxu0 0.0
        %689 = vmatpush.msra.mxu0 0.0
        %690 = vmatpush.msra.mxu0 0.0
        %691 = vmatpush.msra.mxu0 0.0
        %692 = vmatpush.msra.mxu0 0.0
        %693 = vmatpush.msra.mxu0 0.0
        %694 = vmatpush.msra.mxu0 0.0
        %695 = vmatpush.msra.mxu0 0.0
        %696 = vmatpush.msra.mxu0 0.0
        %697 = vmatpush.msra.mxu0 0.0
        %698 = vmatpush.msra.mxu0 0.0
        %699 = vmatpush.msra.mxu0 0.0
        %700 = vmatpush.msra.mxu0 0.0
        %701 = vmatpush.msra.mxu0 0.0
        %702 = vmatpush.msra.mxu0 %v685
        %703 = vmatmul.f32.gmra.mxu0 %v478
        %v704 = vpop.f32.mrf.mxu0
        %v705 = vadd.f32 0.0, %v704
        %706 = vmatmul.f32.gmra.mxu0 %v481
        %v707 = vpop.f32.mrf.mxu0
        %v708 = vadd.f32 0.0, %v707
        %709 = vdwg.mxu0
        %v710 = vadd.f32 %v642, %v705
        %v711 = vadd.f32 %v643, %v708
        %v712 = vmax.f32 %v644, %v705
        %v713 = vmax.f32 %v645, %v708
        %v714 = vmul.f32 %v710, 0.125
        %v715 = vmul.f32 %v711, 0.125
        %vm718 = vcmask 1042432
        %v719 = vrot.slane %v714, 5
        %v720 = vrot.slane %v715, 5
        %v721 = vsel %vm718, %v719, %v720
        %v724 = vsel %vm718, 0.0, %v719
        %v725 = vsel %vm718, %v720, 0.0
        %728 = vrot.lane.b32.xlu0 %v724, 3
        %v729 = vpop.permute.xlu0 %728
        %730 = vrot.lane.b32.xlu0 %v721, 3
        %v731 = vpop.permute.xlu0 %730
        %732 = vrot.lane.b32.xlu0 %v725, 3
        %v733 = vpop.permute.xlu0 %732
        %vm737 = vcmask 23552
        %v738 = vsel %vm737, 0.0, %v729
        %v739 = vsel %vm737, 0.0, %v731
        %v740 = vsel %vm737, 0.0, %v733
        %vm741 = vcmask 154624
        %v742 = vsel %vm741, %v738, 0.0
        %v743 = vsel %vm741, %v739, 0.0
        %v744 = vsel %vm741, %v740, 0.0
        %v747 = vrot.slane %v712, 5
        %v748 = vrot.slane %v713, 5
        %v749 = vsel %vm718, %v747, %v748
        %v752 = vsel %vm718, 0.0, %v747
        %v753 = vsel %vm718, %v748, 0.0
        %756 = vrot.lane.b32.xlu0 %v752, 3
        %v757 = vpop.permute.xlu0 %756
        %758 = vrot.lane.b32.xlu0 %v749, 3
        %v759 = vpop.permute.xlu0 %758
        %760 = vrot.lane.b32.xlu0 %v753, 3
        %v761 = vpop.permute.xlu0 %760
        %v765 = vsel %vm737, 0.0, %v757
        %v766 = vsel %vm737, 0.0, %v759
        %v767 = vsel %vm737, 0.0, %v761
        %v768 = vsel %vm741, %v765, 0.0
        %v769 = vsel %vm741, %v766, 0.0
        %v770 = vsel %vm741, %v767, 0.0
        %s771 = sld [smem:[#allocation12]]
        %v772 = vstv %s771
        %v773 = vmul.f32 %v772, %v742
        %v774 = vmul.f32 %v772, %v743
        %v775 = vadd.f32 %v773, 0.0
        %v776 = vadd.f32 %v774, 0.0
        %s777 = sld [smem:[#allocation12 + $0x1]]
        %v778 = vstv %s777
        %v779 = vmul.f32 %v778, %v742
        %v780 = vmul.f32 %v778, %v743
        %783 = vrot.lane.b32.xlu0 %v779, 127
        %v784 = vpop.permute.xlu0 %783
        %785 = vrot.lane.b32.xlu0 %v780, 127
        %v786 = vpop.permute.xlu0 %785
        %v789 = vadd.f32 %v775, %v784
        %v790 = vadd.f32 %v776, %v786
        %s791 = sld [smem:[#allocation12 + $0x2]]
        %v792 = vstv %s791
        %v793 = vmul.f32 %v792, %v742
        %v794 = vmul.f32 %v792, %v743
        %797 = vrot.lane.b32.xlu0 %v793, 126
        %v798 = vpop.permute.xlu0 %797
        %799 = vrot.lane.b32.xlu0 %v794, 126
        %v800 = vpop.permute.xlu0 %799
        %v803 = vadd.f32 %v789, %v798
        %v804 = vadd.f32 %v790, %v800
        %s805 = sld [smem:[#allocation12 + $0x3]]
        %v806 = vstv %s805
        %v807 = vmul.f32 %v806, %v742
        %v808 = vmul.f32 %v806, %v743
        %811 = vrot.lane.b32.xlu0 %v807, 125
        %v812 = vpop.permute.xlu0 %811
        %813 = vrot.lane.b32.xlu0 %v808, 125
        %v814 = vpop.permute.xlu0 %813
        %v817 = vadd.f32 %v803, %v812
        %v818 = vadd.f32 %v804, %v814
        %s819 = sld [smem:[#allocation12 + $0x4]]
        %v820 = vstv %s819
        %v821 = vmul.f32 %v820, %v742
        %v822 = vmul.f32 %v820, %v743
        %825 = vrot.lane.b32.xlu0 %v821, 124
        %v826 = vpop.permute.xlu0 %825
        %827 = vrot.lane.b32.xlu0 %v822, 124
        %v828 = vpop.permute.xlu0 %827
        %v831 = vadd.f32 %v817, %v826
        %v832 = vadd.f32 %v818, %v828
        %s833 = sld [smem:[#allocation12 + $0x5]]
        %v834 = vstv %s833
        %v835 = vmul.f32 %v834, %v742
        %v836 = vmul.f32 %v834, %v743
        %839 = vrot.lane.b32.xlu0 %v835, 123
        %v840 = vpop.permute.xlu0 %839
        %841 = vrot.lane.b32.xlu0 %v836, 123
        %v842 = vpop.permute.xlu0 %841
        %v845 = vadd.f32 %v831, %v840
        %v846 = vadd.f32 %v832, %v842
        %s847 = sld [smem:[#allocation12 + $0x6]]
        %v848 = vstv %s847
        %v849 = vmul.f32 %v848, %v742
        %v850 = vmul.f32 %v848, %v743
        %853 = vrot.lane.b32.xlu0 %v849, 122
        %v854 = vpop.permute.xlu0 %853
        %855 = vrot.lane.b32.xlu0 %v850, 122
        %v856 = vpop.permute.xlu0 %855
        %v859 = vadd.f32 %v845, %v854
        %v860 = vadd.f32 %v846, %v856
        %s861 = sld [smem:[#allocation12 + $0x7]]
        %v862 = vstv %s861
        %v863 = vmul.f32 %v862, %v742
        %v864 = vmul.f32 %v862, %v743
        %v865 = vmul.f32 %v862, %v744
        %v866 = vadd.f32 %v863, 0.0
        %v867 = vadd.f32 %v864, 0.0
        %v868 = vadd.f32 %v865, 0.0
        %s869 = sld [smem:[#allocation12 + $0x8]]
        %v870 = vstv %s869
        %v871 = vmul.f32 %v870, %v742
        %v872 = vmul.f32 %v870, %v743
        %v873 = vmul.f32 %v870, %v744
        %877 = vrot.lane.b32.xlu0 %v871, 127
        %v878 = vpop.permute.xlu0 %877
        %879 = vrot.lane.b32.xlu0 %v872, 127
        %v880 = vpop.permute.xlu0 %879
        %881 = vrot.lane.b32.xlu0 %v873, 127
        %v882 = vpop.permute.xlu0 %881
        %v886 = vadd.f32 %v866, %v878
        %v887 = vadd.f32 %v867, %v880
        %v888 = vadd.f32 %v868, %v882
        %s889 = sld [smem:[#allocation12 + $0x9]]
        %v890 = vstv %s889
        %v891 = vmul.f32 %v890, %v742
        %v892 = vmul.f32 %v890, %v743
        %v893 = vmul.f32 %v890, %v744
        %897 = vrot.lane.b32.xlu0 %v891, 126
        %v898 = vpop.permute.xlu0 %897
        %899 = vrot.lane.b32.xlu0 %v892, 126
        %v900 = vpop.permute.xlu0 %899
        %901 = vrot.lane.b32.xlu0 %v893, 126
        %v902 = vpop.permute.xlu0 %901
        %v906 = vadd.f32 %v886, %v898
        %v907 = vadd.f32 %v887, %v900
        %v908 = vadd.f32 %v888, %v902
        %s909 = sld [smem:[#allocation12 + $0xa]]
        %v910 = vstv %s909
        %v911 = vmul.f32 %v910, %v742
        %v912 = vmul.f32 %v910, %v743
        %v913 = vmul.f32 %v910, %v744
        %917 = vrot.lane.b32.xlu0 %v911, 125
        %v918 = vpop.permute.xlu0 %917
        %919 = vrot.lane.b32.xlu0 %v912, 125
        %v920 = vpop.permute.xlu0 %919
        %921 = vrot.lane.b32.xlu0 %v913, 125
        %v922 = vpop.permute.xlu0 %921
        %v926 = vadd.f32 %v906, %v918
        %v927 = vadd.f32 %v907, %v920
        %v928 = vadd.f32 %v908, %v922
        %s929 = sld [smem:[#allocation12 + $0xb]]
        %v930 = vstv %s929
        %v931 = vmul.f32 %v930, %v742
        %v932 = vmul.f32 %v930, %v743
        %v933 = vmul.f32 %v930, %v744
        %937 = vrot.lane.b32.xlu0 %v931, 124
        %v938 = vpop.permute.xlu0 %937
        %939 = vrot.lane.b32.xlu0 %v932, 124
        %v940 = vpop.permute.xlu0 %939
        %941 = vrot.lane.b32.xlu0 %v933, 124
        %v942 = vpop.permute.xlu0 %941
        %v946 = vadd.f32 %v926, %v938
        %v947 = vadd.f32 %v927, %v940
        %v948 = vadd.f32 %v928, %v942
        %s949 = sld [smem:[#allocation12 + $0xc]]
        %v950 = vstv %s949
        %v951 = vmul.f32 %v950, %v742
        %v952 = vmul.f32 %v950, %v743
        %v953 = vmul.f32 %v950, %v744
        %957 = vrot.lane.b32.xlu0 %v951, 123
        %v958 = vpop.permute.xlu0 %957
        %959 = vrot.lane.b32.xlu0 %v952, 123
        %v960 = vpop.permute.xlu0 %959
        %961 = vrot.lane.b32.xlu0 %v953, 123
        %v962 = vpop.permute.xlu0 %961
        %v966 = vadd.f32 %v946, %v958
        %v967 = vadd.f32 %v947, %v960
        %v968 = vadd.f32 %v948, %v962
        %s969 = sld [smem:[#allocation12 + $0xd]]
        %v970 = vstv %s969
        %v971 = vmul.f32 %v970, %v742
        %v972 = vmul.f32 %v970, %v743
        %v973 = vmul.f32 %v970, %v744
        %977 = vrot.lane.b32.xlu0 %v971, 122
        %v978 = vpop.permute.xlu0 %977
        %979 = vrot.lane.b32.xlu0 %v972, 122
        %v980 = vpop.permute.xlu0 %979
        %981 = vrot.lane.b32.xlu0 %v973, 122
        %v982 = vpop.permute.xlu0 %981
        %v986 = vadd.f32 %v966, %v978
        %v987 = vadd.f32 %v967, %v980
        %v988 = vadd.f32 %v968, %v982
        %s989 = sld [smem:[#allocation12 + $0xe]]
        %v990 = vstv %s989
        %v991 = vmul.f32 %v990, %v742
        %v992 = vmul.f32 %v990, %v743
        %v993 = vmul.f32 %v990, %v744
        %vm997 = vcmask 1045504
        %v998 = vrot.slane %v991, 2
        %v999 = vrot.slane %v992, 2
        %v1000 = vsel %vm997, %v998, %v999
        %v1001 = vrot.slane %v993, 2
        %v1002 = vsel %vm997, %v999, %v1001
        %v1005 = vadd.f32 %v859, %v1000
        %v1006 = vadd.f32 %v860, %v1002
        %s1007 = sld [smem:[#allocation12 + $0xf]]
        %v1008 = vstv %s1007
        %v1009 = vmul.f32 %v1008, %v742
        %v1010 = vmul.f32 %v1008, %v743
        %v1011 = vmul.f32 %v1008, %v744
        %v1015 = vrot.slane %v1009, 2
        %v1016 = vrot.slane %v1010, 2
        %v1017 = vsel %vm997, %v1015, %v1016
        %v1018 = vrot.slane %v1011, 2
        %v1019 = vsel %vm997, %v1016, %v1018
        %1020 = vrot.lane.b32.xlu0 %v1017, 127
        %v1021 = vpop.permute.xlu0 %1020
        %1022 = vrot.lane.b32.xlu0 %v1019, 127
        %v1023 = vpop.permute.xlu0 %1022
        %v1026 = vadd.f32 %v1005, %v1021
        %v1027 = vadd.f32 %v1006, %v1023
        %s1028 = sld [smem:[#allocation12 + $0x10]]
        %v1029 = vstv %s1028
        %v1030 = vmul.f32 %v1029, %v742
        %v1031 = vmul.f32 %v1029, %v743
        %v1032 = vmul.f32 %v1029, %v744
        %v1036 = vrot.slane %v1030, 2
        %v1037 = vrot.slane %v1031, 2
        %v1038 = vsel %vm997, %v1036, %v1037
        %v1039 = vrot.slane %v1032, 2
        %v1040 = vsel %vm997, %v1037, %v1039
        %1041 = vrot.lane.b32.xlu0 %v1038, 126
        %v1042 = vpop.permute.xlu0 %1041
        %1043 = vrot.lane.b32.xlu0 %v1040, 126
        %v1044 = vpop.permute.xlu0 %1043
        %v1047 = vadd.f32 %v1026, %v1042
        %v1048 = vadd.f32 %v1027, %v1044
        %s1049 = sld [smem:[#allocation12 + $0x11]]
        %v1050 = vstv %s1049
        %v1051 = vmul.f32 %v1050, %v742
        %v1052 = vmul.f32 %v1050, %v743
        %v1053 = vmul.f32 %v1050, %v744
        %v1057 = vrot.slane %v1051, 2
        %v1058 = vrot.slane %v1052, 2
        %v1059 = vsel %vm997, %v1057, %v1058
        %v1060 = vrot.slane %v1053, 2
        %v1061 = vsel %vm997, %v1058, %v1060
        %1062 = vrot.lane.b32.xlu0 %v1059, 125
        %v1063 = vpop.permute.xlu0 %1062
        %1064 = vrot.lane.b32.xlu0 %v1061, 125
        %v1065 = vpop.permute.xlu0 %1064
        %v1068 = vadd.f32 %v1047, %v1063
        %v1069 = vadd.f32 %v1048, %v1065
        %s1070 = sld [smem:[#allocation12 + $0x12]]
        %v1071 = vstv %s1070
        %v1072 = vmul.f32 %v1071, %v742
        %v1073 = vmul.f32 %v1071, %v743
        %v1074 = vmul.f32 %v1071, %v744
        %v1078 = vrot.slane %v1072, 2
        %v1079 = vrot.slane %v1073, 2
        %v1080 = vsel %vm997, %v1078, %v1079
        %v1081 = vrot.slane %v1074, 2
        %v1082 = vsel %vm997, %v1079, %v1081
        %1083 = vrot.lane.b32.xlu0 %v1080, 124
        %v1084 = vpop.permute.xlu0 %1083
        %1085 = vrot.lane.b32.xlu0 %v1082, 124
        %v1086 = vpop.permute.xlu0 %1085
        %v1089 = vadd.f32 %v1068, %v1084
        %v1090 = vadd.f32 %v1069, %v1086
        %s1091 = sld [smem:[#allocation12 + $0x13]]
        %v1092 = vstv %s1091
        %v1093 = vmul.f32 %v1092, %v742
        %v1094 = vmul.f32 %v1092, %v743
        %v1095 = vmul.f32 %v1092, %v744
        %v1099 = vrot.slane %v1093, 2
        %v1100 = vrot.slane %v1094, 2
        %v1101 = vsel %vm997, %v1099, %v1100
        %v1102 = vrot.slane %v1095, 2
        %v1103 = vsel %vm997, %v1100, %v1102
        %1104 = vrot.lane.b32.xlu0 %v1101, 123
        %v1105 = vpop.permute.xlu0 %1104
        %1106 = vrot.lane.b32.xlu0 %v1103, 123
        %v1107 = vpop.permute.xlu0 %1106
        %v1110 = vadd.f32 %v1089, %v1105
        %v1111 = vadd.f32 %v1090, %v1107
        %s1112 = sld [smem:[#allocation12 + $0x14]]
        %v1113 = vstv %s1112
        %v1114 = vmul.f32 %v1113, %v742
        %v1115 = vmul.f32 %v1113, %v743
        %v1116 = vmul.f32 %v1113, %v744
        %v1120 = vrot.slane %v1114, 2
        %v1121 = vrot.slane %v1115, 2
        %v1122 = vsel %vm997, %v1120, %v1121
        %v1123 = vrot.slane %v1116, 2
        %v1124 = vsel %vm997, %v1121, %v1123
        %1125 = vrot.lane.b32.xlu0 %v1122, 122
        %v1126 = vpop.permute.xlu0 %1125
        %1127 = vrot.lane.b32.xlu0 %v1124, 122
        %v1128 = vpop.permute.xlu0 %1127
        %v1131 = vadd.f32 %v1110, %v1126
        %v1132 = vadd.f32 %v1111, %v1128
        %s1133 = sld [smem:[#allocation12 + $0x15]]
        %v1134 = vstv %s1133
        %v1135 = vmul.f32 %v1134, %v742
        %v1136 = vmul.f32 %v1134, %v743
        %v1137 = vmul.f32 %v1134, %v744
        %v1141 = vrot.slane %v1135, 2
        %v1142 = vrot.slane %v1136, 2
        %v1143 = vsel %vm997, %v1141, %v1142
        %v1144 = vrot.slane %v1137, 2
        %v1145 = vsel %vm997, %v1142, %v1144
        %v1149 = vadd.f32 %v986, %v1143
        %v1150 = vadd.f32 %v987, %v1145
        %v1151 = vadd.f32 %v988, %v1144
        %s1152 = sld [smem:[#allocation12 + $0x16]]
        %v1153 = vstv %s1152
        %v1154 = vmul.f32 %v1153, %v742
        %v1155 = vmul.f32 %v1153, %v743
        %v1156 = vmul.f32 %v1153, %v744
        %v1160 = vrot.slane %v1154, 2
        %v1161 = vrot.slane %v1155, 2
        %v1162 = vsel %vm997, %v1160, %v1161
        %v1163 = vrot.slane %v1156, 2
        %v1164 = vsel %vm997, %v1161, %v1163
        %1165 = vrot.lane.b32.xlu0 %v1162, 127
        %v1166 = vpop.permute.xlu0 %1165
        %1167 = vrot.lane.b32.xlu0 %v1164, 127
        %v1168 = vpop.permute.xlu0 %1167
        %1169 = vrot.lane.b32.xlu0 %v1163, 127
        %v1170 = vpop.permute.xlu0 %1169
        %v1174 = vadd.f32 %v1149, %v1166
        %v1175 = vadd.f32 %v1150, %v1168
        %v1176 = vadd.f32 %v1151, %v1170
        %s1177 = sld [smem:[#allocation12 + $0x17]]
        %v1178 = vstv %s1177
        %v1179 = vmul.f32 %v1178, %v742
        %v1180 = vmul.f32 %v1178, %v743
        %v1181 = vmul.f32 %v1178, %v744
        %v1185 = vrot.slane %v1179, 2
        %v1186 = vrot.slane %v1180, 2
        %v1187 = vsel %vm997, %v1185, %v1186
        %v1188 = vrot.slane %v1181, 2
        %v1189 = vsel %vm997, %v1186, %v1188
        %1190 = vrot.lane.b32.xlu0 %v1187, 126
        %v1191 = vpop.permute.xlu0 %1190
        %1192 = vrot.lane.b32.xlu0 %v1189, 126
        %v1193 = vpop.permute.xlu0 %1192
        %1194 = vrot.lane.b32.xlu0 %v1188, 126
        %v1195 = vpop.permute.xlu0 %1194
        %v1199 = vadd.f32 %v1174, %v1191
        %v1200 = vadd.f32 %v1175, %v1193
        %v1201 = vadd.f32 %v1176, %v1195
        %s1202 = sld [smem:[#allocation12 + $0x18]]
        %v1203 = vstv %s1202
        %v1204 = vmul.f32 %v1203, %v742
        %v1205 = vmul.f32 %v1203, %v743
        %v1206 = vmul.f32 %v1203, %v744
        %v1210 = vrot.slane %v1204, 2
        %v1211 = vrot.slane %v1205, 2
        %v1212 = vsel %vm997, %v1210, %v1211
        %v1213 = vrot.slane %v1206, 2
        %v1214 = vsel %vm997, %v1211, %v1213
        %1215 = vrot.lane.b32.xlu0 %v1212, 125
        %v1216 = vpop.permute.xlu0 %1215
        %1217 = vrot.lane.b32.xlu0 %v1214, 125
        %v1218 = vpop.permute.xlu0 %1217
        %1219 = vrot.lane.b32.xlu0 %v1213, 125
        %v1220 = vpop.permute.xlu0 %1219
        %v1224 = vadd.f32 %v1199, %v1216
        %v1225 = vadd.f32 %v1200, %v1218
        %v1226 = vadd.f32 %v1201, %v1220
        %s1227 = sld [smem:[#allocation12 + $0x19]]
        %v1228 = vstv %s1227
        %v1229 = vmul.f32 %v1228, %v742
        %v1230 = vmul.f32 %v1228, %v743
        %v1231 = vmul.f32 %v1228, %v744
        %v1235 = vrot.slane %v1229, 2
        %v1236 = vrot.slane %v1230, 2
        %v1237 = vsel %vm997, %v1235, %v1236
        %v1238 = vrot.slane %v1231, 2
        %v1239 = vsel %vm997, %v1236, %v1238
        %1240 = vrot.lane.b32.xlu0 %v1237, 124
        %v1241 = vpop.permute.xlu0 %1240
        %1242 = vrot.lane.b32.xlu0 %v1239, 124
        %v1243 = vpop.permute.xlu0 %1242
        %1244 = vrot.lane.b32.xlu0 %v1238, 124
        %v1245 = vpop.permute.xlu0 %1244
        %v1249 = vadd.f32 %v1224, %v1241
        %v1250 = vadd.f32 %v1225, %v1243
        %v1251 = vadd.f32 %v1226, %v1245
        %s1252 = sld [smem:[#allocation12 + $0x1a]]
        %v1253 = vstv %s1252
        %v1254 = vmul.f32 %v1253, %v742
        %v1255 = vmul.f32 %v1253, %v743
        %v1256 = vmul.f32 %v1253, %v744
        %v1260 = vrot.slane %v1254, 2
        %v1261 = vrot.slane %v1255, 2
        %v1262 = vsel %vm997, %v1260, %v1261
        %v1263 = vrot.slane %v1256, 2
        %v1264 = vsel %vm997, %v1261, %v1263
        %1265 = vrot.lane.b32.xlu0 %v1262, 123
        %v1266 = vpop.permute.xlu0 %1265
        %1267 = vrot.lane.b32.xlu0 %v1264, 123
        %v1268 = vpop.permute.xlu0 %1267
        %1269 = vrot.lane.b32.xlu0 %v1263, 123
        %v1270 = vpop.permute.xlu0 %1269
        %v1274 = vadd.f32 %v1249, %v1266
        %v1275 = vadd.f32 %v1250, %v1268
        %v1276 = vadd.f32 %v1251, %v1270
        %s1277 = sld [smem:[#allocation12 + $0x1b]]
        %v1278 = vstv %s1277
        %v1279 = vmul.f32 %v1278, %v742
        %v1280 = vmul.f32 %v1278, %v743
        %v1281 = vmul.f32 %v1278, %v744
        %v1285 = vrot.slane %v1279, 2
        %v1286 = vrot.slane %v1280, 2
        %v1287 = vsel %vm997, %v1285, %v1286
        %v1288 = vrot.slane %v1281, 2
        %v1289 = vsel %vm997, %v1286, %v1288
        %1290 = vrot.lane.b32.xlu0 %v1287, 122
        %v1291 = vpop.permute.xlu0 %1290
        %1292 = vrot.lane.b32.xlu0 %v1289, 122
        %v1293 = vpop.permute.xlu0 %1292
        %1294 = vrot.lane.b32.xlu0 %v1288, 122
        %v1295 = vpop.permute.xlu0 %1294
        %v1299 = vadd.f32 %v1274, %v1291
        %v1300 = vadd.f32 %v1275, %v1293
        %v1301 = vadd.f32 %v1276, %v1295
        %s1302 = sld [smem:[#allocation12 + $0x1c]]
        %v1303 = vstv %s1302
        %v1304 = vmul.f32 %v1303, %v742
        %v1305 = vmul.f32 %v1303, %v743
        %v1306 = vmul.f32 %v1303, %v744
        %vm1310 = vcmask 1043456
        %v1311 = vrot.slane %v1304, 4
        %v1312 = vrot.slane %v1305, 4
        %v1313 = vsel %vm1310, %v1311, %v1312
        %v1314 = vrot.slane %v1306, 4
        %v1315 = vsel %vm1310, %v1312, %v1314
        %v1318 = vadd.f32 %v1131, %v1313
        %v1319 = vadd.f32 %v1132, %v1315
        %s1320 = sld [smem:[#allocation12 + $0x1d]]
        %v1321 = vstv %s1320
        %v1322 = vmul.f32 %v1321, %v742
        %v1323 = vmul.f32 %v1321, %v743
        %v1324 = vmul.f32 %v1321, %v744
        %v1328 = vrot.slane %v1322, 4
        %v1329 = vrot.slane %v1323, 4
        %v1330 = vsel %vm1310, %v1328, %v1329
        %v1331 = vrot.slane %v1324, 4
        %v1332 = vsel %vm1310, %v1329, %v1331
        %1333 = vrot.lane.b32.xlu0 %v1330, 127
        %v1334 = vpop.permute.xlu0 %1333
        %1335 = vrot.lane.b32.xlu0 %v1332, 127
        %v1336 = vpop.permute.xlu0 %1335
        %v1339 = vadd.f32 %v1318, %v1334
        %v1340 = vadd.f32 %v1319, %v1336
        %s1341 = sld [smem:[#allocation12 + $0x1e]]
        %v1342 = vstv %s1341
        %v1343 = vmul.f32 %v1342, %v742
        %v1344 = vmul.f32 %v1342, %v743
        %v1345 = vmul.f32 %v1342, %v744
        %v1349 = vrot.slane %v1343, 4
        %v1350 = vrot.slane %v1344, 4
        %v1351 = vsel %vm1310, %v1349, %v1350
        %v1352 = vrot.slane %v1345, 4
        %v1353 = vsel %vm1310, %v1350, %v1352
        %1354 = vrot.lane.b32.xlu0 %v1351, 126
        %v1355 = vpop.permute.xlu0 %1354
        %1356 = vrot.lane.b32.xlu0 %v1353, 126
        %v1357 = vpop.permute.xlu0 %1356
        %v1360 = vadd.f32 %v1339, %v1355
        %v1361 = vadd.f32 %v1340, %v1357
        %s1362 = sld [smem:[#allocation12 + $0x1f]]
        %v1363 = vstv %s1362
        %v1364 = vmul.f32 %v1363, %v742
        %v1365 = vmul.f32 %v1363, %v743
        %v1366 = vmul.f32 %v1363, %v744
        %v1370 = vrot.slane %v1364, 4
        %v1371 = vrot.slane %v1365, 4
        %v1372 = vsel %vm1310, %v1370, %v1371
        %v1373 = vrot.slane %v1366, 4
        %v1374 = vsel %vm1310, %v1371, %v1373
        %1375 = vrot.lane.b32.xlu0 %v1372, 125
        %v1376 = vpop.permute.xlu0 %1375
        %1377 = vrot.lane.b32.xlu0 %v1374, 125
        %v1378 = vpop.permute.xlu0 %1377
        %v1381 = vadd.f32 %v1360, %v1376
        %v1382 = vadd.f32 %v1361, %v1378
        %s1383 = sld [smem:[#allocation12 + $0x20]]
        %v1384 = vstv %s1383
        %v1385 = vmul.f32 %v1384, %v742
        %v1386 = vmul.f32 %v1384, %v743
        %v1387 = vmul.f32 %v1384, %v744
        %v1391 = vrot.slane %v1385, 4
        %v1392 = vrot.slane %v1386, 4
        %v1393 = vsel %vm1310, %v1391, %v1392
        %v1394 = vrot.slane %v1387, 4
        %v1395 = vsel %vm1310, %v1392, %v1394
        %1396 = vrot.lane.b32.xlu0 %v1393, 124
        %v1397 = vpop.permute.xlu0 %1396
        %1398 = vrot.lane.b32.xlu0 %v1395, 124
        %v1399 = vpop.permute.xlu0 %1398
        %v1402 = vadd.f32 %v1381, %v1397
        %v1403 = vadd.f32 %v1382, %v1399
        %s1404 = sld [smem:[#allocation12 + $0x21]]
        %v1405 = vstv %s1404
        %v1406 = vmul.f32 %v1405, %v742
        %v1407 = vmul.f32 %v1405, %v743
        %v1408 = vmul.f32 %v1405, %v744
        %v1412 = vrot.slane %v1406, 4
        %v1413 = vrot.slane %v1407, 4
        %v1414 = vsel %vm1310, %v1412, %v1413
        %v1415 = vrot.slane %v1408, 4
        %v1416 = vsel %vm1310, %v1413, %v1415
        %1417 = vrot.lane.b32.xlu0 %v1414, 123
        %v1418 = vpop.permute.xlu0 %1417
        %1419 = vrot.lane.b32.xlu0 %v1416, 123
        %v1420 = vpop.permute.xlu0 %1419
        %v1423 = vadd.f32 %v1402, %v1418
        %v1424 = vadd.f32 %v1403, %v1420
        %s1425 = sld [smem:[#allocation12 + $0x22]]
        %v1426 = vstv %s1425
        %v1427 = vmul.f32 %v1426, %v742
        %v1428 = vmul.f32 %v1426, %v743
        %v1429 = vmul.f32 %v1426, %v744
        %v1433 = vrot.slane %v1427, 4
        %v1434 = vrot.slane %v1428, 4
        %v1435 = vsel %vm1310, %v1433, %v1434
        %v1436 = vrot.slane %v1429, 4
        %v1437 = vsel %vm1310, %v1434, %v1436
        %1438 = vrot.lane.b32.xlu0 %v1435, 122
        %v1439 = vpop.permute.xlu0 %1438
        %1440 = vrot.lane.b32.xlu0 %v1437, 122
        %v1441 = vpop.permute.xlu0 %1440
        %v1444 = vadd.f32 %v1423, %v1439
        %v1445 = vadd.f32 %v1424, %v1441
        %s1446 = sld [smem:[#allocation12 + $0x23]]
        %v1447 = vstv %s1446
        %v1448 = vmul.f32 %v1447, %v742
        %v1449 = vmul.f32 %v1447, %v743
        %v1450 = vmul.f32 %v1447, %v744
        %v1454 = vrot.slane %v1448, 4
        %v1455 = vrot.slane %v1449, 4
        %v1456 = vsel %vm1310, %v1454, %v1455
        %v1457 = vrot.slane %v1450, 4
        %v1458 = vsel %vm1310, %v1455, %v1457
        %v1462 = vadd.f32 %v1299, %v1456
        %v1463 = vadd.f32 %v1300, %v1458
        %v1464 = vadd.f32 %v1301, %v1457
        %s1465 = sld [smem:[#allocation12 + $0x24]]
        %v1466 = vstv %s1465
        %v1467 = vmul.f32 %v1466, %v742
        %v1468 = vmul.f32 %v1466, %v743
        %v1469 = vmul.f32 %v1466, %v744
        %v1473 = vrot.slane %v1467, 4
        %v1474 = vrot.slane %v1468, 4
        %v1475 = vsel %vm1310, %v1473, %v1474
        %v1476 = vrot.slane %v1469, 4
        %v1477 = vsel %vm1310, %v1474, %v1476
        %1478 = vrot.lane.b32.xlu0 %v1475, 127
        %v1479 = vpop.permute.xlu0 %1478
        %1480 = vrot.lane.b32.xlu0 %v1477, 127
        %v1481 = vpop.permute.xlu0 %1480
        %1482 = vrot.lane.b32.xlu0 %v1476, 127
        %v1483 = vpop.permute.xlu0 %1482
        %v1487 = vadd.f32 %v1462, %v1479
        %v1488 = vadd.f32 %v1463, %v1481
        %v1489 = vadd.f32 %v1464, %v1483
        %s1490 = sld [smem:[#allocation12 + $0x25]]
        %v1491 = vstv %s1490
        %v1492 = vmul.f32 %v1491, %v742
        %v1493 = vmul.f32 %v1491, %v743
        %v1494 = vmul.f32 %v1491, %v744
        %v1498 = vrot.slane %v1492, 4
        %v1499 = vrot.slane %v1493, 4
        %v1500 = vsel %vm1310, %v1498, %v1499
        %v1501 = vrot.slane %v1494, 4
        %v1502 = vsel %vm1310, %v1499, %v1501
        %1503 = vrot.lane.b32.xlu0 %v1500, 126
        %v1504 = vpop.permute.xlu0 %1503
        %1505 = vrot.lane.b32.xlu0 %v1502, 126
        %v1506 = vpop.permute.xlu0 %1505
        %1507 = vrot.lane.b32.xlu0 %v1501, 126
        %v1508 = vpop.permute.xlu0 %1507
        %v1512 = vadd.f32 %v1487, %v1504
        %v1513 = vadd.f32 %v1488, %v1506
        %v1514 = vadd.f32 %v1489, %v1508
        %s1515 = sld [smem:[#allocation12 + $0x26]]
        %v1516 = vstv %s1515
        %v1517 = vmul.f32 %v1516, %v742
        %v1518 = vmul.f32 %v1516, %v743
        %v1519 = vmul.f32 %v1516, %v744
        %v1523 = vrot.slane %v1517, 4
        %v1524 = vrot.slane %v1518, 4
        %v1525 = vsel %vm1310, %v1523, %v1524
        %v1526 = vrot.slane %v1519, 4
        %v1527 = vsel %vm1310, %v1524, %v1526
        %1528 = vrot.lane.b32.xlu0 %v1525, 125
        %v1529 = vpop.permute.xlu0 %1528
        %1530 = vrot.lane.b32.xlu0 %v1527, 125
        %v1531 = vpop.permute.xlu0 %1530
        %1532 = vrot.lane.b32.xlu0 %v1526, 125
        %v1533 = vpop.permute.xlu0 %1532
        %v1537 = vadd.f32 %v1512, %v1529
        %v1538 = vadd.f32 %v1513, %v1531
        %v1539 = vadd.f32 %v1514, %v1533
        %s1540 = sld [smem:[#allocation12 + $0x27]]
        %v1541 = vstv %s1540
        %v1542 = vmul.f32 %v1541, %v742
        %v1543 = vmul.f32 %v1541, %v743
        %v1544 = vmul.f32 %v1541, %v744
        %v1548 = vrot.slane %v1542, 4
        %v1549 = vrot.slane %v1543, 4
        %v1550 = vsel %vm1310, %v1548, %v1549
        %v1551 = vrot.slane %v1544, 4
        %v1552 = vsel %vm1310, %v1549, %v1551
        %1553 = vrot.lane.b32.xlu0 %v1550, 124
        %v1554 = vpop.permute.xlu0 %1553
        %1555 = vrot.lane.b32.xlu0 %v1552, 124
        %v1556 = vpop.permute.xlu0 %1555
        %1557 = vrot.lane.b32.xlu0 %v1551, 124
        %v1558 = vpop.permute.xlu0 %1557
        %v1562 = vadd.f32 %v1537, %v1554
        %v1563 = vadd.f32 %v1538, %v1556
        %v1564 = vadd.f32 %v1539, %v1558
        %s1565 = sld [smem:[#allocation12 + $0x28]]
        %v1566 = vstv %s1565
        %v1567 = vmul.f32 %v1566, %v742
        %v1568 = vmul.f32 %v1566, %v743
        %v1569 = vmul.f32 %v1566, %v744
        %v1573 = vrot.slane %v1567, 4
        %v1574 = vrot.slane %v1568, 4
        %v1575 = vsel %vm1310, %v1573, %v1574
        %v1576 = vrot.slane %v1569, 4
        %v1577 = vsel %vm1310, %v1574, %v1576
        %1578 = vrot.lane.b32.xlu0 %v1575, 123
        %v1579 = vpop.permute.xlu0 %1578
        %1580 = vrot.lane.b32.xlu0 %v1577, 123
        %v1581 = vpop.permute.xlu0 %1580
        %1582 = vrot.lane.b32.xlu0 %v1576, 123
        %v1583 = vpop.permute.xlu0 %1582
        %v1587 = vadd.f32 %v1562, %v1579
        %v1588 = vadd.f32 %v1563, %v1581
        %v1589 = vadd.f32 %v1564, %v1583
        %s1590 = sld [smem:[#allocation12 + $0x29]]
        %v1591 = vstv %s1590
        %v1592 = vmul.f32 %v1591, %v742
        %v1593 = vmul.f32 %v1591, %v743
        %v1594 = vmul.f32 %v1591, %v744
        %v1598 = vrot.slane %v1592, 4
        %v1599 = vrot.slane %v1593, 4
        %v1600 = vsel %vm1310, %v1598, %v1599
        %v1601 = vrot.slane %v1594, 4
        %v1602 = vsel %vm1310, %v1599, %v1601
        %1603 = vrot.lane.b32.xlu0 %v1600, 122
        %v1604 = vpop.permute.xlu0 %1603
        %1605 = vrot.lane.b32.xlu0 %v1602, 122
        %v1606 = vpop.permute.xlu0 %1605
        %1607 = vrot.lane.b32.xlu0 %v1601, 122
        %v1608 = vpop.permute.xlu0 %1607
        %v1612 = vadd.f32 %v1587, %v1604
        %v1613 = vadd.f32 %v1588, %v1606
        %v1614 = vadd.f32 %v1589, %v1608
        %s1615 = sld [smem:[#allocation12 + $0x2a]]
        %v1616 = vstv %s1615
        %v1617 = vmul.f32 %v1616, %v742
        %v1618 = vmul.f32 %v1616, %v743
        %v1619 = vmul.f32 %v1616, %v744
        %vm1623 = vcmask 1041408
        %v1624 = vrot.slane %v1617, 6
        %v1625 = vrot.slane %v1618, 6
        %v1626 = vsel %vm1623, %v1624, %v1625
        %v1627 = vrot.slane %v1619, 6
        %v1628 = vsel %vm1623, %v1625, %v1627
        %v1631 = vadd.f32 %v1444, %v1626
        %v1632 = vadd.f32 %v1445, %v1628
        %s1633 = sld [smem:[#allocation12 + $0x2b]]
        %v1634 = vstv %s1633
        %v1635 = vmul.f32 %v1634, %v742
        %v1636 = vmul.f32 %v1634, %v743
        %v1637 = vmul.f32 %v1634, %v744
        %v1641 = vrot.slane %v1635, 6
        %v1642 = vrot.slane %v1636, 6
        %v1643 = vsel %vm1623, %v1641, %v1642
        %v1644 = vrot.slane %v1637, 6
        %v1645 = vsel %vm1623, %v1642, %v1644
        %1646 = vrot.lane.b32.xlu0 %v1643, 127
        %v1647 = vpop.permute.xlu0 %1646
        %1648 = vrot.lane.b32.xlu0 %v1645, 127
        %v1649 = vpop.permute.xlu0 %1648
        %v1652 = vadd.f32 %v1631, %v1647
        %v1653 = vadd.f32 %v1632, %v1649
        %s1654 = sld [smem:[#allocation12 + $0x2c]]
        %v1655 = vstv %s1654
        %v1656 = vmul.f32 %v1655, %v742
        %v1657 = vmul.f32 %v1655, %v743
        %v1658 = vmul.f32 %v1655, %v744
        %v1662 = vrot.slane %v1656, 6
        %v1663 = vrot.slane %v1657, 6
        %v1664 = vsel %vm1623, %v1662, %v1663
        %v1665 = vrot.slane %v1658, 6
        %v1666 = vsel %vm1623, %v1663, %v1665
        %1667 = vrot.lane.b32.xlu0 %v1664, 126
        %v1668 = vpop.permute.xlu0 %1667
        %1669 = vrot.lane.b32.xlu0 %v1666, 126
        %v1670 = vpop.permute.xlu0 %1669
        %v1673 = vadd.f32 %v1652, %v1668
        %v1674 = vadd.f32 %v1653, %v1670
        %s1675 = sld [smem:[#allocation12 + $0x2d]]
        %v1676 = vstv %s1675
        %v1677 = vmul.f32 %v1676, %v742
        %v1678 = vmul.f32 %v1676, %v743
        %v1679 = vmul.f32 %v1676, %v744
        %v1683 = vrot.slane %v1677, 6
        %v1684 = vrot.slane %v1678, 6
        %v1685 = vsel %vm1623, %v1683, %v1684
        %v1686 = vrot.slane %v1679, 6
        %v1687 = vsel %vm1623, %v1684, %v1686
        %1688 = vrot.lane.b32.xlu0 %v1685, 125
        %v1689 = vpop.permute.xlu0 %1688
        %1690 = vrot.lane.b32.xlu0 %v1687, 125
        %v1691 = vpop.permute.xlu0 %1690
        %v1694 = vadd.f32 %v1673, %v1689
        %v1695 = vadd.f32 %v1674, %v1691
        %s1696 = sld [smem:[#allocation12 + $0x2e]]
        %v1697 = vstv %s1696
        %v1698 = vmul.f32 %v1697, %v742
        %v1699 = vmul.f32 %v1697, %v743
        %v1700 = vmul.f32 %v1697, %v744
        %v1704 = vrot.slane %v1698, 6
        %v1705 = vrot.slane %v1699, 6
        %v1706 = vsel %vm1623, %v1704, %v1705
        %v1707 = vrot.slane %v1700, 6
        %v1708 = vsel %vm1623, %v1705, %v1707
        %1709 = vrot.lane.b32.xlu0 %v1706, 124
        %v1710 = vpop.permute.xlu0 %1709
        %1711 = vrot.lane.b32.xlu0 %v1708, 124
        %v1712 = vpop.permute.xlu0 %1711
        %v1715 = vadd.f32 %v1694, %v1710
        %v1716 = vadd.f32 %v1695, %v1712
        %s1717 = sld [smem:[#allocation12 + $0x2f]]
        %v1718 = vstv %s1717
        %v1719 = vmul.f32 %v1718, %v742
        %v1720 = vmul.f32 %v1718, %v743
        %v1721 = vmul.f32 %v1718, %v744
        %v1725 = vrot.slane %v1719, 6
        %v1726 = vrot.slane %v1720, 6
        %v1727 = vsel %vm1623, %v1725, %v1726
        %v1728 = vrot.slane %v1721, 6
        %v1729 = vsel %vm1623, %v1726, %v1728
        %1730 = vrot.lane.b32.xlu0 %v1727, 123
        %v1731 = vpop.permute.xlu0 %1730
        %1732 = vrot.lane.b32.xlu0 %v1729, 123
        %v1733 = vpop.permute.xlu0 %1732
        %v1736 = vadd.f32 %v1715, %v1731
        %v1737 = vadd.f32 %v1716, %v1733
        %s1738 = sld [smem:[#allocation12 + $0x30]]
        %v1739 = vstv %s1738
        %v1740 = vmul.f32 %v1739, %v742
        %v1741 = vmul.f32 %v1739, %v743
        %v1742 = vmul.f32 %v1739, %v744
        %v1746 = vrot.slane %v1740, 6
        %v1747 = vrot.slane %v1741, 6
        %v1748 = vsel %vm1623, %v1746, %v1747
        %v1749 = vrot.slane %v1742, 6
        %v1750 = vsel %vm1623, %v1747, %v1749
        %1751 = vrot.lane.b32.xlu0 %v1748, 122
        %v1752 = vpop.permute.xlu0 %1751
        %1753 = vrot.lane.b32.xlu0 %v1750, 122
        %v1754 = vpop.permute.xlu0 %1753
        %v1757 = vadd.f32 %v1736, %v1752
        %v1758 = vadd.f32 %v1737, %v1754
        %s1759 = sld [smem:[#allocation12 + $0x31]]
        %v1760 = vstv %s1759
        %v1761 = vmul.f32 %v1760, %v768
        %v1762 = vmul.f32 %v1760, %v769
        %v1763 = vadd.f32 %v1761, 0.0
        %v1764 = vadd.f32 %v1762, 0.0
        %s1765 = sld [smem:[#allocation12 + $0x32]]
        %v1766 = vstv %s1765
        %v1767 = vmul.f32 %v1766, %v768
        %v1768 = vmul.f32 %v1766, %v769
        %1771 = vrot.lane.b32.xlu0 %v1767, 127
        %v1772 = vpop.permute.xlu0 %1771
        %1773 = vrot.lane.b32.xlu0 %v1768, 127
        %v1774 = vpop.permute.xlu0 %1773
        %v1777 = vadd.f32 %v1763, %v1772
        %v1778 = vadd.f32 %v1764, %v1774
        %s1779 = sld [smem:[#allocation12 + $0x33]]
        %v1780 = vstv %s1779
        %v1781 = vmul.f32 %v1780, %v768
        %v1782 = vmul.f32 %v1780, %v769
        %1785 = vrot.lane.b32.xlu0 %v1781, 126
        %v1786 = vpop.permute.xlu0 %1785
        %1787 = vrot.lane.b32.xlu0 %v1782, 126
        %v1788 = vpop.permute.xlu0 %1787
        %v1791 = vadd.f32 %v1777, %v1786
        %v1792 = vadd.f32 %v1778, %v1788
        %s1793 = sld [smem:[#allocation12 + $0x34]]
        %v1794 = vstv %s1793
        %v1795 = vmul.f32 %v1794, %v768
        %v1796 = vmul.f32 %v1794, %v769
        %1799 = vrot.lane.b32.xlu0 %v1795, 125
        %v1800 = vpop.permute.xlu0 %1799
        %1801 = vrot.lane.b32.xlu0 %v1796, 125
        %v1802 = vpop.permute.xlu0 %1801
        %v1805 = vadd.f32 %v1791, %v1800
        %v1806 = vadd.f32 %v1792, %v1802
        %s1807 = sld [smem:[#allocation12 + $0x35]]
        %v1808 = vstv %s1807
        %v1809 = vmul.f32 %v1808, %v768
        %v1810 = vmul.f32 %v1808, %v769
        %1813 = vrot.lane.b32.xlu0 %v1809, 124
        %v1814 = vpop.permute.xlu0 %1813
        %1815 = vrot.lane.b32.xlu0 %v1810, 124
        %v1816 = vpop.permute.xlu0 %1815
        %v1819 = vadd.f32 %v1805, %v1814
        %v1820 = vadd.f32 %v1806, %v1816
        %s1821 = sld [smem:[#allocation12 + $0x36]]
        %v1822 = vstv %s1821
        %v1823 = vmul.f32 %v1822, %v768
        %v1824 = vmul.f32 %v1822, %v769
        %1827 = vrot.lane.b32.xlu0 %v1823, 123
        %v1828 = vpop.permute.xlu0 %1827
        %1829 = vrot.lane.b32.xlu0 %v1824, 123
        %v1830 = vpop.permute.xlu0 %1829
        %v1833 = vadd.f32 %v1819, %v1828
        %v1834 = vadd.f32 %v1820, %v1830
        %s1835 = sld [smem:[#allocation12 + $0x37]]
        %v1836 = vstv %s1835
        %v1837 = vmul.f32 %v1836, %v768
        %v1838 = vmul.f32 %v1836, %v769
        %1841 = vrot.lane.b32.xlu0 %v1837, 122
        %v1842 = vpop.permute.xlu0 %1841
        %1843 = vrot.lane.b32.xlu0 %v1838, 122
        %v1844 = vpop.permute.xlu0 %1843
        %v1847 = vadd.f32 %v1833, %v1842
        %v1848 = vadd.f32 %v1834, %v1844
        %s1849 = sld [smem:[#allocation12 + $0x38]]
        %v1850 = vstv %s1849
        %v1851 = vmul.f32 %v1850, %v768
        %v1852 = vmul.f32 %v1850, %v769
        %v1853 = vmul.f32 %v1850, %v770
        %v1854 = vadd.f32 %v1851, 0.0
        %v1855 = vadd.f32 %v1852, 0.0
        %v1856 = vadd.f32 %v1853, 0.0
        %s1857 = sld [smem:[#allocation12 + $0x39]]
        %v1858 = vstv %s1857
        %v1859 = vmul.f32 %v1858, %v768
        %v1860 = vmul.f32 %v1858, %v769
        %v1861 = vmul.f32 %v1858, %v770
        %1865 = vrot.lane.b32.xlu0 %v1859, 127
        %v1866 = vpop.permute.xlu0 %1865
        %1867 = vrot.lane.b32.xlu0 %v1860, 127
        %v1868 = vpop.permute.xlu0 %1867
        %1869 = vrot.lane.b32.xlu0 %v1861, 127
        %v1870 = vpop.permute.xlu0 %1869
        %v1874 = vadd.f32 %v1854, %v1866
        %v1875 = vadd.f32 %v1855, %v1868
        %v1876 = vadd.f32 %v1856, %v1870
        %s1877 = sld [smem:[#allocation12 + $0x3a]]
        %v1878 = vstv %s1877
        %v1879 = vmul.f32 %v1878, %v768
        %v1880 = vmul.f32 %v1878, %v769
        %v1881 = vmul.f32 %v1878, %v770
        %1885 = vrot.lane.b32.xlu0 %v1879, 126
        %v1886 = vpop.permute.xlu0 %1885
        %1887 = vrot.lane.b32.xlu0 %v1880, 126
        %v1888 = vpop.permute.xlu0 %1887
        %1889 = vrot.lane.b32.xlu0 %v1881, 126
        %v1890 = vpop.permute.xlu0 %1889
        %v1894 = vadd.f32 %v1874, %v1886
        %v1895 = vadd.f32 %v1875, %v1888
        %v1896 = vadd.f32 %v1876, %v1890
        %s1897 = sld [smem:[#allocation12 + $0x3b]]
        %v1898 = vstv %s1897
        %v1899 = vmul.f32 %v1898, %v768
        %v1900 = vmul.f32 %v1898, %v769
        %v1901 = vmul.f32 %v1898, %v770
        %1905 = vrot.lane.b32.xlu0 %v1899, 125
        %v1906 = vpop.permute.xlu0 %1905
        %1907 = vrot.lane.b32.xlu0 %v1900, 125
        %v1908 = vpop.permute.xlu0 %1907
        %1909 = vrot.lane.b32.xlu0 %v1901, 125
        %v1910 = vpop.permute.xlu0 %1909
        %v1914 = vadd.f32 %v1894, %v1906
        %v1915 = vadd.f32 %v1895, %v1908
        %v1916 = vadd.f32 %v1896, %v1910
        %s1917 = sld [smem:[#allocation12 + $0x3c]]
        %v1918 = vstv %s1917
        %v1919 = vmul.f32 %v1918, %v768
        %v1920 = vmul.f32 %v1918, %v769
        %v1921 = vmul.f32 %v1918, %v770
        %1925 = vrot.lane.b32.xlu0 %v1919, 124
        %v1926 = vpop.permute.xlu0 %1925
        %1927 = vrot.lane.b32.xlu0 %v1920, 124
        %v1928 = vpop.permute.xlu0 %1927
        %1929 = vrot.lane.b32.xlu0 %v1921, 124
        %v1930 = vpop.permute.xlu0 %1929
        %v1934 = vadd.f32 %v1914, %v1926
        %v1935 = vadd.f32 %v1915, %v1928
        %v1936 = vadd.f32 %v1916, %v1930
        %s1937 = sld [smem:[#allocation12 + $0x3d]]
        %v1938 = vstv %s1937
        %v1939 = vmul.f32 %v1938, %v768
        %v1940 = vmul.f32 %v1938, %v769
        %v1941 = vmul.f32 %v1938, %v770
        %1945 = vrot.lane.b32.xlu0 %v1939, 123
        %v1946 = vpop.permute.xlu0 %1945
        %1947 = vrot.lane.b32.xlu0 %v1940, 123
        %v1948 = vpop.permute.xlu0 %1947
        %1949 = vrot.lane.b32.xlu0 %v1941, 123
        %v1950 = vpop.permute.xlu0 %1949
        %v1954 = vadd.f32 %v1934, %v1946
        %v1955 = vadd.f32 %v1935, %v1948
        %v1956 = vadd.f32 %v1936, %v1950
        %s1957 = sld [smem:[#allocation12 + $0x3e]]
        %v1958 = vstv %s1957
        %v1959 = vmul.f32 %v1958, %v768
        %v1960 = vmul.f32 %v1958, %v769
        %v1961 = vmul.f32 %v1958, %v770
        %1965 = vrot.lane.b32.xlu0 %v1959, 122
        %v1966 = vpop.permute.xlu0 %1965
        %1967 = vrot.lane.b32.xlu0 %v1960, 122
        %v1968 = vpop.permute.xlu0 %1967
        %1969 = vrot.lane.b32.xlu0 %v1961, 122
        %v1970 = vpop.permute.xlu0 %1969
        %v1974 = vadd.f32 %v1954, %v1966
        %v1975 = vadd.f32 %v1955, %v1968
        %v1976 = vadd.f32 %v1956, %v1970
        %s1977 = sld [smem:[#allocation12 + $0x3f]]
        %v1978 = vstv %s1977
        %v1979 = vmul.f32 %v1978, %v768
        %v1980 = vmul.f32 %v1978, %v769
        %v1981 = vmul.f32 %v1978, %v770
        %v1985 = vrot.slane %v1979, 2
        %v1986 = vrot.slane %v1980, 2
        %v1987 = vsel %vm997, %v1985, %v1986
        %v1988 = vrot.slane %v1981, 2
        %v1989 = vsel %vm997, %v1986, %v1988
        %v1992 = vadd.f32 %v1847, %v1987
        %v1993 = vadd.f32 %v1848, %v1989
        %s1994 = sld [smem:[#allocation12 + $0x40]]
        %v1995 = vstv %s1994
        %v1996 = vmul.f32 %v1995, %v768
        %v1997 = vmul.f32 %v1995, %v769
        %v1998 = vmul.f32 %v1995, %v770
        %v2002 = vrot.slane %v1996, 2
        %v2003 = vrot.slane %v1997, 2
        %v2004 = vsel %vm997, %v2002, %v2003
        %v2005 = vrot.slane %v1998, 2
        %v2006 = vsel %vm997, %v2003, %v2005
        %2007 = vrot.lane.b32.xlu0 %v2004, 127
        %v2008 = vpop.permute.xlu0 %2007
        %2009 = vrot.lane.b32.xlu0 %v2006, 127
        %v2010 = vpop.permute.xlu0 %2009
        %v2013 = vadd.f32 %v1992, %v2008
        %v2014 = vadd.f32 %v1993, %v2010
        %s2015 = sld [smem:[#allocation12 + $0x41]]
        %v2016 = vstv %s2015
        %v2017 = vmul.f32 %v2016, %v768
        %v2018 = vmul.f32 %v2016, %v769
        %v2019 = vmul.f32 %v2016, %v770
        %v2023 = vrot.slane %v2017, 2
        %v2024 = vrot.slane %v2018, 2
        %v2025 = vsel %vm997, %v2023, %v2024
        %v2026 = vrot.slane %v2019, 2
        %v2027 = vsel %vm997, %v2024, %v2026
        %2028 = vrot.lane.b32.xlu0 %v2025, 126
        %v2029 = vpop.permute.xlu0 %2028
        %2030 = vrot.lane.b32.xlu0 %v2027, 126
        %v2031 = vpop.permute.xlu0 %2030
        %v2034 = vadd.f32 %v2013, %v2029
        %v2035 = vadd.f32 %v2014, %v2031
        %s2036 = sld [smem:[#allocation12 + $0x42]]
        %v2037 = vstv %s2036
        %v2038 = vmul.f32 %v2037, %v768
        %v2039 = vmul.f32 %v2037, %v769
        %v2040 = vmul.f32 %v2037, %v770
        %v2044 = vrot.slane %v2038, 2
        %v2045 = vrot.slane %v2039, 2
        %v2046 = vsel %vm997, %v2044, %v2045
        %v2047 = vrot.slane %v2040, 2
        %v2048 = vsel %vm997, %v2045, %v2047
        %2049 = vrot.lane.b32.xlu0 %v2046, 125
        %v2050 = vpop.permute.xlu0 %2049
        %2051 = vrot.lane.b32.xlu0 %v2048, 125
        %v2052 = vpop.permute.xlu0 %2051
        %v2055 = vadd.f32 %v2034, %v2050
        %v2056 = vadd.f32 %v2035, %v2052
        %s2057 = sld [smem:[#allocation12 + $0x43]]
        %v2058 = vstv %s2057
        %v2059 = vmul.f32 %v2058, %v768
        %v2060 = vmul.f32 %v2058, %v769
        %v2061 = vmul.f32 %v2058, %v770
        %v2065 = vrot.slane %v2059, 2
        %v2066 = vrot.slane %v2060, 2
        %v2067 = vsel %vm997, %v2065, %v2066
        %v2068 = vrot.slane %v2061, 2
        %v2069 = vsel %vm997, %v2066, %v2068
        %2070 = vrot.lane.b32.xlu0 %v2067, 124
        %v2071 = vpop.permute.xlu0 %2070
        %2072 = vrot.lane.b32.xlu0 %v2069, 124
        %v2073 = vpop.permute.xlu0 %2072
        %v2076 = vadd.f32 %v2055, %v2071
        %v2077 = vadd.f32 %v2056, %v2073
        %s2078 = sld [smem:[#allocation12 + $0x44]]
        %v2079 = vstv %s2078
        %v2080 = vmul.f32 %v2079, %v768
        %v2081 = vmul.f32 %v2079, %v769
        %v2082 = vmul.f32 %v2079, %v770
        %v2086 = vrot.slane %v2080, 2
        %v2087 = vrot.slane %v2081, 2
        %v2088 = vsel %vm997, %v2086, %v2087
        %v2089 = vrot.slane %v2082, 2
        %v2090 = vsel %vm997, %v2087, %v2089
        %2091 = vrot.lane.b32.xlu0 %v2088, 123
        %v2092 = vpop.permute.xlu0 %2091
        %2093 = vrot.lane.b32.xlu0 %v2090, 123
        %v2094 = vpop.permute.xlu0 %2093
        %v2097 = vadd.f32 %v2076, %v2092
        %v2098 = vadd.f32 %v2077, %v2094
        %s2099 = sld [smem:[#allocation12 + $0x45]]
        %v2100 = vstv %s2099
        %v2101 = vmul.f32 %v2100, %v768
        %v2102 = vmul.f32 %v2100, %v769
        %v2103 = vmul.f32 %v2100, %v770
        %v2107 = vrot.slane %v2101, 2
        %v2108 = vrot.slane %v2102, 2
        %v2109 = vsel %vm997, %v2107, %v2108
        %v2110 = vrot.slane %v2103, 2
        %v2111 = vsel %vm997, %v2108, %v2110
        %2112 = vrot.lane.b32.xlu0 %v2109, 122
        %v2113 = vpop.permute.xlu0 %2112
        %2114 = vrot.lane.b32.xlu0 %v2111, 122
        %v2115 = vpop.permute.xlu0 %2114
        %v2118 = vadd.f32 %v2097, %v2113
        %v2119 = vadd.f32 %v2098, %v2115
        %s2120 = sld [smem:[#allocation12 + $0x46]]
        %v2121 = vstv %s2120
        %v2122 = vmul.f32 %v2121, %v768
        %v2123 = vmul.f32 %v2121, %v769
        %v2124 = vmul.f32 %v2121, %v770
        %v2128 = vrot.slane %v2122, 2
        %v2129 = vrot.slane %v2123, 2
        %v2130 = vsel %vm997, %v2128, %v2129
        %v2131 = vrot.slane %v2124, 2
        %v2132 = vsel %vm997, %v2129, %v2131
        %v2136 = vadd.f32 %v1974, %v2130
        %v2137 = vadd.f32 %v1975, %v2132
        %v2138 = vadd.f32 %v1976, %v2131
        %s2139 = sld [smem:[#allocation12 + $0x47]]
        %v2140 = vstv %s2139
        %v2141 = vmul.f32 %v2140, %v768
        %v2142 = vmul.f32 %v2140, %v769
        %v2143 = vmul.f32 %v2140, %v770
        %v2147 = vrot.slane %v2141, 2
        %v2148 = vrot.slane %v2142, 2
        %v2149 = vsel %vm997, %v2147, %v2148
        %v2150 = vrot.slane %v2143, 2
        %v2151 = vsel %vm997, %v2148, %v2150
        %2152 = vrot.lane.b32.xlu0 %v2149, 127
        %v2153 = vpop.permute.xlu0 %2152
        %2154 = vrot.lane.b32.xlu0 %v2151, 127
        %v2155 = vpop.permute.xlu0 %2154
        %2156 = vrot.lane.b32.xlu0 %v2150, 127
        %v2157 = vpop.permute.xlu0 %2156
        %v2161 = vadd.f32 %v2136, %v2153
        %v2162 = vadd.f32 %v2137, %v2155
        %v2163 = vadd.f32 %v2138, %v2157
        %s2164 = sld [smem:[#allocation12 + $0x48]]
        %v2165 = vstv %s2164
        %v2166 = vmul.f32 %v2165, %v768
        %v2167 = vmul.f32 %v2165, %v769
        %v2168 = vmul.f32 %v2165, %v770
        %v2172 = vrot.slane %v2166, 2
        %v2173 = vrot.slane %v2167, 2
        %v2174 = vsel %vm997, %v2172, %v2173
        %v2175 = vrot.slane %v2168, 2
        %v2176 = vsel %vm997, %v2173, %v2175
        %2177 = vrot.lane.b32.xlu0 %v2174, 126
        %v2178 = vpop.permute.xlu0 %2177
        %2179 = vrot.lane.b32.xlu0 %v2176, 126
        %v2180 = vpop.permute.xlu0 %2179
        %2181 = vrot.lane.b32.xlu0 %v2175, 126
        %v2182 = vpop.permute.xlu0 %2181
        %v2186 = vadd.f32 %v2161, %v2178
        %v2187 = vadd.f32 %v2162, %v2180
        %v2188 = vadd.f32 %v2163, %v2182
        %s2189 = sld [smem:[#allocation12 + $0x49]]
        %v2190 = vstv %s2189
        %v2191 = vmul.f32 %v2190, %v768
        %v2192 = vmul.f32 %v2190, %v769
        %v2193 = vmul.f32 %v2190, %v770
        %v2197 = vrot.slane %v2191, 2
        %v2198 = vrot.slane %v2192, 2
        %v2199 = vsel %vm997, %v2197, %v2198
        %v2200 = vrot.slane %v2193, 2
        %v2201 = vsel %vm997, %v2198, %v2200
        %2202 = vrot.lane.b32.xlu0 %v2199, 125
        %v2203 = vpop.permute.xlu0 %2202
        %2204 = vrot.lane.b32.xlu0 %v2201, 125
        %v2205 = vpop.permute.xlu0 %2204
        %2206 = vrot.lane.b32.xlu0 %v2200, 125
        %v2207 = vpop.permute.xlu0 %2206
        %v2211 = vadd.f32 %v2186, %v2203
        %v2212 = vadd.f32 %v2187, %v2205
        %v2213 = vadd.f32 %v2188, %v2207
        %s2214 = sld [smem:[#allocation12 + $0x4a]]
        %v2215 = vstv %s2214
        %v2216 = vmul.f32 %v2215, %v768
        %v2217 = vmul.f32 %v2215, %v769
        %v2218 = vmul.f32 %v2215, %v770
        %v2222 = vrot.slane %v2216, 2
        %v2223 = vrot.slane %v2217, 2
        %v2224 = vsel %vm997, %v2222, %v2223
        %v2225 = vrot.slane %v2218, 2
        %v2226 = vsel %vm997, %v2223, %v2225
        %2227 = vrot.lane.b32.xlu0 %v2224, 124
        %v2228 = vpop.permute.xlu0 %2227
        %2229 = vrot.lane.b32.xlu0 %v2226, 124
        %v2230 = vpop.permute.xlu0 %2229
        %2231 = vrot.lane.b32.xlu0 %v2225, 124
        %v2232 = vpop.permute.xlu0 %2231
        %v2236 = vadd.f32 %v2211, %v2228
        %v2237 = vadd.f32 %v2212, %v2230
        %v2238 = vadd.f32 %v2213, %v2232
        %s2239 = sld [smem:[#allocation12 + $0x4b]]
        %v2240 = vstv %s2239
        %v2241 = vmul.f32 %v2240, %v768
        %v2242 = vmul.f32 %v2240, %v769
        %v2243 = vmul.f32 %v2240, %v770
        %v2247 = vrot.slane %v2241, 2
        %v2248 = vrot.slane %v2242, 2
        %v2249 = vsel %vm997, %v2247, %v2248
        %v2250 = vrot.slane %v2243, 2
        %v2251 = vsel %vm997, %v2248, %v2250
        %2252 = vrot.lane.b32.xlu0 %v2249, 123
        %v2253 = vpop.permute.xlu0 %2252
        %2254 = vrot.lane.b32.xlu0 %v2251, 123
        %v2255 = vpop.permute.xlu0 %2254
        %2256 = vrot.lane.b32.xlu0 %v2250, 123
        %v2257 = vpop.permute.xlu0 %2256
        %v2261 = vadd.f32 %v2236, %v2253
        %v2262 = vadd.f32 %v2237, %v2255
        %v2263 = vadd.f32 %v2238, %v2257
        %s2264 = sld [smem:[#allocation12 + $0x4c]]
        %v2265 = vstv %s2264
        %v2266 = vmul.f32 %v2265, %v768
        %v2267 = vmul.f32 %v2265, %v769
        %v2268 = vmul.f32 %v2265, %v770
        %v2272 = vrot.slane %v2266, 2
        %v2273 = vrot.slane %v2267, 2
        %v2274 = vsel %vm997, %v2272, %v2273
        %v2275 = vrot.slane %v2268, 2
        %v2276 = vsel %vm997, %v2273, %v2275
        %2277 = vrot.lane.b32.xlu0 %v2274, 122
        %v2278 = vpop.permute.xlu0 %2277
        %2279 = vrot.lane.b32.xlu0 %v2276, 122
        %v2280 = vpop.permute.xlu0 %2279
        %2281 = vrot.lane.b32.xlu0 %v2275, 122
        %v2282 = vpop.permute.xlu0 %2281
        %v2286 = vadd.f32 %v2261, %v2278
        %v2287 = vadd.f32 %v2262, %v2280
        %v2288 = vadd.f32 %v2263, %v2282
        %s2289 = sld [smem:[#allocation12 + $0x4d]]
        %v2290 = vstv %s2289
        %v2291 = vmul.f32 %v2290, %v768
        %v2292 = vmul.f32 %v2290, %v769
        %v2293 = vmul.f32 %v2290, %v770
        %v2297 = vrot.slane %v2291, 4
        %v2298 = vrot.slane %v2292, 4
        %v2299 = vsel %vm1310, %v2297, %v2298
        %v2300 = vrot.slane %v2293, 4
        %v2301 = vsel %vm1310, %v2298, %v2300
        %v2304 = vadd.f32 %v2118, %v2299
        %v2305 = vadd.f32 %v2119, %v2301
        %s2306 = sld [smem:[#allocation12 + $0x4e]]
        %v2307 = vstv %s2306
        %v2308 = vmul.f32 %v2307, %v768
        %v2309 = vmul.f32 %v2307, %v769
        %v2310 = vmul.f32 %v2307, %v770
        %v2314 = vrot.slane %v2308, 4
        %v2315 = vrot.slane %v2309, 4
        %v2316 = vsel %vm1310, %v2314, %v2315
        %v2317 = vrot.slane %v2310, 4
        %v2318 = vsel %vm1310, %v2315, %v2317
        %2319 = vrot.lane.b32.xlu0 %v2316, 127
        %v2320 = vpop.permute.xlu0 %2319
        %2321 = vrot.lane.b32.xlu0 %v2318, 127
        %v2322 = vpop.permute.xlu0 %2321
        %v2325 = vadd.f32 %v2304, %v2320
        %v2326 = vadd.f32 %v2305, %v2322
        %s2327 = sld [smem:[#allocation12 + $0x4f]]
        %v2328 = vstv %s2327
        %v2329 = vmul.f32 %v2328, %v768
        %v2330 = vmul.f32 %v2328, %v769
        %v2331 = vmul.f32 %v2328, %v770
        %v2335 = vrot.slane %v2329, 4
        %v2336 = vrot.slane %v2330, 4
        %v2337 = vsel %vm1310, %v2335, %v2336
        %v2338 = vrot.slane %v2331, 4
        %v2339 = vsel %vm1310, %v2336, %v2338
        %2340 = vrot.lane.b32.xlu0 %v2337, 126
        %v2341 = vpop.permute.xlu0 %2340
        %2342 = vrot.lane.b32.xlu0 %v2339, 126
        %v2343 = vpop.permute.xlu0 %2342
        %v2346 = vadd.f32 %v2325, %v2341
        %v2347 = vadd.f32 %v2326, %v2343
        %s2348 = sld [smem:[#allocation12 + $0x50]]
        %v2349 = vstv %s2348
        %v2350 = vmul.f32 %v2349, %v768
        %v2351 = vmul.f32 %v2349, %v769
        %v2352 = vmul.f32 %v2349, %v770
        %v2356 = vrot.slane %v2350, 4
        %v2357 = vrot.slane %v2351, 4
        %v2358 = vsel %vm1310, %v2356, %v2357
        %v2359 = vrot.slane %v2352, 4
        %v2360 = vsel %vm1310, %v2357, %v2359
        %2361 = vrot.lane.b32.xlu0 %v2358, 125
        %v2362 = vpop.permute.xlu0 %2361
        %2363 = vrot.lane.b32.xlu0 %v2360, 125
        %v2364 = vpop.permute.xlu0 %2363
        %v2367 = vadd.f32 %v2346, %v2362
        %v2368 = vadd.f32 %v2347, %v2364
        %s2369 = sld [smem:[#allocation12 + $0x51]]
        %v2370 = vstv %s2369
        %v2371 = vmul.f32 %v2370, %v768
        %v2372 = vmul.f32 %v2370, %v769
        %v2373 = vmul.f32 %v2370, %v770
        %v2377 = vrot.slane %v2371, 4
        %v2378 = vrot.slane %v2372, 4
        %v2379 = vsel %vm1310, %v2377, %v2378
        %v2380 = vrot.slane %v2373, 4
        %v2381 = vsel %vm1310, %v2378, %v2380
        %2382 = vrot.lane.b32.xlu0 %v2379, 124
        %v2383 = vpop.permute.xlu0 %2382
        %2384 = vrot.lane.b32.xlu0 %v2381, 124
        %v2385 = vpop.permute.xlu0 %2384
        %v2388 = vadd.f32 %v2367, %v2383
        %v2389 = vadd.f32 %v2368, %v2385
        %s2390 = sld [smem:[#allocation12 + $0x52]]
        %v2391 = vstv %s2390
        %v2392 = vmul.f32 %v2391, %v768
        %v2393 = vmul.f32 %v2391, %v769
        %v2394 = vmul.f32 %v2391, %v770
        %v2398 = vrot.slane %v2392, 4
        %v2399 = vrot.slane %v2393, 4
        %v2400 = vsel %vm1310, %v2398, %v2399
        %v2401 = vrot.slane %v2394, 4
        %v2402 = vsel %vm1310, %v2399, %v2401
        %2403 = vrot.lane.b32.xlu0 %v2400, 123
        %v2404 = vpop.permute.xlu0 %2403
        %2405 = vrot.lane.b32.xlu0 %v2402, 123
        %v2406 = vpop.permute.xlu0 %2405
        %v2409 = vadd.f32 %v2388, %v2404
        %v2410 = vadd.f32 %v2389, %v2406
        %s2411 = sld [smem:[#allocation12 + $0x53]]
        %v2412 = vstv %s2411
        %v2413 = vmul.f32 %v2412, %v768
        %v2414 = vmul.f32 %v2412, %v769
        %v2415 = vmul.f32 %v2412, %v770
        %v2419 = vrot.slane %v2413, 4
        %v2420 = vrot.slane %v2414, 4
        %v2421 = vsel %vm1310, %v2419, %v2420
        %v2422 = vrot.slane %v2415, 4
        %v2423 = vsel %vm1310, %v2420, %v2422
        %2424 = vrot.lane.b32.xlu0 %v2421, 122
        %v2425 = vpop.permute.xlu0 %2424
        %2426 = vrot.lane.b32.xlu0 %v2423, 122
        %v2427 = vpop.permute.xlu0 %2426
        %v2430 = vadd.f32 %v2409, %v2425
        %v2431 = vadd.f32 %v2410, %v2427
        %s2432 = sld [smem:[#allocation12 + $0x54]]
        %v2433 = vstv %s2432
        %v2434 = vmul.f32 %v2433, %v768
        %v2435 = vmul.f32 %v2433, %v769
        %v2436 = vmul.f32 %v2433, %v770
        %v2440 = vrot.slane %v2434, 4
        %v2441 = vrot.slane %v2435, 4
        %v2442 = vsel %vm1310, %v2440, %v2441
        %v2443 = vrot.slane %v2436, 4
        %v2444 = vsel %vm1310, %v2441, %v2443
        %v2448 = vadd.f32 %v2286, %v2442
        %v2449 = vadd.f32 %v2287, %v2444
        %v2450 = vadd.f32 %v2288, %v2443
        %s2451 = sld [smem:[#allocation12 + $0x55]]
        %v2452 = vstv %s2451
        %v2453 = vmul.f32 %v2452, %v768
        %v2454 = vmul.f32 %v2452, %v769
        %v2455 = vmul.f32 %v2452, %v770
        %v2459 = vrot.slane %v2453, 4
        %v2460 = vrot.slane %v2454, 4
        %v2461 = vsel %vm1310, %v2459, %v2460
        %v2462 = vrot.slane %v2455, 4
        %v2463 = vsel %vm1310, %v2460, %v2462
        %2464 = vrot.lane.b32.xlu0 %v2461, 127
        %v2465 = vpop.permute.xlu0 %2464
        %2466 = vrot.lane.b32.xlu0 %v2463, 127
        %v2467 = vpop.permute.xlu0 %2466
        %2468 = vrot.lane.b32.xlu0 %v2462, 127
        %v2469 = vpop.permute.xlu0 %2468
        %v2473 = vadd.f32 %v2448, %v2465
        %v2474 = vadd.f32 %v2449, %v2467
        %v2475 = vadd.f32 %v2450, %v2469
        %s2476 = sld [smem:[#allocation12 + $0x56]]
        %v2477 = vstv %s2476
        %v2478 = vmul.f32 %v2477, %v768
        %v2479 = vmul.f32 %v2477, %v769
        %v2480 = vmul.f32 %v2477, %v770
        %v2484 = vrot.slane %v2478, 4
        %v2485 = vrot.slane %v2479, 4
        %v2486 = vsel %vm1310, %v2484, %v2485
        %v2487 = vrot.slane %v2480, 4
        %v2488 = vsel %vm1310, %v2485, %v2487
        %2489 = vrot.lane.b32.xlu0 %v2486, 126
        %v2490 = vpop.permute.xlu0 %2489
        %2491 = vrot.lane.b32.xlu0 %v2488, 126
        %v2492 = vpop.permute.xlu0 %2491
        %2493 = vrot.lane.b32.xlu0 %v2487, 126
        %v2494 = vpop.permute.xlu0 %2493
        %v2498 = vadd.f32 %v2473, %v2490
        %v2499 = vadd.f32 %v2474, %v2492
        %v2500 = vadd.f32 %v2475, %v2494
        %s2501 = sld [smem:[#allocation12 + $0x57]]
        %v2502 = vstv %s2501
        %v2503 = vmul.f32 %v2502, %v768
        %v2504 = vmul.f32 %v2502, %v769
        %v2505 = vmul.f32 %v2502, %v770
        %v2509 = vrot.slane %v2503, 4
        %v2510 = vrot.slane %v2504, 4
        %v2511 = vsel %vm1310, %v2509, %v2510
        %v2512 = vrot.slane %v2505, 4
        %v2513 = vsel %vm1310, %v2510, %v2512
        %2514 = vrot.lane.b32.xlu0 %v2511, 125
        %v2515 = vpop.permute.xlu0 %2514
        %2516 = vrot.lane.b32.xlu0 %v2513, 125
        %v2517 = vpop.permute.xlu0 %2516
        %2518 = vrot.lane.b32.xlu0 %v2512, 125
        %v2519 = vpop.permute.xlu0 %2518
        %v2523 = vadd.f32 %v2498, %v2515
        %v2524 = vadd.f32 %v2499, %v2517
        %v2525 = vadd.f32 %v2500, %v2519
        %s2526 = sld [smem:[#allocation12 + $0x58]]
        %v2527 = vstv %s2526
        %v2528 = vmul.f32 %v2527, %v768
        %v2529 = vmul.f32 %v2527, %v769
        %v2530 = vmul.f32 %v2527, %v770
        %v2534 = vrot.slane %v2528, 4
        %v2535 = vrot.slane %v2529, 4
        %v2536 = vsel %vm1310, %v2534, %v2535
        %v2537 = vrot.slane %v2530, 4
        %v2538 = vsel %vm1310, %v2535, %v2537
        %2539 = vrot.lane.b32.xlu0 %v2536, 124
        %v2540 = vpop.permute.xlu0 %2539
        %2541 = vrot.lane.b32.xlu0 %v2538, 124
        %v2542 = vpop.permute.xlu0 %2541
        %2543 = vrot.lane.b32.xlu0 %v2537, 124
        %v2544 = vpop.permute.xlu0 %2543
        %v2548 = vadd.f32 %v2523, %v2540
        %v2549 = vadd.f32 %v2524, %v2542
        %v2550 = vadd.f32 %v2525, %v2544
        %s2551 = sld [smem:[#allocation12 + $0x59]]
        %v2552 = vstv %s2551
        %v2553 = vmul.f32 %v2552, %v768
        %v2554 = vmul.f32 %v2552, %v769
        %v2555 = vmul.f32 %v2552, %v770
        %v2559 = vrot.slane %v2553, 4
        %v2560 = vrot.slane %v2554, 4
        %v2561 = vsel %vm1310, %v2559, %v2560
        %v2562 = vrot.slane %v2555, 4
        %v2563 = vsel %vm1310, %v2560, %v2562
        %2564 = vrot.lane.b32.xlu0 %v2561, 123
        %v2565 = vpop.permute.xlu0 %2564
        %2566 = vrot.lane.b32.xlu0 %v2563, 123
        %v2567 = vpop.permute.xlu0 %2566
        %2568 = vrot.lane.b32.xlu0 %v2562, 123
        %v2569 = vpop.permute.xlu0 %2568
        %v2573 = vadd.f32 %v2548, %v2565
        %v2574 = vadd.f32 %v2549, %v2567
        %v2575 = vadd.f32 %v2550, %v2569
        %s2576 = sld [smem:[#allocation12 + $0x5a]]
        %v2577 = vstv %s2576
        %v2578 = vmul.f32 %v2577, %v768
        %v2579 = vmul.f32 %v2577, %v769
        %v2580 = vmul.f32 %v2577, %v770
        %v2584 = vrot.slane %v2578, 4
        %v2585 = vrot.slane %v2579, 4
        %v2586 = vsel %vm1310, %v2584, %v2585
        %v2587 = vrot.slane %v2580, 4
        %v2588 = vsel %vm1310, %v2585, %v2587
        %2589 = vrot.lane.b32.xlu0 %v2586, 122
        %v2590 = vpop.permute.xlu0 %2589
        %2591 = vrot.lane.b32.xlu0 %v2588, 122
        %v2592 = vpop.permute.xlu0 %2591
        %2593 = vrot.lane.b32.xlu0 %v2587, 122
        %v2594 = vpop.permute.xlu0 %2593
        %v2598 = vadd.f32 %v2573, %v2590
        %v2599 = vadd.f32 %v2574, %v2592
        %v2600 = vadd.f32 %v2575, %v2594
        %s2601 = sld [smem:[#allocation12 + $0x5b]]
        %v2602 = vstv %s2601
        %v2603 = vmul.f32 %v2602, %v768
        %v2604 = vmul.f32 %v2602, %v769
        %v2605 = vmul.f32 %v2602, %v770
        %v2609 = vrot.slane %v2603, 6
        %v2610 = vrot.slane %v2604, 6
        %v2611 = vsel %vm1623, %v2609, %v2610
        %v2612 = vrot.slane %v2605, 6
        %v2613 = vsel %vm1623, %v2610, %v2612
        %v2616 = vadd.f32 %v2430, %v2611
        %v2617 = vadd.f32 %v2431, %v2613
        %s2618 = sld [smem:[#allocation12 + $0x5c]]
        %v2619 = vstv %s2618
        %v2620 = vmul.f32 %v2619, %v768
        %v2621 = vmul.f32 %v2619, %v769
        %v2622 = vmul.f32 %v2619, %v770
        %v2626 = vrot.slane %v2620, 6
        %v2627 = vrot.slane %v2621, 6
        %v2628 = vsel %vm1623, %v2626, %v2627
        %v2629 = vrot.slane %v2622, 6
        %v2630 = vsel %vm1623, %v2627, %v2629
        %2631 = vrot.lane.b32.xlu0 %v2628, 127
        %v2632 = vpop.permute.xlu0 %2631
        %2633 = vrot.lane.b32.xlu0 %v2630, 127
        %v2634 = vpop.permute.xlu0 %2633
        %v2637 = vadd.f32 %v2616, %v2632
        %v2638 = vadd.f32 %v2617, %v2634
        %s2639 = sld [smem:[#allocation12 + $0x5d]]
        %v2640 = vstv %s2639
        %v2641 = vmul.f32 %v2640, %v768
        %v2642 = vmul.f32 %v2640, %v769
        %v2643 = vmul.f32 %v2640, %v770
        %v2647 = vrot.slane %v2641, 6
        %v2648 = vrot.slane %v2642, 6
        %v2649 = vsel %vm1623, %v2647, %v2648
        %v2650 = vrot.slane %v2643, 6
        %v2651 = vsel %vm1623, %v2648, %v2650
        %2652 = vrot.lane.b32.xlu0 %v2649, 126
        %v2653 = vpop.permute.xlu0 %2652
        %2654 = vrot.lane.b32.xlu0 %v2651, 126
        %v2655 = vpop.permute.xlu0 %2654
        %v2658 = vadd.f32 %v2637, %v2653
        %v2659 = vadd.f32 %v2638, %v2655
        %s2660 = sld [smem:[#allocation12 + $0x5e]]
        %v2661 = vstv %s2660
        %v2662 = vmul.f32 %v2661, %v768
        %v2663 = vmul.f32 %v2661, %v769
        %v2664 = vmul.f32 %v2661, %v770
        %v2668 = vrot.slane %v2662, 6
        %v2669 = vrot.slane %v2663, 6
        %v2670 = vsel %vm1623, %v2668, %v2669
        %v2671 = vrot.slane %v2664, 6
        %v2672 = vsel %vm1623, %v2669, %v2671
        %2673 = vrot.lane.b32.xlu0 %v2670, 125
        %v2674 = vpop.permute.xlu0 %2673
        %2675 = vrot.lane.b32.xlu0 %v2672, 125
        %v2676 = vpop.permute.xlu0 %2675
        %v2679 = vadd.f32 %v2658, %v2674
        %v2680 = vadd.f32 %v2659, %v2676
        %s2681 = sld [smem:[#allocation12 + $0x5f]]
        %v2682 = vstv %s2681
        %v2683 = vmul.f32 %v2682, %v768
        %v2684 = vmul.f32 %v2682, %v769
        %v2685 = vmul.f32 %v2682, %v770
        %v2689 = vrot.slane %v2683, 6
        %v2690 = vrot.slane %v2684, 6
        %v2691 = vsel %vm1623, %v2689, %v2690
        %v2692 = vrot.slane %v2685, 6
        %v2693 = vsel %vm1623, %v2690, %v2692
        %2694 = vrot.lane.b32.xlu0 %v2691, 124
        %v2695 = vpop.permute.xlu0 %2694
        %2696 = vrot.lane.b32.xlu0 %v2693, 124
        %v2697 = vpop.permute.xlu0 %2696
        %v2700 = vadd.f32 %v2679, %v2695
        %v2701 = vadd.f32 %v2680, %v2697
        %s2702 = sld [smem:[#allocation12 + $0x60]]
        %v2703 = vstv %s2702
        %v2704 = vmul.f32 %v2703, %v768
        %v2705 = vmul.f32 %v2703, %v769
        %v2706 = vmul.f32 %v2703, %v770
        %v2710 = vrot.slane %v2704, 6
        %v2711 = vrot.slane %v2705, 6
        %v2712 = vsel %vm1623, %v2710, %v2711
        %v2713 = vrot.slane %v2706, 6
        %v2714 = vsel %vm1623, %v2711, %v2713
        %2715 = vrot.lane.b32.xlu0 %v2712, 123
        %v2716 = vpop.permute.xlu0 %2715
        %2717 = vrot.lane.b32.xlu0 %v2714, 123
        %v2718 = vpop.permute.xlu0 %2717
        %v2721 = vadd.f32 %v2700, %v2716
        %v2722 = vadd.f32 %v2701, %v2718
        %s2723 = sld [smem:[#allocation12 + $0x61]]
        %v2724 = vstv %s2723
        %v2725 = vmul.f32 %v2724, %v768
        %v2726 = vmul.f32 %v2724, %v769
        %v2727 = vmul.f32 %v2724, %v770
        %v2731 = vrot.slane %v2725, 6
        %v2732 = vrot.slane %v2726, 6
        %v2733 = vsel %vm1623, %v2731, %v2732
        %v2734 = vrot.slane %v2727, 6
        %v2735 = vsel %vm1623, %v2732, %v2734
        %2736 = vrot.lane.b32.xlu0 %v2733, 122
        %v2737 = vpop.permute.xlu0 %2736
        %2738 = vrot.lane.b32.xlu0 %v2735, 122
        %v2739 = vpop.permute.xlu0 %2738
        %v2742 = vadd.f32 %v2721, %v2737
        %v2743 = vadd.f32 %v2722, %v2739
        %vm2747 = vcmask 1046528
        %v2748 = vrot.slane %v1612, 1
        %v2749 = vrot.slane %v1613, 1
        %v2750 = vsel %vm2747, %v2748, %v2749
        %v2751 = vrot.slane %v1614, 1
        %v2752 = vsel %vm2747, %v2749, %v2751
        %v2755 = vadd.f32 %v1757, %v2750
        %v2756 = vadd.f32 %v1758, %v2752
        %v2760 = vrot.slane %v2598, 1
        %v2761 = vrot.slane %v2599, 1
        %v2762 = vsel %vm2747, %v2760, %v2761
        %v2763 = vrot.slane %v2600, 1
        %v2764 = vsel %vm2747, %v2761, %v2763
        %v2767 = vadd.f32 %v2742, %v2762
        %v2768 = vadd.f32 %v2743, %v2764
        %v2769 = vadd.f32 %v2755, %v2767
        %v2770 = vadd.f32 %v2756, %v2768
        %s2771 = sld [smem:[#allocation2]]
        %v2772 = vstv %s2771
        %v2773 = vadd.f32 %v2769, %v2772
        %v2774 = vadd.f32 %v2770, %v2772
        %v2775 = vsub.f32 0.0, %v2773
        %v2776 = vsub.f32 0.0, %v2774
        %v2777 = vmul.f32 %v2775, 1.442695
        %v2778 = vpow.pop %v2777
        %v2779 = vmul.f32 %v2776, 1.442695
        %v2780 = vpow.pop %v2779
        %v2781 = vadd.f32 %v2778, 1.0
        %v2782 = vadd.f32 %v2780, 1.0
        %v2783 = vrcp.pop %v2781
        %v2784 = vmul.f32 %v2781, %v2783
        %v2785 = vsub.f32 1.0, %v2784
        %v2786 = vmul.f32 %v2783, %v2785
        %v2787 = vadd.f32 %v2783, %v2786
        %vm2788 = vweird.f32 %v2781
        %vm2789 = vweird.f32 %v2783
        %vm2790 = vmor %vm2788, %vm2789
        %v2791 = vsel %vm2790, %v2783, %v2787
        %v2792 = vand.u32 2147483647, %v2781
        %vm2793 = vcmp.eq.f32.partialorder %v2792, 8.507059e+37
        %v2794 = vand.u32 %v2781, 2147483648
        %v2795 = vor.u32 1.1754944e-38, %v2794
        %v2796 = vsel %vm2793, %v2795, %v2791
        %v2797 = vrcp.pop %v2782
        %v2798 = vmul.f32 %v2782, %v2797
        %v2799 = vsub.f32 1.0, %v2798
        %v2800 = vmul.f32 %v2797, %v2799
        %v2801 = vadd.f32 %v2797, %v2800
        %vm2802 = vweird.f32 %v2782
        %vm2803 = vweird.f32 %v2797
        %vm2804 = vmor %vm2802, %vm2803
        %v2805 = vsel %vm2804, %v2797, %v2801
        %v2806 = vand.u32 2147483647, %v2782
        %vm2807 = vcmp.eq.f32.partialorder %v2806, 8.507059e+37
        %v2808 = vand.u32 %v2782, 2147483648
        %v2809 = vor.u32 1.1754944e-38, %v2808
        %v2810 = vsel %vm2807, %v2809, %v2805
        %v2811 = vmul.f32 %v412, %v2796
        %v2812 = vmul.f32 %v413, %v2810
        %v2813 = vmul.f32 %v414, %v2796
        %v2814 = vmul.f32 %v415, %v2810
        %v2815 = vmul.f32 %v416, %v2796
        %v2816 = vmul.f32 %v417, %v2810
        %v2817 = vmul.f32 %v418, %v2796
        %v2818 = vmul.f32 %v419, %v2810
        %vm2819 = vcmask 130048
        %2820 = vst.msk [vmem:[%s407] sm:$0xff] %vm2819, %v2811
        %2821 = vst.msk [vmem:[%s407 + $0x8] sm:$0xff] %vm2819, %v2812
        %2822 = vst.msk [vmem:[%s407 + $0x10] sm:$0xff] %vm2819, %v2813
        %2823 = vst.msk [vmem:[%s407 + $0x18] sm:$0xff] %vm2819, %v2814
        %2824 = vst.msk [vmem:[%s407 + $0x20] sm:$0xff] %vm2819, %v2815
        %2825 = vst.msk [vmem:[%s407 + $0x28] sm:$0xff] %vm2819, %v2816
        %2826 = vst.msk [vmem:[%s407 + $0x30] sm:$0xff] %vm2819, %v2817
        %2827 = vst.msk [vmem:[%s407 + $0x38] sm:$0xff] %vm2819, %v2818
        %s2828 = sand.u32 %s217, 1
        %s2829 = scalar_lea.sflag [#allocation5], %s2828
        %s2830 = sand.u32 %s217, 1
        %s2831 = smul.addr %s2830, 64
        %s2832 = scalar_lea.vmem [#allocation13], %s2831
        // Predicated region
        $region73: #{tpu_custom_call.1} parent=51 // pred_check
          %p2833 = pneg %p227
        $region74: #{tpu_custom_call.1} parent=51 // pred_check_branch
          %2835 = sbr.rel (%p2833) target = $region76
        $region75: #{tpu_custom_call.1} parent=51 // pred_region
          %2837 = vsyncadd %s2829, 0
          %s2838 = smul.addr %s31, 8
          %s2839 = smul.addr %s2838, 8
          %s2840 = scalar_lea.hbm %s8, %s2839
          %s2841 = sshll.u32 %s2832, 4
          %s2842 = int_to_ptr.vmem [resolvable:$true] %s2841
          %s2843 = sshll.u32 %s2840, 4
          %s2844 = int_to_ptr.hbm [resolvable:$true] %s2843
          %2849 = dma.vmem_to_hbm [thread:$0]  %s2842, 1024, %s2844, %s2829, 128, 128, 8
        $region76: #{tpu_custom_call.1} parent=51 // pred_fallthru
          _
      $region52: #{tpu_custom_call.1} parent=5 // pred_fallthru
        _
      %p2850 = scmp.le.s32.totalorder 2, %s26
      // Predicated region
      $region77: #{tpu_custom_call.1} parent=5 // pred_check
        %p2851 = pneg %p2850
      $region78: #{tpu_custom_call.1} parent=5 // pred_check_branch
        %2853 = sbr.rel (%p2851) target = $region80
      $region79: #{tpu_custom_call.1} parent=5 // pred_region
        %s2854 = ssub.s32 %s26, 2
        // Predicated region
        $region81: #{tpu_custom_call.1} parent=79 // pred_check
          %p2855 = pneg %p233
        $region82: #{tpu_custom_call.1} parent=79 // pred_check_branch
          %2857 = sbr.rel (%p2855) target = $region84
        $region83: #{tpu_custom_call.1} parent=79 // pred_region
          %s2858 = sand.u32 %s218, 1
          %s2859 = scalar_lea.sflag [#allocation5], %s2858
          %s2860 = sand.u32 %s218, 1
          %s2861 = smul.addr %s2860, 64
          %s2862 = scalar_lea.vmem [#allocation13], %s2861
          %2864 = dma.done %s2859, 1024
        $region84: #{tpu_custom_call.1} parent=79 // pred_fallthru
          _
      $region80: #{tpu_custom_call.1} parent=5 // pred_fallthru
        _
    $region6: #{tpu_custom_call.1} parent=1 // loop_footer
      %s30 = sadd.s32 1, %s26
    $region7: #{tpu_custom_call.1} parent=1 // loop_footer_branch
      %25 = sbr.rel target = $region3
    $region8: #{tpu_custom_call.1} parent=1 // loop_exit
      _
    %2865 = vsyncpa [#allocation4], 1
    %s2866 = scalar_lea.sflag [#allocation4], 1
    %2867 = vsyncpa %s2866, 1
    %2868 = vsyncpa [#allocation8], 1
    %s2869 = scalar_lea.sflag [#allocation8], 1
    %2870 = vsyncpa %s2869, 1
    %2871 = vsyncpa [#allocation5], 1
    %s2872 = scalar_lea.sflag [#allocation5], 1
    %2873 = vsyncpa %s2872, 1
    %2874 = vsyncpa [#allocation6], 1
    %s2875 = scalar_lea.sflag [#allocation6], 1
    %2876 = vsyncpa %s2875, 1
    %2877 = vsyncpa [#allocation11], 1

</llo_original>
